<compile_context>
chip_gen: v7x
topology: tpu7x:2x2x1
jax: 0.10.0
libtpu: 0.0.40
codegen_flags: <defaults>
</compile_context>

<pallas_src>
import functools

import jax
import jax.numpy as jnp
import numpy as np
from jax.experimental import pallas as pl
from jax.experimental.pallas import tpu as pltpu


def _round_up(x, m):
    return (x + m - 1) // m * m


def _num_parallel_tensorcores():
    """TensorCores a 'parallel' grid axis can shard across on this chip.
    v7x exposes 2 TCs per chip; v5e/v6e have 1 (batch splitting only adds
    grid-step overhead there)."""
    try:
        kind = jax.devices()[0].device_kind.lower()
    except Exception:
        return 1
    if "v7" in kind or "7x" in kind:
        return 2
    return 1


_GATE_PERM = np.array([0, 1, 3, 2])  # PyTorch [i, f, g, o] -> packed [i, f, o, g]


def _pack_gate_cols(w, H, Hp):
    """w: (4H, K) row-stacked in PyTorch gate order [i, f, g, o]. Returns
    (K, 4Hp): columns reordered to [i, f, o, g], each gate's H outputs placed at
    a lane-tile-aligned offset g*Hp, zero padded to Hp."""
    K = w.shape[1]
    w4 = w.reshape(4, H, K)[_GATE_PERM]
    w4p = jnp.zeros((4, Hp, K), w.dtype).at[:, :H, :].set(w4)
    return jnp.transpose(w4p.reshape(4 * Hp, K))


def _lstm_fused_kernel(x_ref, wih_ref, bias_ref, whh_ref, wlin_ref, blin_ref,
                       out_ref, gx_scr, h_scr, c_scr, *, hp, t_real, mask_time):
    """One grid step = one (batch block, time chunk).

    x_ref:    (tt*Bb, D)   bf16  input chunk, rows ordered (timestep, batch)
    wih_ref:  (D, 4Hp)     bf16  W_ih^T, gate-packed [i,f,o,g]        (resident)
    bias_ref: (1, 4Hp)     f32   b_ih + b_hh, gate-packed             (resident)
    whh_ref:  (Hp, 4Hp)    bf16  W_hh^T, gate-packed                  (resident)
    wlin_ref: (Hp, Op)     bf16  W_linear^T                           (resident)
    blin_ref: (1, Op)      f32
    out_ref:  (Bb, Op)     f32   written only on the last time chunk
    gx_scr:   (tt*Bb, 4Hp) f32   chunk input projection (VMEM scratch)
    h_scr/c_scr: (Bb, Hp)  f32   recurrent state carried across time chunks
    """
    t_blk = pl.program_id(1)
    bb = h_scr.shape[0]
    tt = x_ref.shape[0] // bb

    @pl.when(t_blk == 0)
    def _():
        h_scr[...] = jnp.zeros_like(h_scr)
        c_scr[...] = jnp.zeros_like(c_scr)

    # Fused input projection for the whole chunk: one MXU matmul, off the serial
    # h-chain; result streams into VMEM scratch (not held live in vregs).
    gx_scr[...] = (
        jnp.dot(x_ref[...], wih_ref[...], preferred_element_type=jnp.float32)
        + bias_ref[...]
    )

    h = h_scr[...]
    c = c_scr[...]

    # Fully unrolled static loop. Per step we load one (Bb, 4Hp) gates_x slice
    # and W_hh^T straight from VMEM (cheap vld, hidden under the MXU/EUP chain)
    # instead of pinning chunk-sized register values across the loop.
    for k in range(tt):
        gates = gx_scr[k * bb:(k + 1) * bb, :] + jnp.dot(
            h.astype(jnp.bfloat16), whh_ref[...],
            preferred_element_type=jnp.float32)
        sig = jax.nn.sigmoid(gates[:, :3 * hp])        # [i, f, o] in one EUP pass
        i_g = sig[:, 0 * hp:1 * hp]
        f_g = sig[:, 1 * hp:2 * hp]
        o_g = sig[:, 2 * hp:3 * hp]
        g_g = jnp.tanh(gates[:, 3 * hp:])
        c_new = f_g * c + i_g * g_g
        h_new = o_g * jnp.tanh(c_new)
        if mask_time:
            valid = t_blk * tt + k < t_real            # padded step: carry through
            c = jnp.where(valid, c_new, c)
            h = jnp.where(valid, h_new, h)
        else:
            c, h = c_new, h_new

    h_scr[...] = h
    c_scr[...] = c

    @pl.when(t_blk == pl.num_programs(1) - 1)
    def _():
        out_ref[...] = (
            jnp.dot(h.astype(jnp.bfloat16), wlin_ref[...],
                    preferred_element_type=jnp.float32)
            + blin_ref[...]
        ).astype(out_ref.dtype)


def lstm_forward(x, w_ih, w_hh, b_ih, b_hh, w_lin, b_lin):
    """x: (B, T, D) float32. Weights in PyTorch nn.LSTM / nn.Linear convention:
       w_ih (4H, D), w_hh (4H, H), b_ih (4H,), b_hh (4H,), w_lin (O, H),
       b_lin (O,). Returns (B, O) float32 = Linear(LSTM(x)[:, -1])."""
    B, T, D = x.shape
    H = w_hh.shape[1]
    O = w_lin.shape[0]

    f32, bf16 = jnp.float32, jnp.bfloat16

    Bp = _round_up(B, 8)        # sublane-dense batch
    Hp = _round_up(H, 128)      # lane-aligned gate blocks
    Op = _round_up(O, 128)      # lane-dense (unmasked) output stores

    # Batch split only where the "parallel" axis can actually shard (v7x).
    n_bb = 2 if (_num_parallel_tensorcores() >= 2 and Bp >= 16) else 1
    if n_bb == 2:
        Bp = _round_up(Bp, 16)
    Bb = Bp // n_bb

    # Time chunking: largest of {32, 16, 8} dividing T padded to a multiple of 8;
    # padded steps are masked in-kernel, so VMEM never scales with full T.
    Tp = _round_up(T, 8)
    if Tp % 32 == 0:
        tt = 32
    elif Tp % 16 == 0:
        tt = 16
    else:
        tt = 8
    grid_t = Tp // tt
    mask_time = Tp != T

    # ---- one-time weight / bias repacking (gate order [i, f, o, g]) ----
    wih_t = _pack_gate_cols(w_ih.astype(f32), H, Hp).astype(bf16)         # (D, 4Hp)
    whh_kp = jnp.zeros((4 * H, Hp), f32).at[:, :H].set(w_hh.astype(f32))
    whh_t = _pack_gate_cols(whh_kp, H, Hp).astype(bf16)                   # (Hp, 4Hp)
    b4 = (b_ih + b_hh).astype(f32).reshape(4, H)[_GATE_PERM]
    bias = jnp.zeros((4, Hp), f32).at[:, :H].set(b4).reshape(1, 4 * Hp)   # (1, 4Hp)
    wlin_t = jnp.transpose(
        jnp.zeros((Op, Hp), f32).at[:O, :H].set(w_lin.astype(f32))).astype(bf16)
    blin = jnp.zeros((1, Op), f32).at[0, :O].set(b_lin.astype(f32))       # (1, Op)

    # ---- arrange x as (grid_t, n_bb, tt*Bb, D): rows inside a chunk ordered
    #      (timestep-major, batch-minor), so the kernel needs no reshapes ----
    x_p = jnp.zeros((Bp, Tp, D), bf16).at[:B, :T].set(x.astype(bf16))
    x_arr = (x_p.reshape(n_bb, Bb, grid_t, tt, D)
                 .transpose(2, 0, 3, 1, 4)
                 .reshape(grid_t, n_bb, tt * Bb, D))

    # Explicit VMEM budget (streamed x double-buffered + resident weights +
    # scratch), with headroom.
    budget = (
        2 * (tt * Bb * D * 2)          # x chunk (bf16), double-buffered
        + 2 * (D * 4 * Hp * 2)         # W_ih^T
        + 2 * (4 * Hp * 4)             # bias
        + 2 * (Hp * 4 * Hp * 2)        # W_hh^T
        + 2 * (Hp * Op * 2)            # W_lin^T
        + 2 * (Op * 4)                 # b_lin
        + 2 * (Bb * Op * 4)            # output block
        + (tt * Bb * 4 * Hp * 4)       # gates_x scratch
        + 2 * (Bb * Hp * 4)            # h, c scratch
    )
    vmem_limit = int(min(128 * 1024 * 1024,
                         max(32 * 1024 * 1024, 2 * budget + (8 << 20))))

    kernel = functools.partial(_lstm_fused_kernel, hp=Hp, t_real=T,
                               mask_time=mask_time)

    def build(single_buffer_consts):
        const_kw = ({"pipeline_mode": pl.Buffered(1)}
                    if single_buffer_consts else {})
        return pl.pallas_call(
            kernel,
            out_shape=jax.ShapeDtypeStruct((Bp, Op), f32),
            grid=(n_bb, grid_t),
            in_specs=[
                pl.BlockSpec((None, None, tt * Bb, D), lambda b, t: (t, b, 0, 0)),
                pl.BlockSpec((D, 4 * Hp), lambda b, t: (0, 0), **const_kw),
                pl.BlockSpec((1, 4 * Hp), lambda b, t: (0, 0), **const_kw),
                pl.BlockSpec((Hp, 4 * Hp), lambda b, t: (0, 0), **const_kw),
                pl.BlockSpec((Hp, Op), lambda b, t: (0, 0), **const_kw),
                pl.BlockSpec((1, Op), lambda b, t: (0, 0), **const_kw),
            ],
            out_specs=pl.BlockSpec((Bb, Op), lambda b, t: (b, 0)),
            scratch_shapes=[
                pltpu.VMEM((tt * Bb, 4 * Hp), f32),   # gates_x chunk
                pltpu.VMEM((Bb, Hp), f32),            # h state (across chunks)
                pltpu.VMEM((Bb, Hp), f32),            # c state
            ],
            compiler_params=pltpu.CompilerParams(
                dimension_semantics=("parallel", "arbitrary"),
                vmem_limit_bytes=vmem_limit),
        )

    args = (x_arr, wih_t, bias, whh_t, wlin_t, blin)
    try:
        # Constant-index weight blocks single-buffered (halves their VMEM).
        out_p = jax.block_until_ready(build(True)(*args))
    except Exception:
        # Fallback: default double buffering if Buffered(1) is not supported.
        out_p = build(False)(*args)

    return out_p[:B, :O]


def lstm_reference(x, w_ih, w_hh, b_ih, b_hh, w_lin, b_lin):
    """Pure-JAX f32 reference: nn.LSTM(batch_first=True) + Linear on last step."""
    B, T, D = x.shape
    H = w_hh.shape[1]
    h = jnp.zeros((B, H), jnp.float32)
    c = jnp.zeros((B, H), jnp.float32)

    def step(carry, x_t):
        h, c = carry
        gates = x_t @ w_ih.T + b_ih + h @ w_hh.T + b_hh
        i = jax.nn.sigmoid(gates[:, 0:H])
        f = jax.nn.sigmoid(gates[:, H:2 * H])
        g = jnp.tanh(gates[:, 2 * H:3 * H])
        o = jax.nn.sigmoid(gates[:, 3 * H:4 * H])
        c = f * c + i * g
        h = o * jnp.tanh(c)
        return (h, c), None

    (h, _), _ = jax.lax.scan(step, (h, c), jnp.transpose(x, (1, 0, 2)))
    return h @ w_lin.T + b_lin


if __name__ == "__main__":
    def run_case(key, B, T, D, H, O, tag):
        ks = jax.random.split(key, 7)
        scale = 1.0 / np.sqrt(H)
        x = jax.random.normal(ks[0], (B, T, D), jnp.float32)
        w_ih = jax.random.uniform(ks[1], (4 * H, D), jnp.float32, -scale, scale)
        w_hh = jax.random.uniform(ks[2], (4 * H, H), jnp.float32, -scale, scale)
        b_ih = jax.random.uniform(ks[3], (4 * H,), jnp.float32, -scale, scale)
        b_hh = jax.random.uniform(ks[4], (4 * H,), jnp.float32, -scale, scale)
        w_lin = jax.random.uniform(ks[5], (O, H), jnp.float32, -scale, scale)
        b_lin = jax.random.uniform(ks[6], (O,), jnp.float32, -scale, scale)

        out = jax.block_until_ready(
            lstm_forward(x, w_ih, w_hh, b_ih, b_hh, w_lin, b_lin))
        ref = lstm_reference(x, w_ih, w_hh, b_ih, b_hh, w_lin, b_lin)
        # bf16 MXU inputs (f32 accumulation) vs the pure-f32 reference.
        np.testing.assert_allclose(np.asarray(out), np.asarray(ref),
                                   rtol=3e-2, atol=3e-2, err_msg=tag)

    key = jax.random.PRNGKey(0)
    k1, k2 = jax.random.split(key)
    # Case 1: T % 8 != 0 -> padded + masked timesteps, tt=8, 5 time chunks.
    run_case(k1, B=2, T=35, D=4, H=32, O=8, tag="case1")
    # Case 2: tt=32 chunks, cross-chunk state carry; 2 batch blocks on v7x.
    run_case(k2, B=16, T=64, D=4, H=32, O=8, tag="case2")
    print("KERNEL_OK")
</pallas_src>

<mosaic_0001>
module attributes {stable_mosaic.version = 11 : i64} {
  func.func @_lstm_fused_kernel(%arg0: i32, %arg1: i32, %arg2: memref<1x1x64x4xbf16, #tpu.memory_space<vmem>>, %arg3: memref<4x512xbf16, #tpu.memory_space<vmem>>, %arg4: memref<1x512xf32, #tpu.memory_space<vmem>>, %arg5: memref<128x512xbf16, #tpu.memory_space<vmem>>, %arg6: memref<128x128xbf16, #tpu.memory_space<vmem>>, %arg7: memref<1x128xf32, #tpu.memory_space<vmem>>, %arg8: memref<8x128xf32, #tpu.memory_space<vmem>>, %arg9: memref<64x512xf32, #tpu.memory_space<vmem>>, %arg10: memref<8x128xf32, #tpu.memory_space<vmem>>, %arg11: memref<8x128xf32, #tpu.memory_space<vmem>>) attributes {dimension_semantics = [#tpu.dimension_semantics<parallel>, #tpu.dimension_semantics<arbitrary>], iteration_bounds = array<i64: 1, 5>, scalar_prefetch = 0 : i64, scratch_operands = 3 : i64, tpu.core_type = #tpu.core_type<tc>, window_params = [{transform_indices = @transform_0, window_bounds = array<i64: 1, 1, 64, 4>}, {pipeline_mode = #tpu.pipeline_mode<synchronous>, transform_indices = @transform_1, window_bounds = array<i64: 4, 512>}, {pipeline_mode = #tpu.pipeline_mode<synchronous>, transform_indices = @transform_2, window_bounds = array<i64: 1, 512>}, {pipeline_mode = #tpu.pipeline_mode<synchronous>, transform_indices = @transform_3, window_bounds = array<i64: 128, 512>}, {pipeline_mode = #tpu.pipeline_mode<synchronous>, transform_indices = @transform_4, window_bounds = array<i64: 128, 128>}, {pipeline_mode = #tpu.pipeline_mode<synchronous>, transform_indices = @transform_5, window_bounds = array<i64: 1, 128>}, {transform_indices = @transform_6, window_bounds = array<i64: 8, 128>}]} {
    %c0_i32 = arith.constant 0 : i32
    %0 = arith.cmpi eq, %arg1, %c0_i32 : i32
    %1 = arith.extui %0 : i1 to i32
    %c0_i32_0 = arith.constant 0 : i32
    %2 = arith.cmpi ne, %1, %c0_i32_0 : i32
    scf.if %2 {
      %cst_76 = arith.constant 0.000000e+00 : f32
      %226 = vector.broadcast %cst_76 : f32 to vector<8x128xf32>
      %c0_77 = arith.constant 0 : index
      %c0_78 = arith.constant 0 : index
      %227 = vector.load %arg10[%c0_77, %c0_78] : memref<8x128xf32, #tpu.memory_space<vmem>>, vector<8x128xf32>
      tpu.vector_store %arg10[%c0_77, %c0_78], %226 {strides = array<i32>} : memref<8x128xf32, #tpu.memory_space<vmem>>, vector<8x128xf32>,
      %cst_79 = arith.constant 0.000000e+00 : f32
      %228 = vector.broadcast %cst_79 : f32 to vector<8x128xf32>
      %c0_80 = arith.constant 0 : index
      %c0_81 = arith.constant 0 : index
      %229 = vector.load %arg11[%c0_80, %c0_81] : memref<8x128xf32, #tpu.memory_space<vmem>>, vector<8x128xf32>
      tpu.vector_store %arg11[%c0_80, %c0_81], %228 {strides = array<i32>} : memref<8x128xf32, #tpu.memory_space<vmem>>, vector<8x128xf32>,
    } else {
    }
    %c0 = arith.constant 0 : index
    %c0_1 = arith.constant 0 : index
    %c0_2 = arith.constant 0 : index
    %c0_3 = arith.constant 0 : index
    %3 = vector.load %arg2[%c0, %c0_1, %c0_2, %c0_3] : memref<1x1x64x4xbf16, #tpu.memory_space<vmem>>, vector<1x1x64x4xbf16>
    %4 = vector.shape_cast %3 : vector<1x1x64x4xbf16> to vector<64x4xbf16>
    %c0_4 = arith.constant 0 : index
    %c0_5 = arith.constant 0 : index
    %5 = vector.load %arg3[%c0_4, %c0_5] : memref<4x512xbf16, #tpu.memory_space<vmem>>, vector<4x512xbf16>
    %cst = arith.constant dense<0.000000e+00> : vector<64x512xf32>
    %6 = tpu.matmul %4, %5, %cst {dimension_numbers = #tpu.dot_dimension_numbers<[1], [0], [0], [1], [0, 0, 1, 1], [], []>} : vector<64x4xbf16>, vector<4x512xbf16>, vector<64x512xf32> -> vector<64x512xf32>
    %c0_6 = arith.constant 0 : index
    %c0_7 = arith.constant 0 : index
    %7 = vector.load %arg4[%c0_6, %c0_7] : memref<1x512xf32, #tpu.memory_space<vmem>>, vector<1x512xf32>
    %8 = vector.broadcast %7 : vector<1x512xf32> to vector<64x512xf32>
    %9 = arith.addf %6, %8 : vector<64x512xf32>
    %c0_8 = arith.constant 0 : index
    %c0_9 = arith.constant 0 : index
    %10 = vector.load %arg9[%c0_8, %c0_9] : memref<64x512xf32, #tpu.memory_space<vmem>>, vector<64x512xf32>
    tpu.vector_store %arg9[%c0_8, %c0_9], %9 {strides = array<i32>} : memref<64x512xf32, #tpu.memory_space<vmem>>, vector<64x512xf32>,
    %c0_10 = arith.constant 0 : index
    %c0_11 = arith.constant 0 : index
    %11 = vector.load %arg10[%c0_10, %c0_11] : memref<8x128xf32, #tpu.memory_space<vmem>>, vector<8x128xf32>
    %c0_12 = arith.constant 0 : index
    %c0_13 = arith.constant 0 : index
    %12 = vector.load %arg11[%c0_12, %c0_13] : memref<8x128xf32, #tpu.memory_space<vmem>>, vector<8x128xf32>
    %c0_14 = arith.constant 0 : index
    %c0_15 = arith.constant 0 : index
    %13 = vector.load %arg9[%c0_14, %c0_15] : memref<64x512xf32, #tpu.memory_space<vmem>>, vector<8x512xf32>
    %14 = arith.truncf %11 : vector<8x128xf32> to vector<8x128xbf16>
    %c0_16 = arith.constant 0 : index
    %c0_17 = arith.constant 0 : index
    %15 = vector.load %arg5[%c0_16, %c0_17] : memref<128x512xbf16, #tpu.memory_space<vmem>>, vector<128x512xbf16>
    %cst_18 = arith.constant dense<0.000000e+00> : vector<8x512xf32>
    %16 = tpu.matmul %14, %15, %cst_18 {dimension_numbers = #tpu.dot_dimension_numbers<[1], [0], [0], [1], [0, 0, 1, 1], [], []>} : vector<8x128xbf16>, vector<128x512xbf16>, vector<8x512xf32> -> vector<8x512xf32>
    %17 = arith.addf %13, %16 : vector<8x512xf32>
    %18 = vector.extract_strided_slice %17 {offsets = [0, 0], sizes = [8, 384], strides = [1, 1]} : vector<8x512xf32> to vector<8x384xf32>
    %19 = arith.negf %18 : vector<8x384xf32>
    %20 = math.exp %19 : vector<8x384xf32>
    %cst_19 = arith.constant 1.000000e+00 : f32
    %21 = vector.broadcast %cst_19 : f32 to vector<8x384xf32>
    %22 = arith.addf %21, %20 : vector<8x384xf32>
    %23 = arith.divf %21, %22 : vector<8x384xf32>
    %24 = vector.extract_strided_slice %23 {offsets = [0, 0], sizes = [8, 128], strides = [1, 1]} : vector<8x384xf32> to vector<8x128xf32>
    %25 = vector.extract_strided_slice %23 {offsets = [0, 128], sizes = [8, 128], strides = [1, 1]} : vector<8x384xf32> to vector<8x128xf32>
    %26 = vector.extract_strided_slice %23 {offsets = [0, 256], sizes = [8, 128], strides = [1, 1]} : vector<8x384xf32> to vector<8x128xf32>
    %27 = vector.extract_strided_slice %17 {offsets = [0, 384], sizes = [8, 128], strides = [1, 1]} : vector<8x512xf32> to vector<8x128xf32>
    %28 = math.tanh %27 : vector<8x128xf32>
    %29 = arith.mulf %25, %12 : vector<8x128xf32>
    %30 = arith.mulf %24, %28 : vector<8x128xf32>
    %31 = arith.addf %29, %30 : vector<8x128xf32>
    %32 = math.tanh %31 : vector<8x128xf32>
    %33 = arith.mulf %26, %32 : vector<8x128xf32>
    %c8_i32 = arith.constant 8 : i32
    %34 = arith.muli %arg1, %c8_i32 : i32
    %c0_i32_20 = arith.constant 0 : i32
    %35 = arith.addi %34, %c0_i32_20 : i32
    %c35_i32 = arith.constant 35 : i32
    %36 = arith.cmpi slt, %35, %c35_i32 : i32
    %37 = arith.select %36, %31, %12 : vector<8x128xf32>
    %38 = arith.select %36, %33, %11 : vector<8x128xf32>
    %c8 = arith.constant 8 : index
    %c0_21 = arith.constant 0 : index
    %39 = vector.load %arg9[%c8, %c0_21] : memref<64x512xf32, #tpu.memory_space<vmem>>, vector<8x512xf32>
    %40 = arith.truncf %38 : vector<8x128xf32> to vector<8x128xbf16>
    %c0_22 = arith.constant 0 : index
    %c0_23 = arith.constant 0 : index
    %41 = vector.load %arg5[%c0_22, %c0_23] : memref<128x512xbf16, #tpu.memory_space<vmem>>, vector<128x512xbf16>
    %cst_24 = arith.constant dense<0.000000e+00> : vector<8x512xf32>
    %42 = tpu.matmul %40, %41, %cst_24 {dimension_numbers = #tpu.dot_dimension_numbers<[1], [0], [0], [1], [0, 0, 1, 1], [], []>} : vector<8x128xbf16>, vector<128x512xbf16>, vector<8x512xf32> -> vector<8x512xf32>
    %43 = arith.addf %39, %42 : vector<8x512xf32>
    %44 = vector.extract_strided_slice %43 {offsets = [0, 0], sizes = [8, 384], strides = [1, 1]} : vector<8x512xf32> to vector<8x384xf32>
    %45 = arith.negf %44 : vector<8x384xf32>
    %46 = math.exp %45 : vector<8x384xf32>
    %cst_25 = arith.constant 1.000000e+00 : f32
    %47 = vector.broadcast %cst_25 : f32 to vector<8x384xf32>
    %48 = arith.addf %47, %46 : vector<8x384xf32>
    %49 = arith.divf %47, %48 : vector<8x384xf32>
    %50 = vector.extract_strided_slice %49 {offsets = [0, 0], sizes = [8, 128], strides = [1, 1]} : vector<8x384xf32> to vector<8x128xf32>
    %51 = vector.extract_strided_slice %49 {offsets = [0, 128], sizes = [8, 128], strides = [1, 1]} : vector<8x384xf32> to vector<8x128xf32>
    %52 = vector.extract_strided_slice %49 {offsets = [0, 256], sizes = [8, 128], strides = [1, 1]} : vector<8x384xf32> to vector<8x128xf32>
    %53 = vector.extract_strided_slice %43 {offsets = [0, 384], sizes = [8, 128], strides = [1, 1]} : vector<8x512xf32> to vector<8x128xf32>
    %54 = math.tanh %53 : vector<8x128xf32>
    %55 = arith.mulf %51, %37 : vector<8x128xf32>
    %56 = arith.mulf %50, %54 : vector<8x128xf32>
    %57 = arith.addf %55, %56 : vector<8x128xf32>
    %58 = math.tanh %57 : vector<8x128xf32>
    %59 = arith.mulf %52, %58 : vector<8x128xf32>
    %c8_i32_26 = arith.constant 8 : i32
    %60 = arith.muli %arg1, %c8_i32_26 : i32
    %c1_i32 = arith.constant 1 : i32
    %61 = arith.addi %60, %c1_i32 : i32
    %c35_i32_27 = arith.constant 35 : i32
    %62 = arith.cmpi slt, %61, %c35_i32_27 : i32
    %63 = arith.select %62, %57, %37 : vector<8x128xf32>
    %64 = arith.select %62, %59, %38 : vector<8x128xf32>
    %c16 = arith.constant 16 : index
    %c0_28 = arith.constant 0 : index
    %65 = vector.load %arg9[%c16, %c0_28] : memref<64x512xf32, #tpu.memory_space<vmem>>, vector<8x512xf32>
    %66 = arith.truncf %64 : vector<8x128xf32> to vector<8x128xbf16>
    %c0_29 = arith.constant 0 : index
    %c0_30 = arith.constant 0 : index
    %67 = vector.load %arg5[%c0_29, %c0_30] : memref<128x512xbf16, #tpu.memory_space<vmem>>, vector<128x512xbf16>
    %cst_31 = arith.constant dense<0.000000e+00> : vector<8x512xf32>
    %68 = tpu.matmul %66, %67, %cst_31 {dimension_numbers = #tpu.dot_dimension_numbers<[1], [0], [0], [1], [0, 0, 1, 1], [], []>} : vector<8x128xbf16>, vector<128x512xbf16>, vector<8x512xf32> -> vector<8x512xf32>
    %69 = arith.addf %65, %68 : vector<8x512xf32>
    %70 = vector.extract_strided_slice %69 {offsets = [0, 0], sizes = [8, 384], strides = [1, 1]} : vector<8x512xf32> to vector<8x384xf32>
    %71 = arith.negf %70 : vector<8x384xf32>
    %72 = math.exp %71 : vector<8x384xf32>
    %cst_32 = arith.constant 1.000000e+00 : f32
    %73 = vector.broadcast %cst_32 : f32 to vector<8x384xf32>
    %74 = arith.addf %73, %72 : vector<8x384xf32>
    %75 = arith.divf %73, %74 : vector<8x384xf32>
    %76 = vector.extract_strided_slice %75 {offsets = [0, 0], sizes = [8, 128], strides = [1, 1]} : vector<8x384xf32> to vector<8x128xf32>
    %77 = vector.extract_strided_slice %75 {offsets = [0, 128], sizes = [8, 128], strides = [1, 1]} : vector<8x384xf32> to vector<8x128xf32>
    %78 = vector.extract_strided_slice %75 {offsets = [0, 256], sizes = [8, 128], strides = [1, 1]} : vector<8x384xf32> to vector<8x128xf32>
    %79 = vector.extract_strided_slice %69 {offsets = [0, 384], sizes = [8, 128], strides = [1, 1]} : vector<8x512xf32> to vector<8x128xf32>
    %80 = math.tanh %79 : vector<8x128xf32>
    %81 = arith.mulf %77, %63 : vector<8x128xf32>
    %82 = arith.mulf %76, %80 : vector<8x128xf32>
    %83 = arith.addf %81, %82 : vector<8x128xf32>
    %84 = math.tanh %83 : vector<8x128xf32>
    %85 = arith.mulf %78, %84 : vector<8x128xf32>
    %c8_i32_33 = arith.constant 8 : i32
    %86 = arith.muli %arg1, %c8_i32_33 : i32
    %c2_i32 = arith.constant 2 : i32
    %87 = arith.addi %86, %c2_i32 : i32
    %c35_i32_34 = arith.constant 35 : i32
    %88 = arith.cmpi slt, %87, %c35_i32_34 : i32
    %89 = arith.select %88, %83, %63 : vector<8x128xf32>
    %90 = arith.select %88, %85, %64 : vector<8x128xf32>
    %c24 = arith.constant 24 : index
    %c0_35 = arith.constant 0 : index
    %91 = vector.load %arg9[%c24, %c0_35] : memref<64x512xf32, #tpu.memory_space<vmem>>, vector<8x512xf32>
    %92 = arith.truncf %90 : vector<8x128xf32> to vector<8x128xbf16>
    %c0_36 = arith.constant 0 : index
    %c0_37 = arith.constant 0 : index
    %93 = vector.load %arg5[%c0_36, %c0_37] : memref<128x512xbf16, #tpu.memory_space<vmem>>, vector<128x512xbf16>
    %cst_38 = arith.constant dense<0.000000e+00> : vector<8x512xf32>
    %94 = tpu.matmul %92, %93, %cst_38 {dimension_numbers = #tpu.dot_dimension_numbers<[1], [0], [0], [1], [0, 0, 1, 1], [], []>} : vector<8x128xbf16>, vector<128x512xbf16>, vector<8x512xf32> -> vector<8x512xf32>
    %95 = arith.addf %91, %94 : vector<8x512xf32>
    %96 = vector.extract_strided_slice %95 {offsets = [0, 0], sizes = [8, 384], strides = [1, 1]} : vector<8x512xf32> to vector<8x384xf32>
    %97 = arith.negf %96 : vector<8x384xf32>
    %98 = math.exp %97 : vector<8x384xf32>
    %cst_39 = arith.constant 1.000000e+00 : f32
    %99 = vector.broadcast %cst_39 : f32 to vector<8x384xf32>
    %100 = arith.addf %99, %98 : vector<8x384xf32>
    %101 = arith.divf %99, %100 : vector<8x384xf32>
    %102 = vector.extract_strided_slice %101 {offsets = [0, 0], sizes = [8, 128], strides = [1, 1]} : vector<8x384xf32> to vector<8x128xf32>
    %103 = vector.extract_strided_slice %101 {offsets = [0, 128], sizes = [8, 128], strides = [1, 1]} : vector<8x384xf32> to vector<8x128xf32>
    %104 = vector.extract_strided_slice %101 {offsets = [0, 256], sizes = [8, 128], strides = [1, 1]} : vector<8x384xf32> to vector<8x128xf32>
    %105 = vector.extract_strided_slice %95 {offsets = [0, 384], sizes = [8, 128], strides = [1, 1]} : vector<8x512xf32> to vector<8x128xf32>
    %106 = math.tanh %105 : vector<8x128xf32>
    %107 = arith.mulf %103, %89 : vector<8x128xf32>
    %108 = arith.mulf %102, %106 : vector<8x128xf32>
    %109 = arith.addf %107, %108 : vector<8x128xf32>
    %110 = math.tanh %109 : vector<8x128xf32>
    %111 = arith.mulf %104, %110 : vector<8x128xf32>
    %c8_i32_40 = arith.constant 8 : i32
    %112 = arith.muli %arg1, %c8_i32_40 : i32
    %c3_i32 = arith.constant 3 : i32
    %113 = arith.addi %112, %c3_i32 : i32
    %c35_i32_41 = arith.constant 35 : i32
    %114 = arith.cmpi slt, %113, %c35_i32_41 : i32
    %115 = arith.select %114, %109, %89 : vector<8x128xf32>
    %116 = arith.select %114, %111, %90 : vector<8x128xf32>
    %c32 = arith.constant 32 : index
    %c0_42 = arith.constant 0 : index
    %117 = vector.load %arg9[%c32, %c0_42] : memref<64x512xf32, #tpu.memory_space<vmem>>, vector<8x512xf32>
    %118 = arith.truncf %116 : vector<8x128xf32> to vector<8x128xbf16>
    %c0_43 = arith.constant 0 : index
    %c0_44 = arith.constant 0 : index
    %119 = vector.load %arg5[%c0_43, %c0_44] : memref<128x512xbf16, #tpu.memory_space<vmem>>, vector<128x512xbf16>
    %cst_45 = arith.constant dense<0.000000e+00> : vector<8x512xf32>
    %120 = tpu.matmul %118, %119, %cst_45 {dimension_numbers = #tpu.dot_dimension_numbers<[1], [0], [0], [1], [0, 0, 1, 1], [], []>} : vector<8x128xbf16>, vector<128x512xbf16>, vector<8x512xf32> -> vector<8x512xf32>
    %121 = arith.addf %117, %120 : vector<8x512xf32>
    %122 = vector.extract_strided_slice %121 {offsets = [0, 0], sizes = [8, 384], strides = [1, 1]} : vector<8x512xf32> to vector<8x384xf32>
    %123 = arith.negf %122 : vector<8x384xf32>
    %124 = math.exp %123 : vector<8x384xf32>
    %cst_46 = arith.constant 1.000000e+00 : f32
    %125 = vector.broadcast %cst_46 : f32 to vector<8x384xf32>
    %126 = arith.addf %125, %124 : vector<8x384xf32>
    %127 = arith.divf %125, %126 : vector<8x384xf32>
    %128 = vector.extract_strided_slice %127 {offsets = [0, 0], sizes = [8, 128], strides = [1, 1]} : vector<8x384xf32> to vector<8x128xf32>
    %129 = vector.extract_strided_slice %127 {offsets = [0, 128], sizes = [8, 128], strides = [1, 1]} : vector<8x384xf32> to vector<8x128xf32>
    %130 = vector.extract_strided_slice %127 {offsets = [0, 256], sizes = [8, 128], strides = [1, 1]} : vector<8x384xf32> to vector<8x128xf32>
    %131 = vector.extract_strided_slice %121 {offsets = [0, 384], sizes = [8, 128], strides = [1, 1]} : vector<8x512xf32> to vector<8x128xf32>
    %132 = math.tanh %131 : vector<8x128xf32>
    %133 = arith.mulf %129, %115 : vector<8x128xf32>
    %134 = arith.mulf %128, %132 : vector<8x128xf32>
    %135 = arith.addf %133, %134 : vector<8x128xf32>
    %136 = math.tanh %135 : vector<8x128xf32>
    %137 = arith.mulf %130, %136 : vector<8x128xf32>
    %c8_i32_47 = arith.constant 8 : i32
    %138 = arith.muli %arg1, %c8_i32_47 : i32
    %c4_i32 = arith.constant 4 : i32
    %139 = arith.addi %138, %c4_i32 : i32
    %c35_i32_48 = arith.constant 35 : i32
    %140 = arith.cmpi slt, %139, %c35_i32_48 : i32
    %141 = arith.select %140, %135, %115 : vector<8x128xf32>
    %142 = arith.select %140, %137, %116 : vector<8x128xf32>
    %c40 = arith.constant 40 : index
    %c0_49 = arith.constant 0 : index
    %143 = vector.load %arg9[%c40, %c0_49] : memref<64x512xf32, #tpu.memory_space<vmem>>, vector<8x512xf32>
    %144 = arith.truncf %142 : vector<8x128xf32> to vector<8x128xbf16>
    %c0_50 = arith.constant 0 : index
    %c0_51 = arith.constant 0 : index
    %145 = vector.load %arg5[%c0_50, %c0_51] : memref<128x512xbf16, #tpu.memory_space<vmem>>, vector<128x512xbf16>
    %cst_52 = arith.constant dense<0.000000e+00> : vector<8x512xf32>
    %146 = tpu.matmul %144, %145, %cst_52 {dimension_numbers = #tpu.dot_dimension_numbers<[1], [0], [0], [1], [0, 0, 1, 1], [], []>} : vector<8x128xbf16>, vector<128x512xbf16>, vector<8x512xf32> -> vector<8x512xf32>
    %147 = arith.addf %143, %146 : vector<8x512xf32>
    %148 = vector.extract_strided_slice %147 {offsets = [0, 0], sizes = [8, 384], strides = [1, 1]} : vector<8x512xf32> to vector<8x384xf32>
    %149 = arith.negf %148 : vector<8x384xf32>
    %150 = math.exp %149 : vector<8x384xf32>
    %cst_53 = arith.constant 1.000000e+00 : f32
    %151 = vector.broadcast %cst_53 : f32 to vector<8x384xf32>
    %152 = arith.addf %151, %150 : vector<8x384xf32>
    %153 = arith.divf %151, %152 : vector<8x384xf32>
    %154 = vector.extract_strided_slice %153 {offsets = [0, 0], sizes = [8, 128], strides = [1, 1]} : vector<8x384xf32> to vector<8x128xf32>
    %155 = vector.extract_strided_slice %153 {offsets = [0, 128], sizes = [8, 128], strides = [1, 1]} : vector<8x384xf32> to vector<8x128xf32>
    %156 = vector.extract_strided_slice %153 {offsets = [0, 256], sizes = [8, 128], strides = [1, 1]} : vector<8x384xf32> to vector<8x128xf32>
    %157 = vector.extract_strided_slice %147 {offsets = [0, 384], sizes = [8, 128], strides = [1, 1]} : vector<8x512xf32> to vector<8x128xf32>
    %158 = math.tanh %157 : vector<8x128xf32>
    %159 = arith.mulf %155, %141 : vector<8x128xf32>
    %160 = arith.mulf %154, %158 : vector<8x128xf32>
    %161 = arith.addf %159, %160 : vector<8x128xf32>
    %162 = math.tanh %161 : vector<8x128xf32>
    %163 = arith.mulf %156, %162 : vector<8x128xf32>
    %c8_i32_54 = arith.constant 8 : i32
    %164 = arith.muli %arg1, %c8_i32_54 : i32
    %c5_i32 = arith.constant 5 : i32
    %165 = arith.addi %164, %c5_i32 : i32
    %c35_i32_55 = arith.constant 35 : i32
    %166 = arith.cmpi slt, %165, %c35_i32_55 : i32
    %167 = arith.select %166, %161, %141 : vector<8x128xf32>
    %168 = arith.select %166, %163, %142 : vector<8x128xf32>
    %c48 = arith.constant 48 : index
    %c0_56 = arith.constant 0 : index
    %169 = vector.load %arg9[%c48, %c0_56] : memref<64x512xf32, #tpu.memory_space<vmem>>, vector<8x512xf32>
    %170 = arith.truncf %168 : vector<8x128xf32> to vector<8x128xbf16>
    %c0_57 = arith.constant 0 : index
    %c0_58 = arith.constant 0 : index
    %171 = vector.load %arg5[%c0_57, %c0_58] : memref<128x512xbf16, #tpu.memory_space<vmem>>, vector<128x512xbf16>
    %cst_59 = arith.constant dense<0.000000e+00> : vector<8x512xf32>
    %172 = tpu.matmul %170, %171, %cst_59 {dimension_numbers = #tpu.dot_dimension_numbers<[1], [0], [0], [1], [0, 0, 1, 1], [], []>} : vector<8x128xbf16>, vector<128x512xbf16>, vector<8x512xf32> -> vector<8x512xf32>
    %173 = arith.addf %169, %172 : vector<8x512xf32>
    %174 = vector.extract_strided_slice %173 {offsets = [0, 0], sizes = [8, 384], strides = [1, 1]} : vector<8x512xf32> to vector<8x384xf32>
    %175 = arith.negf %174 : vector<8x384xf32>
    %176 = math.exp %175 : vector<8x384xf32>
    %cst_60 = arith.constant 1.000000e+00 : f32
    %177 = vector.broadcast %cst_60 : f32 to vector<8x384xf32>
    %178 = arith.addf %177, %176 : vector<8x384xf32>
    %179 = arith.divf %177, %178 : vector<8x384xf32>
    %180 = vector.extract_strided_slice %179 {offsets = [0, 0], sizes = [8, 128], strides = [1, 1]} : vector<8x384xf32> to vector<8x128xf32>
    %181 = vector.extract_strided_slice %179 {offsets = [0, 128], sizes = [8, 128], strides = [1, 1]} : vector<8x384xf32> to vector<8x128xf32>
    %182 = vector.extract_strided_slice %179 {offsets = [0, 256], sizes = [8, 128], strides = [1, 1]} : vector<8x384xf32> to vector<8x128xf32>
    %183 = vector.extract_strided_slice %173 {offsets = [0, 384], sizes = [8, 128], strides = [1, 1]} : vector<8x512xf32> to vector<8x128xf32>
    %184 = math.tanh %183 : vector<8x128xf32>
    %185 = arith.mulf %181, %167 : vector<8x128xf32>
    %186 = arith.mulf %180, %184 : vector<8x128xf32>
    %187 = arith.addf %185, %186 : vector<8x128xf32>
    %188 = math.tanh %187 : vector<8x128xf32>
    %189 = arith.mulf %182, %188 : vector<8x128xf32>
    %c8_i32_61 = arith.constant 8 : i32
    %190 = arith.muli %arg1, %c8_i32_61 : i32
    %c6_i32 = arith.constant 6 : i32
    %191 = arith.addi %190, %c6_i32 : i32
    %c35_i32_62 = arith.constant 35 : i32
    %192 = arith.cmpi slt, %191, %c35_i32_62 : i32
    %193 = arith.select %192, %187, %167 : vector<8x128xf32>
    %194 = arith.select %192, %189, %168 : vector<8x128xf32>
    %c56 = arith.constant 56 : index
    %c0_63 = arith.constant 0 : index
    %195 = vector.load %arg9[%c56, %c0_63] : memref<64x512xf32, #tpu.memory_space<vmem>>, vector<8x512xf32>
    %196 = arith.truncf %194 : vector<8x128xf32> to vector<8x128xbf16>
    %c0_64 = arith.constant 0 : index
    %c0_65 = arith.constant 0 : index
    %197 = vector.load %arg5[%c0_64, %c0_65] : memref<128x512xbf16, #tpu.memory_space<vmem>>, vector<128x512xbf16>
    %cst_66 = arith.constant dense<0.000000e+00> : vector<8x512xf32>
    %198 = tpu.matmul %196, %197, %cst_66 {dimension_numbers = #tpu.dot_dimension_numbers<[1], [0], [0], [1], [0, 0, 1, 1], [], []>} : vector<8x128xbf16>, vector<128x512xbf16>, vector<8x512xf32> -> vector<8x512xf32>
    %199 = arith.addf %195, %198 : vector<8x512xf32>
    %200 = vector.extract_strided_slice %199 {offsets = [0, 0], sizes = [8, 384], strides = [1, 1]} : vector<8x512xf32> to vector<8x384xf32>
    %201 = arith.negf %200 : vector<8x384xf32>
    %202 = math.exp %201 : vector<8x384xf32>
    %cst_67 = arith.constant 1.000000e+00 : f32
    %203 = vector.broadcast %cst_67 : f32 to vector<8x384xf32>
    %204 = arith.addf %203, %202 : vector<8x384xf32>
    %205 = arith.divf %203, %204 : vector<8x384xf32>
    %206 = vector.extract_strided_slice %205 {offsets = [0, 0], sizes = [8, 128], strides = [1, 1]} : vector<8x384xf32> to vector<8x128xf32>
    %207 = vector.extract_strided_slice %205 {offsets = [0, 128], sizes = [8, 128], strides = [1, 1]} : vector<8x384xf32> to vector<8x128xf32>
    %208 = vector.extract_strided_slice %205 {offsets = [0, 256], sizes = [8, 128], strides = [1, 1]} : vector<8x384xf32> to vector<8x128xf32>
    %209 = vector.extract_strided_slice %199 {offsets = [0, 384], sizes = [8, 128], strides = [1, 1]} : vector<8x512xf32> to vector<8x128xf32>
    %210 = math.tanh %209 : vector<8x128xf32>
    %211 = arith.mulf %207, %193 : vector<8x128xf32>
    %212 = arith.mulf %206, %210 : vector<8x128xf32>
    %213 = arith.addf %211, %212 : vector<8x128xf32>
    %214 = math.tanh %213 : vector<8x128xf32>
    %215 = arith.mulf %208, %214 : vector<8x128xf32>
    %c8_i32_68 = arith.constant 8 : i32
    %216 = arith.muli %arg1, %c8_i32_68 : i32
    %c7_i32 = arith.constant 7 : i32
    %217 = arith.addi %216, %c7_i32 : i32
    %c35_i32_69 = arith.constant 35 : i32
    %218 = arith.cmpi slt, %217, %c35_i32_69 : i32
    %219 = arith.select %218, %213, %193 : vector<8x128xf32>
    %220 = arith.select %218, %215, %194 : vector<8x128xf32>
    %c0_70 = arith.constant 0 : index
    %c0_71 = arith.constant 0 : index
    %221 = vector.load %arg10[%c0_70, %c0_71] : memref<8x128xf32, #tpu.memory_space<vmem>>, vector<8x128xf32>
    tpu.vector_store %arg10[%c0_70, %c0_71], %220 {strides = array<i32>} : memref<8x128xf32, #tpu.memory_space<vmem>>, vector<8x128xf32>,
    %c0_72 = arith.constant 0 : index
    %c0_73 = arith.constant 0 : index
    %222 = vector.load %arg11[%c0_72, %c0_73] : memref<8x128xf32, #tpu.memory_space<vmem>>, vector<8x128xf32>
    tpu.vector_store %arg11[%c0_72, %c0_73], %219 {strides = array<i32>} : memref<8x128xf32, #tpu.memory_space<vmem>>, vector<8x128xf32>,
    %c4_i32_74 = arith.constant 4 : i32
    %223 = arith.cmpi eq, %arg1, %c4_i32_74 : i32
    %224 = arith.extui %223 : i1 to i32
    %c0_i32_75 = arith.constant 0 : i32
    %225 = arith.cmpi ne, %224, %c0_i32_75 : i32
    scf.if %225 {
      %226 = arith.truncf %220 : vector<8x128xf32> to vector<8x128xbf16>
      %c0_76 = arith.constant 0 : index
      %c0_77 = arith.constant 0 : index
      %227 = vector.load %arg6[%c0_76, %c0_77] : memref<128x128xbf16, #tpu.memory_space<vmem>>, vector<128x128xbf16>
      %cst_78 = arith.constant dense<0.000000e+00> : vector<8x128xf32>
      %228 = tpu.matmul %226, %227, %cst_78 {dimension_numbers = #tpu.dot_dimension_numbers<[1], [0], [0], [1], [0, 0, 1, 1], [], []>} : vector<8x128xbf16>, vector<128x128xbf16>, vector<8x128xf32> -> vector<8x128xf32>
      %c0_79 = arith.constant 0 : index
      %c0_80 = arith.constant 0 : index
      %229 = vector.load %arg7[%c0_79, %c0_80] : memref<1x128xf32, #tpu.memory_space<vmem>>, vector<1x128xf32>
      %230 = vector.broadcast %229 : vector<1x128xf32> to vector<8x128xf32>
      %231 = arith.addf %228, %230 : vector<8x128xf32>
      %c0_81 = arith.constant 0 : index
      %c0_82 = arith.constant 0 : index
      %232 = vector.load %arg8[%c0_81, %c0_82] : memref<8x128xf32, #tpu.memory_space<vmem>>, vector<8x128xf32>
      tpu.vector_store %arg8[%c0_81, %c0_82], %231 {strides = array<i32>} : memref<8x128xf32, #tpu.memory_space<vmem>>, vector<8x128xf32>,
    } else {
    }
    return
  }
  func.func @transform_0(%arg0: i32, %arg1: i32) -> (i32, i32, i32, i32) {
    %c0_i32 = arith.constant 0 : i32
    %c0_i32_0 = arith.constant 0 : i32
    %c0_i32_1 = arith.constant 0 : i32
    return %arg1, %arg0, %c0_i32, %c0_i32_0 : i32, i32, i32, i32
  }
  func.func @transform_1(%arg0: i32, %arg1: i32) -> (i32, i32) {
    %c0_i32 = arith.constant 0 : i32
    %c0_i32_0 = arith.constant 0 : i32
    %c0_i32_1 = arith.constant 0 : i32
    return %c0_i32, %c0_i32_0 : i32, i32
  }
  func.func @transform_2(%arg0: i32, %arg1: i32) -> (i32, i32) {
    %c0_i32 = arith.constant 0 : i32
    %c0_i32_0 = arith.constant 0 : i32
    %c0_i32_1 = arith.constant 0 : i32
    return %c0_i32, %c0_i32_0 : i32, i32
  }
  func.func @transform_3(%arg0: i32, %arg1: i32) -> (i32, i32) {
    %c0_i32 = arith.constant 0 : i32
    %c0_i32_0 = arith.constant 0 : i32
    %c0_i32_1 = arith.constant 0 : i32
    return %c0_i32, %c0_i32_0 : i32, i32
  }
  func.func @transform_4(%arg0: i32, %arg1: i32) -> (i32, i32) {
    %c0_i32 = arith.constant 0 : i32
    %c0_i32_0 = arith.constant 0 : i32
    %c0_i32_1 = arith.constant 0 : i32
    return %c0_i32, %c0_i32_0 : i32, i32
  }
  func.func @transform_5(%arg0: i32, %arg1: i32) -> (i32, i32) {
    %c0_i32 = arith.constant 0 : i32
    %c0_i32_0 = arith.constant 0 : i32
    %c0_i32_1 = arith.constant 0 : i32
    return %c0_i32, %c0_i32_0 : i32, i32
  }
  func.func @transform_6(%arg0: i32, %arg1: i32) -> (i32, i32) {
    %c0_i32 = arith.constant 0 : i32
    %c0_i32_0 = arith.constant 0 : i32
    return %arg0, %c0_i32 : i32, i32
  }
}

module attributes {stable_mosaic.version = 11 : i64} {
  func.func @_lstm_fused_kernel(%arg0: i32, %arg1: i32, %arg2: memref<1x1x64x4xbf16, #tpu.memory_space<vmem>>, %arg3: memref<4x512xbf16, #tpu.memory_space<vmem>>, %arg4: memref<1x512xf32, #tpu.memory_space<vmem>>, %arg5: memref<128x512xbf16, #tpu.memory_space<vmem>>, %arg6: memref<128x128xbf16, #tpu.memory_space<vmem>>, %arg7: memref<1x128xf32, #tpu.memory_space<vmem>>, %arg8: memref<8x128xf32, #tpu.memory_space<vmem>>, %arg9: memref<64x512xf32, #tpu.memory_space<vmem>>, %arg10: memref<8x128xf32, #tpu.memory_space<vmem>>, %arg11: memref<8x128xf32, #tpu.memory_space<vmem>>) attributes {dimension_semantics = [#tpu.dimension_semantics<parallel>, #tpu.dimension_semantics<arbitrary>], iteration_bounds = array<i64: 1, 5>, scalar_prefetch = 0 : i64, scratch_operands = 3 : i64, tpu.core_type = #tpu.core_type<tc>, window_params = [{transform_indices = @transform_0, window_bounds = array<i64: 1, 1, 64, 4>}, {pipeline_mode = #tpu.pipeline_mode<synchronous>, transform_indices = @transform_1, window_bounds = array<i64: 4, 512>}, {pipeline_mode = #tpu.pipeline_mode<synchronous>, transform_indices = @transform_2, window_bounds = array<i64: 1, 512>}, {pipeline_mode = #tpu.pipeline_mode<synchronous>, transform_indices = @transform_3, window_bounds = array<i64: 128, 512>}, {pipeline_mode = #tpu.pipeline_mode<synchronous>, transform_indices = @transform_4, window_bounds = array<i64: 128, 128>}, {pipeline_mode = #tpu.pipeline_mode<synchronous>, transform_indices = @transform_5, window_bounds = array<i64: 1, 128>}, {transform_indices = @transform_6, window_bounds = array<i64: 8, 128>}]} {
    %c0_i32 = arith.constant 0 : i32
    %0 = arith.cmpi eq, %arg1, %c0_i32 : i32
    %1 = arith.extui %0 : i1 to i32
    %c0_i32_0 = arith.constant 0 : i32
    %2 = arith.cmpi ne, %1, %c0_i32_0 : i32
    scf.if %2 {
      %cst_76 = arith.constant 0.000000e+00 : f32
      %226 = vector.broadcast %cst_76 : f32 to vector<8x128xf32>
      %c0_77 = arith.constant 0 : index
      %c0_78 = arith.constant 0 : index
      %227 = vector.load %arg10[%c0_77, %c0_78] : memref<8x128xf32, #tpu.memory_space<vmem>>, vector<8x128xf32>
      tpu.vector_store %arg10[%c0_77, %c0_78], %226 {strides = array<i32>} : memref<8x128xf32, #tpu.memory_space<vmem>>, vector<8x128xf32>,
      %cst_79 = arith.constant 0.000000e+00 : f32
      %228 = vector.broadcast %cst_79 : f32 to vector<8x128xf32>
      %c0_80 = arith.constant 0 : index
      %c0_81 = arith.constant 0 : index
      %229 = vector.load %arg11[%c0_80, %c0_81] : memref<8x128xf32, #tpu.memory_space<vmem>>, vector<8x128xf32>
      tpu.vector_store %arg11[%c0_80, %c0_81], %228 {strides = array<i32>} : memref<8x128xf32, #tpu.memory_space<vmem>>, vector<8x128xf32>,
    } else {
    }
    %c0 = arith.constant 0 : index
    %c0_1 = arith.constant 0 : index
    %c0_2 = arith.constant 0 : index
    %c0_3 = arith.constant 0 : index
    %3 = vector.load %arg2[%c0, %c0_1, %c0_2, %c0_3] : memref<1x1x64x4xbf16, #tpu.memory_space<vmem>>, vector<1x1x64x4xbf16>
    %4 = vector.shape_cast %3 : vector<1x1x64x4xbf16> to vector<64x4xbf16>
    %c0_4 = arith.constant 0 : index
    %c0_5 = arith.constant 0 : index
    %5 = vector.load %arg3[%c0_4, %c0_5] : memref<4x512xbf16, #tpu.memory_space<vmem>>, vector<4x512xbf16>
    %cst = arith.constant dense<0.000000e+00> : vector<64x512xf32>
    %6 = tpu.matmul %4, %5, %cst {dimension_numbers = #tpu.dot_dimension_numbers<[1], [0], [0], [1], [0, 0, 1, 1], [], []>} : vector<64x4xbf16>, vector<4x512xbf16>, vector<64x512xf32> -> vector<64x512xf32>
    %c0_6 = arith.constant 0 : index
    %c0_7 = arith.constant 0 : index
    %7 = vector.load %arg4[%c0_6, %c0_7] : memref<1x512xf32, #tpu.memory_space<vmem>>, vector<1x512xf32>
    %8 = vector.broadcast %7 : vector<1x512xf32> to vector<64x512xf32>
    %9 = arith.addf %6, %8 : vector<64x512xf32>
    %c0_8 = arith.constant 0 : index
    %c0_9 = arith.constant 0 : index
    %10 = vector.load %arg9[%c0_8, %c0_9] : memref<64x512xf32, #tpu.memory_space<vmem>>, vector<64x512xf32>
    tpu.vector_store %arg9[%c0_8, %c0_9], %9 {strides = array<i32>} : memref<64x512xf32, #tpu.memory_space<vmem>>, vector<64x512xf32>,
    %c0_10 = arith.constant 0 : index
    %c0_11 = arith.constant 0 : index
    %11 = vector.load %arg10[%c0_10, %c0_11] : memref<8x128xf32, #tpu.memory_space<vmem>>, vector<8x128xf32>
    %c0_12 = arith.constant 0 : index
    %c0_13 = arith.constant 0 : index
    %12 = vector.load %arg11[%c0_12, %c0_13] : memref<8x128xf32, #tpu.memory_space<vmem>>, vector<8x128xf32>
    %c0_14 = arith.constant 0 : index
    %c0_15 = arith.constant 0 : index
    %13 = vector.load %arg9[%c0_14, %c0_15] : memref<64x512xf32, #tpu.memory_space<vmem>>, vector<8x512xf32>
    %14 = arith.truncf %11 : vector<8x128xf32> to vector<8x128xbf16>
    %c0_16 = arith.constant 0 : index
    %c0_17 = arith.constant 0 : index
    %15 = vector.load %arg5[%c0_16, %c0_17] : memref<128x512xbf16, #tpu.memory_space<vmem>>, vector<128x512xbf16>
    %cst_18 = arith.constant dense<0.000000e+00> : vector<8x512xf32>
    %16 = tpu.matmul %14, %15, %cst_18 {dimension_numbers = #tpu.dot_dimension_numbers<[1], [0], [0], [1], [0, 0, 1, 1], [], []>} : vector<8x128xbf16>, vector<128x512xbf16>, vector<8x512xf32> -> vector<8x512xf32>
    %17 = arith.addf %13, %16 : vector<8x512xf32>
    %18 = vector.extract_strided_slice %17 {offsets = [0, 0], sizes = [8, 384], strides = [1, 1]} : vector<8x512xf32> to vector<8x384xf32>
    %19 = arith.negf %18 : vector<8x384xf32>
    %20 = math.exp %19 : vector<8x384xf32>
    %cst_19 = arith.constant 1.000000e+00 : f32
    %21 = vector.broadcast %cst_19 : f32 to vector<8x384xf32>
    %22 = arith.addf %21, %20 : vector<8x384xf32>
    %23 = arith.divf %21, %22 : vector<8x384xf32>
    %24 = vector.extract_strided_slice %23 {offsets = [0, 0], sizes = [8, 128], strides = [1, 1]} : vector<8x384xf32> to vector<8x128xf32>
    %25 = vector.extract_strided_slice %23 {offsets = [0, 128], sizes = [8, 128], strides = [1, 1]} : vector<8x384xf32> to vector<8x128xf32>
    %26 = vector.extract_strided_slice %23 {offsets = [0, 256], sizes = [8, 128], strides = [1, 1]} : vector<8x384xf32> to vector<8x128xf32>
    %27 = vector.extract_strided_slice %17 {offsets = [0, 384], sizes = [8, 128], strides = [1, 1]} : vector<8x512xf32> to vector<8x128xf32>
    %28 = math.tanh %27 : vector<8x128xf32>
    %29 = arith.mulf %25, %12 : vector<8x128xf32>
    %30 = arith.mulf %24, %28 : vector<8x128xf32>
    %31 = arith.addf %29, %30 : vector<8x128xf32>
    %32 = math.tanh %31 : vector<8x128xf32>
    %33 = arith.mulf %26, %32 : vector<8x128xf32>
    %c8_i32 = arith.constant 8 : i32
    %34 = arith.muli %arg1, %c8_i32 : i32
    %c0_i32_20 = arith.constant 0 : i32
    %35 = arith.addi %34, %c0_i32_20 : i32
    %c35_i32 = arith.constant 35 : i32
    %36 = arith.cmpi slt, %35, %c35_i32 : i32
    %37 = arith.select %36, %31, %12 : vector<8x128xf32>
    %38 = arith.select %36, %33, %11 : vector<8x128xf32>
    %c8 = arith.constant 8 : index
    %c0_21 = arith.constant 0 : index
    %39 = vector.load %arg9[%c8, %c0_21] : memref<64x512xf32, #tpu.memory_space<vmem>>, vector<8x512xf32>
    %40 = arith.truncf %38 : vector<8x128xf32> to vector<8x128xbf16>
    %c0_22 = arith.constant 0 : index
    %c0_23 = arith.constant 0 : index
    %41 = vector.load %arg5[%c0_22, %c0_23] : memref<128x512xbf16, #tpu.memory_space<vmem>>, vector<128x512xbf16>
    %cst_24 = arith.constant dense<0.000000e+00> : vector<8x512xf32>
    %42 = tpu.matmul %40, %41, %cst_24 {dimension_numbers = #tpu.dot_dimension_numbers<[1], [0], [0], [1], [0, 0, 1, 1], [], []>} : vector<8x128xbf16>, vector<128x512xbf16>, vector<8x512xf32> -> vector<8x512xf32>
    %43 = arith.addf %39, %42 : vector<8x512xf32>
    %44 = vector.extract_strided_slice %43 {offsets = [0, 0], sizes = [8, 384], strides = [1, 1]} : vector<8x512xf32> to vector<8x384xf32>
    %45 = arith.negf %44 : vector<8x384xf32>
    %46 = math.exp %45 : vector<8x384xf32>
    %cst_25 = arith.constant 1.000000e+00 : f32
    %47 = vector.broadcast %cst_25 : f32 to vector<8x384xf32>
    %48 = arith.addf %47, %46 : vector<8x384xf32>
    %49 = arith.divf %47, %48 : vector<8x384xf32>
    %50 = vector.extract_strided_slice %49 {offsets = [0, 0], sizes = [8, 128], strides = [1, 1]} : vector<8x384xf32> to vector<8x128xf32>
    %51 = vector.extract_strided_slice %49 {offsets = [0, 128], sizes = [8, 128], strides = [1, 1]} : vector<8x384xf32> to vector<8x128xf32>
    %52 = vector.extract_strided_slice %49 {offsets = [0, 256], sizes = [8, 128], strides = [1, 1]} : vector<8x384xf32> to vector<8x128xf32>
    %53 = vector.extract_strided_slice %43 {offsets = [0, 384], sizes = [8, 128], strides = [1, 1]} : vector<8x512xf32> to vector<8x128xf32>
    %54 = math.tanh %53 : vector<8x128xf32>
    %55 = arith.mulf %51, %37 : vector<8x128xf32>
    %56 = arith.mulf %50, %54 : vector<8x128xf32>
    %57 = arith.addf %55, %56 : vector<8x128xf32>
    %58 = math.tanh %57 : vector<8x128xf32>
    %59 = arith.mulf %52, %58 : vector<8x128xf32>
    %c8_i32_26 = arith.constant 8 : i32
    %60 = arith.muli %arg1, %c8_i32_26 : i32
    %c1_i32 = arith.constant 1 : i32
    %61 = arith.addi %60, %c1_i32 : i32
    %c35_i32_27 = arith.constant 35 : i32
    %62 = arith.cmpi slt, %61, %c35_i32_27 : i32
    %63 = arith.select %62, %57, %37 : vector<8x128xf32>
    %64 = arith.select %62, %59, %38 : vector<8x128xf32>
    %c16 = arith.constant 16 : index
    %c0_28 = arith.constant 0 : index
    %65 = vector.load %arg9[%c16, %c0_28] : memref<64x512xf32, #tpu.memory_space<vmem>>, vector<8x512xf32>
    %66 = arith.truncf %64 : vector<8x128xf32> to vector<8x128xbf16>
    %c0_29 = arith.constant 0 : index
    %c0_30 = arith.constant 0 : index
    %67 = vector.load %arg5[%c0_29, %c0_30] : memref<128x512xbf16, #tpu.memory_space<vmem>>, vector<128x512xbf16>
    %cst_31 = arith.constant dense<0.000000e+00> : vector<8x512xf32>
    %68 = tpu.matmul %66, %67, %cst_31 {dimension_numbers = #tpu.dot_dimension_numbers<[1], [0], [0], [1], [0, 0, 1, 1], [], []>} : vector<8x128xbf16>, vector<128x512xbf16>, vector<8x512xf32> -> vector<8x512xf32>
    %69 = arith.addf %65, %68 : vector<8x512xf32>
    %70 = vector.extract_strided_slice %69 {offsets = [0, 0], sizes = [8, 384], strides = [1, 1]} : vector<8x512xf32> to vector<8x384xf32>
    %71 = arith.negf %70 : vector<8x384xf32>
    %72 = math.exp %71 : vector<8x384xf32>
    %cst_32 = arith.constant 1.000000e+00 : f32
    %73 = vector.broadcast %cst_32 : f32 to vector<8x384xf32>
    %74 = arith.addf %73, %72 : vector<8x384xf32>
    %75 = arith.divf %73, %74 : vector<8x384xf32>
    %76 = vector.extract_strided_slice %75 {offsets = [0, 0], sizes = [8, 128], strides = [1, 1]} : vector<8x384xf32> to vector<8x128xf32>
    %77 = vector.extract_strided_slice %75 {offsets = [0, 128], sizes = [8, 128], strides = [1, 1]} : vector<8x384xf32> to vector<8x128xf32>
    %78 = vector.extract_strided_slice %75 {offsets = [0, 256], sizes = [8, 128], strides = [1, 1]} : vector<8x384xf32> to vector<8x128xf32>
    %79 = vector.extract_strided_slice %69 {offsets = [0, 384], sizes = [8, 128], strides = [1, 1]} : vector<8x512xf32> to vector<8x128xf32>
    %80 = math.tanh %79 : vector<8x128xf32>
    %81 = arith.mulf %77, %63 : vector<8x128xf32>
    %82 = arith.mulf %76, %80 : vector<8x128xf32>
    %83 = arith.addf %81, %82 : vector<8x128xf32>
    %84 = math.tanh %83 : vector<8x128xf32>
    %85 = arith.mulf %78, %84 : vector<8x128xf32>
    %c8_i32_33 = arith.constant 8 : i32
    %86 = arith.muli %arg1, %c8_i32_33 : i32
    %c2_i32 = arith.constant 2 : i32
    %87 = arith.addi %86, %c2_i32 : i32
    %c35_i32_34 = arith.constant 35 : i32
    %88 = arith.cmpi slt, %87, %c35_i32_34 : i32
    %89 = arith.select %88, %83, %63 : vector<8x128xf32>
    %90 = arith.select %88, %85, %64 : vector<8x128xf32>
    %c24 = arith.constant 24 : index
    %c0_35 = arith.constant 0 : index
    %91 = vector.load %arg9[%c24, %c0_35] : memref<64x512xf32, #tpu.memory_space<vmem>>, vector<8x512xf32>
    %92 = arith.truncf %90 : vector<8x128xf32> to vector<8x128xbf16>
    %c0_36 = arith.constant 0 : index
    %c0_37 = arith.constant 0 : index
    %93 = vector.load %arg5[%c0_36, %c0_37] : memref<128x512xbf16, #tpu.memory_space<vmem>>, vector<128x512xbf16>
    %cst_38 = arith.constant dense<0.000000e+00> : vector<8x512xf32>
    %94 = tpu.matmul %92, %93, %cst_38 {dimension_numbers = #tpu.dot_dimension_numbers<[1], [0], [0], [1], [0, 0, 1, 1], [], []>} : vector<8x128xbf16>, vector<128x512xbf16>, vector<8x512xf32> -> vector<8x512xf32>
    %95 = arith.addf %91, %94 : vector<8x512xf32>
    %96 = vector.extract_strided_slice %95 {offsets = [0, 0], sizes = [8, 384], strides = [1, 1]} : vector<8x512xf32> to vector<8x384xf32>
    %97 = arith.negf %96 : vector<8x384xf32>
    %98 = math.exp %97 : vector<8x384xf32>
    %cst_39 = arith.constant 1.000000e+00 : f32
    %99 = vector.broadcast %cst_39 : f32 to vector<8x384xf32>
    %100 = arith.addf %99, %98 : vector<8x384xf32>
    %101 = arith.divf %99, %100 : vector<8x384xf32>
    %102 = vector.extract_strided_slice %101 {offsets = [0, 0], sizes = [8, 128], strides = [1, 1]} : vector<8x384xf32> to vector<8x128xf32>
    %103 = vector.extract_strided_slice %101 {offsets = [0, 128], sizes = [8, 128], strides = [1, 1]} : vector<8x384xf32> to vector<8x128xf32>
    %104 = vector.extract_strided_slice %101 {offsets = [0, 256], sizes = [8, 128], strides = [1, 1]} : vector<8x384xf32> to vector<8x128xf32>
    %105 = vector.extract_strided_slice %95 {offsets = [0, 384], sizes = [8, 128], strides = [1, 1]} : vector<8x512xf32> to vector<8x128xf32>
    %106 = math.tanh %105 : vector<8x128xf32>
    %107 = arith.mulf %103, %89 : vector<8x128xf32>
    %108 = arith.mulf %102, %106 : vector<8x128xf32>
    %109 = arith.addf %107, %108 : vector<8x128xf32>
    %110 = math.tanh %109 : vector<8x128xf32>
    %111 = arith.mulf %104, %110 : vector<8x128xf32>
    %c8_i32_40 = arith.constant 8 : i32
    %112 = arith.muli %arg1, %c8_i32_40 : i32
    %c3_i32 = arith.constant 3 : i32
    %113 = arith.addi %112, %c3_i32 : i32
    %c35_i32_41 = arith.constant 35 : i32
    %114 = arith.cmpi slt, %113, %c35_i32_41 : i32
    %115 = arith.select %114, %109, %89 : vector<8x128xf32>
    %116 = arith.select %114, %111, %90 : vector<8x128xf32>
    %c32 = arith.constant 32 : index
    %c0_42 = arith.constant 0 : index
    %117 = vector.load %arg9[%c32, %c0_42] : memref<64x512xf32, #tpu.memory_space<vmem>>, vector<8x512xf32>
    %118 = arith.truncf %116 : vector<8x128xf32> to vector<8x128xbf16>
    %c0_43 = arith.constant 0 : index
    %c0_44 = arith.constant 0 : index
    %119 = vector.load %arg5[%c0_43, %c0_44] : memref<128x512xbf16, #tpu.memory_space<vmem>>, vector<128x512xbf16>
    %cst_45 = arith.constant dense<0.000000e+00> : vector<8x512xf32>
    %120 = tpu.matmul %118, %119, %cst_45 {dimension_numbers = #tpu.dot_dimension_numbers<[1], [0], [0], [1], [0, 0, 1, 1], [], []>} : vector<8x128xbf16>, vector<128x512xbf16>, vector<8x512xf32> -> vector<8x512xf32>
    %121 = arith.addf %117, %120 : vector<8x512xf32>
    %122 = vector.extract_strided_slice %121 {offsets = [0, 0], sizes = [8, 384], strides = [1, 1]} : vector<8x512xf32> to vector<8x384xf32>
    %123 = arith.negf %122 : vector<8x384xf32>
    %124 = math.exp %123 : vector<8x384xf32>
    %cst_46 = arith.constant 1.000000e+00 : f32
    %125 = vector.broadcast %cst_46 : f32 to vector<8x384xf32>
    %126 = arith.addf %125, %124 : vector<8x384xf32>
    %127 = arith.divf %125, %126 : vector<8x384xf32>
    %128 = vector.extract_strided_slice %127 {offsets = [0, 0], sizes = [8, 128], strides = [1, 1]} : vector<8x384xf32> to vector<8x128xf32>
    %129 = vector.extract_strided_slice %127 {offsets = [0, 128], sizes = [8, 128], strides = [1, 1]} : vector<8x384xf32> to vector<8x128xf32>
    %130 = vector.extract_strided_slice %127 {offsets = [0, 256], sizes = [8, 128], strides = [1, 1]} : vector<8x384xf32> to vector<8x128xf32>
    %131 = vector.extract_strided_slice %121 {offsets = [0, 384], sizes = [8, 128], strides = [1, 1]} : vector<8x512xf32> to vector<8x128xf32>
    %132 = math.tanh %131 : vector<8x128xf32>
    %133 = arith.mulf %129, %115 : vector<8x128xf32>
    %134 = arith.mulf %128, %132 : vector<8x128xf32>
    %135 = arith.addf %133, %134 : vector<8x128xf32>
    %136 = math.tanh %135 : vector<8x128xf32>
    %137 = arith.mulf %130, %136 : vector<8x128xf32>
    %c8_i32_47 = arith.constant 8 : i32
    %138 = arith.muli %arg1, %c8_i32_47 : i32
    %c4_i32 = arith.constant 4 : i32
    %139 = arith.addi %138, %c4_i32 : i32
    %c35_i32_48 = arith.constant 35 : i32
    %140 = arith.cmpi slt, %139, %c35_i32_48 : i32
    %141 = arith.select %140, %135, %115 : vector<8x128xf32>
    %142 = arith.select %140, %137, %116 : vector<8x128xf32>
    %c40 = arith.constant 40 : index
    %c0_49 = arith.constant 0 : index
    %143 = vector.load %arg9[%c40, %c0_49] : memref<64x512xf32, #tpu.memory_space<vmem>>, vector<8x512xf32>
    %144 = arith.truncf %142 : vector<8x128xf32> to vector<8x128xbf16>
    %c0_50 = arith.constant 0 : index
    %c0_51 = arith.constant 0 : index
    %145 = vector.load %arg5[%c0_50, %c0_51] : memref<128x512xbf16, #tpu.memory_space<vmem>>, vector<128x512xbf16>
    %cst_52 = arith.constant dense<0.000000e+00> : vector<8x512xf32>
    %146 = tpu.matmul %144, %145, %cst_52 {dimension_numbers = #tpu.dot_dimension_numbers<[1], [0], [0], [1], [0, 0, 1, 1], [], []>} : vector<8x128xbf16>, vector<128x512xbf16>, vector<8x512xf32> -> vector<8x512xf32>
    %147 = arith.addf %143, %146 : vector<8x512xf32>
    %148 = vector.extract_strided_slice %147 {offsets = [0, 0], sizes = [8, 384], strides = [1, 1]} : vector<8x512xf32> to vector<8x384xf32>
    %149 = arith.negf %148 : vector<8x384xf32>
    %150 = math.exp %149 : vector<8x384xf32>
    %cst_53 = arith.constant 1.000000e+00 : f32
    %151 = vector.broadcast %cst_53 : f32 to vector<8x384xf32>
    %152 = arith.addf %151, %150 : vector<8x384xf32>
    %153 = arith.divf %151, %152 : vector<8x384xf32>
    %154 = vector.extract_strided_slice %153 {offsets = [0, 0], sizes = [8, 128], strides = [1, 1]} : vector<8x384xf32> to vector<8x128xf32>
    %155 = vector.extract_strided_slice %153 {offsets = [0, 128], sizes = [8, 128], strides = [1, 1]} : vector<8x384xf32> to vector<8x128xf32>
    %156 = vector.extract_strided_slice %153 {offsets = [0, 256], sizes = [8, 128], strides = [1, 1]} : vector<8x384xf32> to vector<8x128xf32>
    %157 = vector.extract_strided_slice %147 {offsets = [0, 384], sizes = [8, 128], strides = [1, 1]} : vector<8x512xf32> to vector<8x128xf32>
    %158 = math.tanh %157 : vector<8x128xf32>
    %159 = arith.mulf %155, %141 : vector<8x128xf32>
    %160 = arith.mulf %154, %158 : vector<8x128xf32>
    %161 = arith.addf %159, %160 : vector<8x128xf32>
    %162 = math.tanh %161 : vector<8x128xf32>
    %163 = arith.mulf %156, %162 : vector<8x128xf32>
    %c8_i32_54 = arith.constant 8 : i32
    %164 = arith.muli %arg1, %c8_i32_54 : i32
    %c5_i32 = arith.constant 5 : i32
    %165 = arith.addi %164, %c5_i32 : i32
    %c35_i32_55 = arith.constant 35 : i32
    %166 = arith.cmpi slt, %165, %c35_i32_55 : i32
    %167 = arith.select %166, %161, %141 : vector<8x128xf32>
    %168 = arith.select %166, %163, %142 : vector<8x128xf32>
    %c48 = arith.constant 48 : index
    %c0_56 = arith.constant 0 : index
    %169 = vector.load %arg9[%c48, %c0_56] : memref<64x512xf32, #tpu.memory_space<vmem>>, vector<8x512xf32>
    %170 = arith.truncf %168 : vector<8x128xf32> to vector<8x128xbf16>
    %c0_57 = arith.constant 0 : index
    %c0_58 = arith.constant 0 : index
    %171 = vector.load %arg5[%c0_57, %c0_58] : memref<128x512xbf16, #tpu.memory_space<vmem>>, vector<128x512xbf16>
    %cst_59 = arith.constant dense<0.000000e+00> : vector<8x512xf32>
    %172 = tpu.matmul %170, %171, %cst_59 {dimension_numbers = #tpu.dot_dimension_numbers<[1], [0], [0], [1], [0, 0, 1, 1], [], []>} : vector<8x128xbf16>, vector<128x512xbf16>, vector<8x512xf32> -> vector<8x512xf32>
    %173 = arith.addf %169, %172 : vector<8x512xf32>
    %174 = vector.extract_strided_slice %173 {offsets = [0, 0], sizes = [8, 384], strides = [1, 1]} : vector<8x512xf32> to vector<8x384xf32>
    %175 = arith.negf %174 : vector<8x384xf32>
    %176 = math.exp %175 : vector<8x384xf32>
    %cst_60 = arith.constant 1.000000e+00 : f32
    %177 = vector.broadcast %cst_60 : f32 to vector<8x384xf32>
    %178 = arith.addf %177, %176 : vector<8x384xf32>
    %179 = arith.divf %177, %178 : vector<8x384xf32>
    %180 = vector.extract_strided_slice %179 {offsets = [0, 0], sizes = [8, 128], strides = [1, 1]} : vector<8x384xf32> to vector<8x128xf32>
    %181 = vector.extract_strided_slice %179 {offsets = [0, 128], sizes = [8, 128], strides = [1, 1]} : vector<8x384xf32> to vector<8x128xf32>
    %182 = vector.extract_strided_slice %179 {offsets = [0, 256], sizes = [8, 128], strides = [1, 1]} : vector<8x384xf32> to vector<8x128xf32>
    %183 = vector.extract_strided_slice %173 {offsets = [0, 384], sizes = [8, 128], strides = [1, 1]} : vector<8x512xf32> to vector<8x128xf32>
    %184 = math.tanh %183 : vector<8x128xf32>
    %185 = arith.mulf %181, %167 : vector<8x128xf32>
    %186 = arith.mulf %180, %184 : vector<8x128xf32>
    %187 = arith.addf %185, %186 : vector<8x128xf32>
    %188 = math.tanh %187 : vector<8x128xf32>
    %189 = arith.mulf %182, %188 : vector<8x128xf32>
    %c8_i32_61 = arith.constant 8 : i32
    %190 = arith.muli %arg1, %c8_i32_61 : i32
    %c6_i32 = arith.constant 6 : i32
    %191 = arith.addi %190, %c6_i32 : i32
    %c35_i32_62 = arith.constant 35 : i32
    %192 = arith.cmpi slt, %191, %c35_i32_62 : i32
    %193 = arith.select %192, %187, %167 : vector<8x128xf32>
    %194 = arith.select %192, %189, %168 : vector<8x128xf32>
    %c56 = arith.constant 56 : index
    %c0_63 = arith.constant 0 : index
    %195 = vector.load %arg9[%c56, %c0_63] : memref<64x512xf32, #tpu.memory_space<vmem>>, vector<8x512xf32>
    %196 = arith.truncf %194 : vector<8x128xf32> to vector<8x128xbf16>
    %c0_64 = arith.constant 0 : index
    %c0_65 = arith.constant 0 : index
    %197 = vector.load %arg5[%c0_64, %c0_65] : memref<128x512xbf16, #tpu.memory_space<vmem>>, vector<128x512xbf16>
    %cst_66 = arith.constant dense<0.000000e+00> : vector<8x512xf32>
    %198 = tpu.matmul %196, %197, %cst_66 {dimension_numbers = #tpu.dot_dimension_numbers<[1], [0], [0], [1], [0, 0, 1, 1], [], []>} : vector<8x128xbf16>, vector<128x512xbf16>, vector<8x512xf32> -> vector<8x512xf32>
    %199 = arith.addf %195, %198 : vector<8x512xf32>
    %200 = vector.extract_strided_slice %199 {offsets = [0, 0], sizes = [8, 384], strides = [1, 1]} : vector<8x512xf32> to vector<8x384xf32>
    %201 = arith.negf %200 : vector<8x384xf32>
    %202 = math.exp %201 : vector<8x384xf32>
    %cst_67 = arith.constant 1.000000e+00 : f32
    %203 = vector.broadcast %cst_67 : f32 to vector<8x384xf32>
    %204 = arith.addf %203, %202 : vector<8x384xf32>
    %205 = arith.divf %203, %204 : vector<8x384xf32>
    %206 = vector.extract_strided_slice %205 {offsets = [0, 0], sizes = [8, 128], strides = [1, 1]} : vector<8x384xf32> to vector<8x128xf32>
    %207 = vector.extract_strided_slice %205 {offsets = [0, 128], sizes = [8, 128], strides = [1, 1]} : vector<8x384xf32> to vector<8x128xf32>
    %208 = vector.extract_strided_slice %205 {offsets = [0, 256], sizes = [8, 128], strides = [1, 1]} : vector<8x384xf32> to vector<8x128xf32>
    %209 = vector.extract_strided_slice %199 {offsets = [0, 384], sizes = [8, 128], strides = [1, 1]} : vector<8x512xf32> to vector<8x128xf32>
    %210 = math.tanh %209 : vector<8x128xf32>
    %211 = arith.mulf %207, %193 : vector<8x128xf32>
    %212 = arith.mulf %206, %210 : vector<8x128xf32>
    %213 = arith.addf %211, %212 : vector<8x128xf32>
    %214 = math.tanh %213 : vector<8x128xf32>
    %215 = arith.mulf %208, %214 : vector<8x128xf32>
    %c8_i32_68 = arith.constant 8 : i32
    %216 = arith.muli %arg1, %c8_i32_68 : i32
    %c7_i32 = arith.constant 7 : i32
    %217 = arith.addi %216, %c7_i32 : i32
    %c35_i32_69 = arith.constant 35 : i32
    %218 = arith.cmpi slt, %217, %c35_i32_69 : i32
    %219 = arith.select %218, %213, %193 : vector<8x128xf32>
    %220 = arith.select %218, %215, %194 : vector<8x128xf32>
    %c0_70 = arith.constant 0 : index
    %c0_71 = arith.constant 0 : index
    %221 = vector.load %arg10[%c0_70, %c0_71] : memref<8x128xf32, #tpu.memory_space<vmem>>, vector<8x128xf32>
    tpu.vector_store %arg10[%c0_70, %c0_71], %220 {strides = array<i32>} : memref<8x128xf32, #tpu.memory_space<vmem>>, vector<8x128xf32>,
    %c0_72 = arith.constant 0 : index
    %c0_73 = arith.constant 0 : index
    %222 = vector.load %arg11[%c0_72, %c0_73] : memref<8x128xf32, #tpu.memory_space<vmem>>, vector<8x128xf32>
    tpu.vector_store %arg11[%c0_72, %c0_73], %219 {strides = array<i32>} : memref<8x128xf32, #tpu.memory_space<vmem>>, vector<8x128xf32>,
    %c4_i32_74 = arith.constant 4 : i32
    %223 = arith.cmpi eq, %arg1, %c4_i32_74 : i32
    %224 = arith.extui %223 : i1 to i32
    %c0_i32_75 = arith.constant 0 : i32
    %225 = arith.cmpi ne, %224, %c0_i32_75 : i32
    scf.if %225 {
      %226 = arith.truncf %220 : vector<8x128xf32> to vector<8x128xbf16>
      %c0_76 = arith.constant 0 : index
      %c0_77 = arith.constant 0 : index
      %227 = vector.load %arg6[%c0_76, %c0_77] : memref<128x128xbf16, #tpu.memory_space<vmem>>, vector<128x128xbf16>
      %cst_78 = arith.constant dense<0.000000e+00> : vector<8x128xf32>
      %228 = tpu.matmul %226, %227, %cst_78 {dimension_numbers = #tpu.dot_dimension_numbers<[1], [0], [0], [1], [0, 0, 1, 1], [], []>} : vector<8x128xbf16>, vector<128x128xbf16>, vector<8x128xf32> -> vector<8x128xf32>
      %c0_79 = arith.constant 0 : index
      %c0_80 = arith.constant 0 : index
      %229 = vector.load %arg7[%c0_79, %c0_80] : memref<1x128xf32, #tpu.memory_space<vmem>>, vector<1x128xf32>
      %230 = vector.broadcast %229 : vector<1x128xf32> to vector<8x128xf32>
      %231 = arith.addf %228, %230 : vector<8x128xf32>
      %c0_81 = arith.constant 0 : index
      %c0_82 = arith.constant 0 : index
      %232 = vector.load %arg8[%c0_81, %c0_82] : memref<8x128xf32, #tpu.memory_space<vmem>>, vector<8x128xf32>
      tpu.vector_store %arg8[%c0_81, %c0_82], %231 {strides = array<i32>} : memref<8x128xf32, #tpu.memory_space<vmem>>, vector<8x128xf32>,
    } else {
    }
    return
  }
  func.func @transform_0(%arg0: i32, %arg1: i32) -> (i32, i32, i32, i32) {
    %c0_i32 = arith.constant 0 : i32
    %c0_i32_0 = arith.constant 0 : i32
    %c0_i32_1 = arith.constant 0 : i32
    return %arg1, %arg0, %c0_i32, %c0_i32_0 : i32, i32, i32, i32
  }
  func.func @transform_1(%arg0: i32, %arg1: i32) -> (i32, i32) {
    %c0_i32 = arith.constant 0 : i32
    %c0_i32_0 = arith.constant 0 : i32
    %c0_i32_1 = arith.constant 0 : i32
    return %c0_i32, %c0_i32_0 : i32, i32
  }
  func.func @transform_2(%arg0: i32, %arg1: i32) -> (i32, i32) {
    %c0_i32 = arith.constant 0 : i32
    %c0_i32_0 = arith.constant 0 : i32
    %c0_i32_1 = arith.constant 0 : i32
    return %c0_i32, %c0_i32_0 : i32, i32
  }
  func.func @transform_3(%arg0: i32, %arg1: i32) -> (i32, i32) {
    %c0_i32 = arith.constant 0 : i32
    %c0_i32_0 = arith.constant 0 : i32
    %c0_i32_1 = arith.constant 0 : i32
    return %c0_i32, %c0_i32_0 : i32, i32
  }
  func.func @transform_4(%arg0: i32, %arg1: i32) -> (i32, i32) {
    %c0_i32 = arith.constant 0 : i32
    %c0_i32_0 = arith.constant 0 : i32
    %c0_i32_1 = arith.constant 0 : i32
    return %c0_i32, %c0_i32_0 : i32, i32
  }
  func.func @transform_5(%arg0: i32, %arg1: i32) -> (i32, i32) {
    %c0_i32 = arith.constant 0 : i32
    %c0_i32_0 = arith.constant 0 : i32
    %c0_i32_1 = arith.constant 0 : i32
    return %c0_i32, %c0_i32_0 : i32, i32
  }
  func.func @transform_6(%arg0: i32, %arg1: i32) -> (i32, i32) {
    %c0_i32 = arith.constant 0 : i32
    %c0_i32_0 = arith.constant 0 : i32
    return %arg0, %c0_i32 : i32, i32
  }
}

</mosaic_0001>

<llo_original>
// kernel: tpu_custom_call.1
$region0: #{tpu_custom_call.1}
  #allocation0 [shape = 'u32[]', space=smem, size = 0x4, offset = 0x4, fixed_abs, tag = 'smem constant byte address 0x4 - core index']
  #allocation1 [shape = 'u32[144,128]{1,0:T(1,128)}', space=vmem, size = 0x12000, scoped, tag = 'internal scratch']
  #allocation2 [shape = 'f32[64,512]{1,0:T(8,128)}', space=vmem, size = 0x20000, scoped, tag = 'scratch operand']
  #allocation3 [shape = 'f32[8,128]{1,0:T(8,128)}', space=vmem, size = 0x1000, scoped, tag = 'scratch operand']
  #allocation4 [shape = 'f32[8,128]{1,0:T(8,128)}', space=vmem, size = 0x1000, scoped, tag = 'scratch operand']
  %s0 = inlined_call_operand.vmem [shape: bf16[5,1,64,4], index: 0, kind: input, shape index: {}]
  %s1 = inlined_call_operand.vmem [shape: bf16[4,512], index: 1, kind: input, shape index: {}]
  %s2 = inlined_call_operand.vmem [shape: f32[1,512], index: 2, kind: input, shape index: {}]
  %s3 = inlined_call_operand.hbm [shape: bf16[128,512], index: 3, kind: input, shape index: {}]
  %s4 = inlined_call_operand.vmem [shape: bf16[128,128], index: 4, kind: input, shape index: {}]
  %s5 = inlined_call_operand.vmem [shape: f32[1,128], index: 5, kind: input, shape index: {}]
  %s6 = inlined_call_operand.hbm [shape: f32[8,128], index: 6, kind: output, shape index: {}]
  %s7 = sld [smem:[#allocation0]]
  $region69: #{tpu_custom_call.1} parent=0
    _
  %s9 = ssub.s32 1, %s7
  %s10 = scalar_select 0, %s9, %s7
  $region1: #{tpu_custom_call.1} parent=0
    #allocation5 [shape = 'u8[131072]{0}', space=vmem, size = 0x20000, scoped, tag = 'input window, operand 3, single buffered']
    #allocation6 [shape = 's32[2]{0}', space=sflag, size = 0x8, scoped, tag = 'scoped memory for tpu_custom_call.1']
    #allocation7 [shape = 's32[2]{0}', space=sflag, size = 0x8, scoped, tag = 'scoped memory for tpu_custom_call.1']
    #allocation8 [shape = 'u8[4096]{0}', space=vmem, size = 0x1000, scoped, tag = 'output window, operand 0, single buffered']
    %11 = vsyncpa [#allocation6], 0
    %12 = vsyncpa [#allocation7], 0
    loop: start=0, step=1, limit=7
    $region2: #{tpu_custom_call.1} parent=1 // loop_pre_header
      _
    $region3: #{tpu_custom_call.1} parent=1 // loop_header
      %s14 = sphi 0, %s18
      %p15 = scmp.ge.s32.totalorder %s14, 7
      %s21 = sphi 0, %s33
      %s22 = sphi 0, %s29
      %s23 = sphi 0, %s21
      %s24 = sphi 0, %s22
      %s25 = sphi 0, %s23
      %s26 = sphi 0, %s24
      %s38 = sphi 0, %s40
      %s41 = sphi 0, %s38
      %s42 = sphi 0, %s41
      %s58 = sphi 0, %s42
      %s62 = sphi 0, %s62
      %s64 = sphi 0, %s62
      %s65 = sphi 0, %s64
      %s79 = sphi 0, %s65
      %s83 = sphi 0, %s83
      %s85 = sphi 0, %s83
      %s86 = sphi 0, %s85
      %s100 = sphi 0, %s86
      %s104 = sphi 0, %s104
      %s106 = sphi 0, %s104
      %s107 = sphi 0, %s106
      %s121 = sphi 0, %s107
      %s125 = sphi 0, %s125
      %s127 = sphi 0, %s125
      %s128 = sphi 0, %s127
      %s142 = sphi 0, %s128
      %s146 = sphi 0, %s146
      %s148 = sphi 0, %s146
      %s149 = sphi 0, %s148
      %s163 = sphi 0, %s149
      %s169 = sphi 0, %s171
      %s172 = sphi 0, %s169
      %s173 = sphi 0, %s172
      %s189 = sphi 0, %s173
    $region4: #{tpu_custom_call.1} parent=1 // loop_header_branch
      %17 = sbr.rel (%p15) target = $region8
    $region5: #{tpu_custom_call.1} parent=1 // loop_body
      %s19 = ssub.s32 %s14, 1
      %s20 = ssub.s32 %s14, 2
      %s27 = sadd.s32 1, %s22
      %p28 = scmp.ge.s32.totalorder %s27, 5
      %s29 = scalar_select %p28, 0, %s27
      %s30 = sadd.s32 1, %s21
      %s31 = scalar_select %p28, %s30, %s21
      %p32 = scmp.ge.s32.totalorder %s31, 1
      %s33 = scalar_select %p32, 0, %s31
      %s34 = ssub.s32 %s22, %s29
      %s35 = ssub.s32 %s21, %s33
      %s36 = sor.u32 %s34, %s35
      %p37 = scmp.eq.s32.totalorder %s36, 0
      %s39 = sadd.s32 %s38, 1
      %s40 = scalar_select %p37, %s38, %s39
      %p43 = pneg %p37
      %p44 = scmp.eq.s32.totalorder %s14, 4
      %p45 = por %p43, %p44
      %p46 = scmp.ne.s32.totalorder %s38, %s41
      %p47 = scmp.eq.s32.totalorder %s14, 0
      %p48 = por %p46, %p47
      %p49 = scmp.ne.s32.totalorder %s38, %s41
      %p50 = scmp.eq.s32.totalorder %s19, 4
      %p51 = por %p49, %p50
      %p52 = scmp.ne.s32.totalorder %s41, %s42
      %p53 = scmp.eq.s32.totalorder %s19, 0
      %p54 = por %p52, %p53
      %p55 = scmp.ne.s32.totalorder %s41, %s42
      %p56 = scmp.eq.s32.totalorder %s20, 4
      %p57 = por %p55, %p56
      %p59 = scmp.ne.s32.totalorder %s42, %s58
      %p60 = scmp.eq.s32.totalorder %s20, 0
      %p61 = por %p59, %p60
      %s63 = sadd.s32 %s62, 1
      %p66 = scmp.eq.s32.totalorder %s14, 4
      %p67 = scmp.ne.s32.totalorder %s62, %s64
      %p68 = scmp.eq.s32.totalorder %s14, 0
      %p69 = por %p67, %p68
      %p70 = scmp.ne.s32.totalorder %s62, %s64
      %p71 = scmp.eq.s32.totalorder %s19, 4
      %p72 = por %p70, %p71
      %p73 = scmp.ne.s32.totalorder %s64, %s65
      %p74 = scmp.eq.s32.totalorder %s19, 0
      %p75 = por %p73, %p74
      %p76 = scmp.ne.s32.totalorder %s64, %s65
      %p77 = scmp.eq.s32.totalorder %s20, 4
      %p78 = por %p76, %p77
      %p80 = scmp.ne.s32.totalorder %s65, %s79
      %p81 = scmp.eq.s32.totalorder %s20, 0
      %p82 = por %p80, %p81
      %s84 = sadd.s32 %s83, 1
      %p87 = scmp.eq.s32.totalorder %s14, 4
      %p88 = scmp.ne.s32.totalorder %s83, %s85
      %p89 = scmp.eq.s32.totalorder %s14, 0
      %p90 = por %p88, %p89
      %p91 = scmp.ne.s32.totalorder %s83, %s85
      %p92 = scmp.eq.s32.totalorder %s19, 4
      %p93 = por %p91, %p92
      %p94 = scmp.ne.s32.totalorder %s85, %s86
      %p95 = scmp.eq.s32.totalorder %s19, 0
      %p96 = por %p94, %p95
      %p97 = scmp.ne.s32.totalorder %s85, %s86
      %p98 = scmp.eq.s32.totalorder %s20, 4
      %p99 = por %p97, %p98
      %p101 = scmp.ne.s32.totalorder %s86, %s100
      %p102 = scmp.eq.s32.totalorder %s20, 0
      %p103 = por %p101, %p102
      %s105 = sadd.s32 %s104, 1
      %p108 = scmp.eq.s32.totalorder %s14, 4
      %p109 = scmp.ne.s32.totalorder %s104, %s106
      %p110 = scmp.eq.s32.totalorder %s14, 0
      %p111 = por %p109, %p110
      %p112 = scmp.ne.s32.totalorder %s104, %s106
      %p113 = scmp.eq.s32.totalorder %s19, 4
      %p114 = por %p112, %p113
      %p115 = scmp.ne.s32.totalorder %s106, %s107
      %p116 = scmp.eq.s32.totalorder %s19, 0
      %p117 = por %p115, %p116
      %p118 = scmp.ne.s32.totalorder %s106, %s107
      %p119 = scmp.eq.s32.totalorder %s20, 4
      %p120 = por %p118, %p119
      %p122 = scmp.ne.s32.totalorder %s107, %s121
      %p123 = scmp.eq.s32.totalorder %s20, 0
      %p124 = por %p122, %p123
      %s126 = sadd.s32 %s125, 1
      %p129 = scmp.eq.s32.totalorder %s14, 4
      %p130 = scmp.ne.s32.totalorder %s125, %s127
      %p131 = scmp.eq.s32.totalorder %s14, 0
      %p132 = por %p130, %p131
      %p133 = scmp.ne.s32.totalorder %s125, %s127
      %p134 = scmp.eq.s32.totalorder %s19, 4
      %p135 = por %p133, %p134
      %p136 = scmp.ne.s32.totalorder %s127, %s128
      %p137 = scmp.eq.s32.totalorder %s19, 0
      %p138 = por %p136, %p137
      %p139 = scmp.ne.s32.totalorder %s127, %s128
      %p140 = scmp.eq.s32.totalorder %s20, 4
      %p141 = por %p139, %p140
      %p143 = scmp.ne.s32.totalorder %s128, %s142
      %p144 = scmp.eq.s32.totalorder %s20, 0
      %p145 = por %p143, %p144
      %s147 = sadd.s32 %s146, 1
      %p150 = scmp.eq.s32.totalorder %s14, 4
      %p151 = scmp.ne.s32.totalorder %s146, %s148
      %p152 = scmp.eq.s32.totalorder %s14, 0
      %p153 = por %p151, %p152
      %p154 = scmp.ne.s32.totalorder %s146, %s148
      %p155 = scmp.eq.s32.totalorder %s19, 4
      %p156 = por %p154, %p155
      %p157 = scmp.ne.s32.totalorder %s148, %s149
      %p158 = scmp.eq.s32.totalorder %s19, 0
      %p159 = por %p157, %p158
      %p160 = scmp.ne.s32.totalorder %s148, %s149
      %p161 = scmp.eq.s32.totalorder %s20, 4
      %p162 = por %p160, %p161
      %p164 = scmp.ne.s32.totalorder %s149, %s163
      %p165 = scmp.eq.s32.totalorder %s20, 0
      %p166 = por %p164, %p165
      %s167 = ssub.s32 %s21, %s33
      %p168 = scmp.eq.s32.totalorder %s167, 0
      %s170 = sadd.s32 %s169, 1
      %s171 = scalar_select %p168, %s169, %s170
      %p174 = pneg %p168
      %p175 = scmp.eq.s32.totalorder %s14, 4
      %p176 = por %p174, %p175
      %p177 = scmp.ne.s32.totalorder %s169, %s172
      %p178 = scmp.eq.s32.totalorder %s14, 0
      %p179 = por %p177, %p178
      %p180 = scmp.ne.s32.totalorder %s169, %s172
      %p181 = scmp.eq.s32.totalorder %s19, 4
      %p182 = por %p180, %p181
      %p183 = scmp.ne.s32.totalorder %s172, %s173
      %p184 = scmp.eq.s32.totalorder %s19, 0
      %p185 = por %p183, %p184
      %p186 = scmp.ne.s32.totalorder %s172, %s173
      %p187 = scmp.eq.s32.totalorder %s20, 4
      %p188 = por %p186, %p187
      %p190 = scmp.ne.s32.totalorder %s173, %s189
      %p191 = scmp.eq.s32.totalorder %s20, 0
      %p192 = por %p190, %p191
      %p193 = scmp.le.s32.totalorder 1, %s14
      %p194 = scmp.lt.s32.totalorder %s14, 6
      %p195 = pnand %p193, %p194
      %p196 = pneg %p195
      // Predicated region
      $region9: #{tpu_custom_call.1} parent=5 // pred_check
        _
      $region10: #{tpu_custom_call.1} parent=5 // pred_check_branch
        %198 = sbr.rel (%p195) target = $region12
      $region11: #{tpu_custom_call.1} parent=5 // pred_region
        %s199 = ssub.s32 %s14, 1
        // Predicated region
        $region13: #{tpu_custom_call.1} parent=11 // pred_check
          %p200 = pneg %p75
        $region14: #{tpu_custom_call.1} parent=11 // pred_check_branch
          %202 = sbr.rel (%p200) target = $region16
        $region15: #{tpu_custom_call.1} parent=11 // pred_region
          _
        $region16: #{tpu_custom_call.1} parent=11 // pred_fallthru
          _
        // Predicated region
        $region17: #{tpu_custom_call.1} parent=11 // pred_check
          %p203 = pneg %p96
        $region18: #{tpu_custom_call.1} parent=11 // pred_check_branch
          %205 = sbr.rel (%p203) target = $region20
        $region19: #{tpu_custom_call.1} parent=11 // pred_region
          _
        $region20: #{tpu_custom_call.1} parent=11 // pred_fallthru
          _
        // Predicated region
        $region21: #{tpu_custom_call.1} parent=11 // pred_check
          %p206 = pneg %p117
        $region22: #{tpu_custom_call.1} parent=11 // pred_check_branch
          %208 = sbr.rel (%p206) target = $region24
        $region23: #{tpu_custom_call.1} parent=11 // pred_region
          %s210 = ssub.s32 4096, 4096
          %211 = vsyncadd [#allocation6], %s210
          %s212 = sshll.u32 [#allocation5], 4
          %s213 = int_to_ptr.vmem [resolvable:$true] %s212
          %218 = dma.hbm_to_vmem [thread:$0]  %s3, 4096, %s213, [#allocation6], 256, 256, 16
        $region24: #{tpu_custom_call.1} parent=11 // pred_fallthru
          _
        // Predicated region
        $region25: #{tpu_custom_call.1} parent=11 // pred_check
          %p219 = pneg %p138
        $region26: #{tpu_custom_call.1} parent=11 // pred_check_branch
          %221 = sbr.rel (%p219) target = $region28
        $region27: #{tpu_custom_call.1} parent=11 // pred_region
          _
        $region28: #{tpu_custom_call.1} parent=11 // pred_fallthru
          _
        // Predicated region
        $region29: #{tpu_custom_call.1} parent=11 // pred_check
          %p222 = pneg %p159
        $region30: #{tpu_custom_call.1} parent=11 // pred_check_branch
          %224 = sbr.rel (%p222) target = $region32
        $region31: #{tpu_custom_call.1} parent=11 // pred_region
          _
        $region32: #{tpu_custom_call.1} parent=11 // pred_fallthru
          _
      $region12: #{tpu_custom_call.1} parent=5 // pred_fallthru
        _
      %p225 = scmp.lt.s32.totalorder %s14, 5
      // Predicated region
      $region33: #{tpu_custom_call.1} parent=5 // pred_check
        %p226 = pneg %p225
      $region34: #{tpu_custom_call.1} parent=5 // pred_check_branch
        %228 = sbr.rel (%p226) target = $region36
      $region35: #{tpu_custom_call.1} parent=5 // pred_region
        // Predicated region
        $region37: #{tpu_custom_call.1} parent=35 // pred_check
          %p229 = pneg %p48
        $region38: #{tpu_custom_call.1} parent=35 // pred_check_branch
          %231 = sbr.rel (%p229) target = $region40
        $region39: #{tpu_custom_call.1} parent=35 // pred_region
          %p232 = scmp.lt.s32.totalorder %s22, 4
          %s233 = scalar_select %p232, %s22, 4
          %p234 = scmp.lt.s32.totalorder %s21, 0
          %s235 = scalar_select %p234, %s21, 0
          %s236 = smul.addr %s235, 8
          %s237 = smul.addr %s233, 8
          %s238 = sadd.s32 %s236, %s237
          %s239 = smul.addr %s238, 4
          %s240 = scalar_lea.vmem %s0, %s239
        $region40: #{tpu_custom_call.1} parent=35 // pred_fallthru
          _
      $region36: #{tpu_custom_call.1} parent=5 // pred_fallthru
        _
      %p241 = scmp.le.s32.totalorder 1, %s14
      %p242 = scmp.lt.s32.totalorder %s14, 6
      %p243 = pnand %p241, %p242
      %p244 = pneg %p243
      // Predicated region
      $region41: #{tpu_custom_call.1} parent=5 // pred_check
        _
      $region42: #{tpu_custom_call.1} parent=5 // pred_check_branch
        %246 = sbr.rel (%p243) target = $region44
      $region43: #{tpu_custom_call.1} parent=5 // pred_region
        %s247 = ssub.s32 %s14, 1
        // Predicated region
        $region45: #{tpu_custom_call.1} parent=43 // pred_check
          %p248 = pneg %p117
        $region46: #{tpu_custom_call.1} parent=43 // pred_check_branch
          %250 = sbr.rel (%p248) target = $region48
        $region47: #{tpu_custom_call.1} parent=43 // pred_region
          %251 = dma.done [#allocation6], 4096
        $region48: #{tpu_custom_call.1} parent=43 // pred_fallthru
          _
        %p252 = scmp.lt.s32.totalorder %s24, 4
        %s253 = scalar_select %p252, %s24, 4
        %p254 = scmp.lt.s32.totalorder %s23, 0
        %s255 = scalar_select %p254, %s23, 0
        %s256 = smul.addr %s255, 8
        %s257 = smul.addr %s253, 8
        %s258 = sadd.s32 %s256, %s257
        %s259 = smul.addr %s258, 4
        %s260 = scalar_lea.vmem %s0, %s259
        %p261 = pneg %p54
        %p262 = pneg %p51
        %p263 = pneg %p75
        %p264 = pneg %p72
        %p265 = pneg %p96
        %p266 = pneg %p93
        %p267 = pneg %p117
        %p268 = pneg %p114
        %p269 = pneg %p138
        %p270 = pneg %p135
        %p271 = pneg %p159
        %p272 = pneg %p156
        %p273 = pneg %p185
        %p274 = pneg %p182
        %p275 = scmp.lt.s32.totalorder %s24, 4
        %s276 = scalar_select %p275, %s24, 4
        %p277 = scmp.lt.s32.totalorder %s23, 0
        %s278 = scalar_select %p277, %s23, 0
        %s279 = smul.addr %s278, 8
        %s280 = smul.addr %s276, 8
        %s281 = sadd.s32 %s279, %s280
        %s282 = smul.addr %s281, 4
        %s283 = scalar_lea.vmem %s0, %s282
        %p285 = scmp.eq.s32.totalorder %s24, 0
        // Predicated region
        $region49: #{tpu_custom_call.1} parent=43 // pred_check
          %p286 = pneg %p285
        $region50: #{tpu_custom_call.1} parent=43 // pred_check_branch
          %288 = sbr.rel (%p286) target = $region52
        $region51: #{tpu_custom_call.1} parent=43 // pred_region
          %289 = vst [vmem:[#allocation3] sm:$0xff] 0.0
          %290 = vst [vmem:[#allocation4] sm:$0xff] 0.0
        $region52: #{tpu_custom_call.1} parent=43 // pred_fallthru
          _
        %v291 = vld [vmem:[%s283] sm:$0xf]
        %v292 = vld [vmem:[%s283 + $0x4] sm:$0xf]
        %v293 = vld [vmem:[%s283 + $0x8] sm:$0xf]
        %v294 = vld [vmem:[%s283 + $0xc] sm:$0xf]
        %v295 = vld [vmem:[%s283 + $0x10] sm:$0xf]
        %v296 = vld [vmem:[%s283 + $0x14] sm:$0xf]
        %v297 = vld [vmem:[%s283 + $0x18] sm:$0xf]
        %v298 = vld [vmem:[%s283 + $0x1c] sm:$0xf]
        %v299 = vld [vmem:[%s1] sm:$0xff]
        %v300 = vld [vmem:[%s2] sm:$0xf]
        %v302 = vlaneseq
        %v303 = vshrl.u32 %v302, 7
        %v304 = vsub.s32 0, %v303
        %v305 = vrot.slane %v300, %v304
        %v306 = vlaneseq
        %v307 = vshrl.u32 %v306, 7
        %v308 = vsub.s32 1, %v307
        %v309 = vrot.slane %v300, %v308
        %v310 = vlaneseq
        %v311 = vshrl.u32 %v310, 7
        %v312 = vsub.s32 2, %v311
        %v313 = vrot.slane %v300, %v312
        %v314 = vlaneseq
        %v315 = vshrl.u32 %v314, 7
        %v316 = vsub.s32 3, %v315
        %v317 = vrot.slane %v300, %v316
        %v330 = vunpack.c.l.b16 %v291
        %v331 = vunpack.c.l.b16 %v292
        %v332 = vunpack.c.l.b16 %v293
        %v333 = vunpack.c.l.b16 %v294
        %v334 = vunpack.c.l.b16 %v295
        %v335 = vunpack.c.l.b16 %v296
        %v336 = vunpack.c.l.b16 %v297
        %v337 = vunpack.c.l.b16 %v298
        %v338 = vpack.c.b16 %v331, %v330
        %v339 = vpack.c.b16 %v333, %v332
        %v340 = vpack.c.b16 %v335, %v334
        %v341 = vpack.c.b16 %v337, %v336
        %v343 = vcombine.high %v299, %v299
        %v345 = vunpack.c.l.s4 1983009808
        %v346 = vunpack.c.0.s8 %v345
        %v347 = vlaneseq
        %v348 = vshrl.u32 %v347, 7
        %v349 = vsub.s32 %v346, %v348
        %v350 = vrot.slane %v299, %v349
        %v352 = vunpack.c.l.s4 1983009808
        %v353 = vunpack.c.0.s8 %v352
        %v354 = vlaneseq
        %v355 = vshrl.u32 %v354, 7
        %v356 = vsub.s32 %v353, %v355
        %v357 = vrot.slane %v343, %v356
        %v358 = vcombine.high %v350, %v350
        %v359 = vcombine.high %v357, %v357
        %vm360 = vcmask 31744
        %v362 = vsel %vm360, %v338, 0
        %v365 = vsel %vm360, %v339, 0
        %v368 = vsel %vm360, %v340, 0
        %v371 = vsel %vm360, %v341, 0
        %vm373 = vcmask 1041408
        %v375 = vsel %vm373, %v350, 0
        %v378 = vsel %vm373, %v358, 0
        %v381 = vsel %vm373, %v357, 0
        %v384 = vsel %vm373, %v359, 0
        %386 = vmatprep.subr.bf16.mxu0 %v378
        %387 = vmatpush1.bf16.msra.mxu0 %v375
        %388 = vmatprep.subr.bf16.mxu0 0
        %389 = vmatpush1.bf16.msra.mxu0 0
        %390 = vmatprep.subr.bf16.mxu0 0
        %391 = vmatpush1.bf16.msra.mxu0 0
        %392 = vmatprep.subr.bf16.mxu0 0
        %393 = vmatpush1.bf16.msra.mxu0 0
        %394 = vmatprep.subr.bf16.mxu0 0
        %395 = vmatpush1.bf16.msra.mxu0 0
        %396 = vmatprep.subr.bf16.mxu0 0
        %397 = vmatpush1.bf16.msra.mxu0 0
        %398 = vmatprep.subr.bf16.mxu0 0
        %399 = vmatpush1.bf16.msra.mxu0 0
        %400 = vmatprep.subr.bf16.mxu0 0
        %401 = vmatpush1.bf16.msra.mxu0 0
        %402 = vmatprep.subr.bf16.mxu0 0
        %403 = vmatpush1.bf16.msra.mxu0 0
        %404 = vmatprep.subr.bf16.mxu0 0
        %405 = vmatpush1.bf16.msra.mxu0 0
        %406 = vmatprep.subr.bf16.mxu0 0
        %407 = vmatpush1.bf16.msra.mxu0 0
        %408 = vmatprep.subr.bf16.mxu0 0
        %409 = vmatpush1.bf16.msra.mxu0 0
        %410 = vmatprep.subr.bf16.mxu0 0
        %411 = vmatpush1.bf16.msra.mxu0 0
        %412 = vmatprep.subr.bf16.mxu0 0
        %413 = vmatpush1.bf16.msra.mxu0 0
        %414 = vmatprep.subr.bf16.mxu0 0
        %415 = vmatpush1.bf16.msra.mxu0 0
        %416 = vmatprep.subr.bf16.mxu0 0
        %417 = vmatpush1.bf16.msra.mxu0 0
        %418 = vmatprep.mubr.bf16.mxu0 0
        %419 = vmatmul.mubr.bf16.gmra.mrb[0].mxu0 %v362
        %v420 = vpop.f32.mrb[0].mxu0
        %v421 = vadd.f32 %v305, %v420
        %v422 = vpop.f32.mrb[0].mxu0
        %v423 = vadd.f32 %v309, %v422
        %v424 = vpop.f32.mrb[0].mxu0
        %v425 = vadd.f32 %v305, %v424
        %v426 = vpop.f32.mrb[0].mxu0
        %v427 = vadd.f32 %v309, %v426
        %428 = vmatprep.mubr.bf16.mxu0 0
        %429 = vmatmul.mubr.bf16.gmra.mrb[0].mxu0 %v365
        %v430 = vpop.f32.mrb[0].mxu0
        %v431 = vadd.f32 %v305, %v430
        %v432 = vpop.f32.mrb[0].mxu0
        %v433 = vadd.f32 %v309, %v432
        %v434 = vpop.f32.mrb[0].mxu0
        %v435 = vadd.f32 %v305, %v434
        %v436 = vpop.f32.mrb[0].mxu0
        %v437 = vadd.f32 %v309, %v436
        %438 = vmatprep.mubr.bf16.mxu0 0
        %439 = vmatmul.mubr.bf16.gmra.mrb[0].mxu0 %v368
        %v440 = vpop.f32.mrb[0].mxu0
        %v441 = vadd.f32 %v305, %v440
        %v442 = vpop.f32.mrb[0].mxu0
        %v443 = vadd.f32 %v309, %v442
        %v444 = vpop.f32.mrb[0].mxu0
        %v445 = vadd.f32 %v305, %v444
        %v446 = vpop.f32.mrb[0].mxu0
        %v447 = vadd.f32 %v309, %v446
        %448 = vmatprep.mubr.bf16.mxu0 0
        %449 = vmatmul.mubr.bf16.gmra.mrb[0].mxu0 %v371
        %v450 = vpop.f32.mrb[0].mxu0
        %v451 = vadd.f32 %v305, %v450
        %v452 = vpop.f32.mrb[0].mxu0
        %v453 = vadd.f32 %v309, %v452
        %v454 = vpop.f32.mrb[0].mxu0
        %v455 = vadd.f32 %v305, %v454
        %v456 = vpop.f32.mrb[0].mxu0
        %v457 = vadd.f32 %v309, %v456
        %458 = vdwg.mxu0
        %459 = vmatprep.subr.bf16.mxu0 %v384
        %460 = vmatpush1.bf16.msra.mxu0 %v381
        %461 = vmatprep.subr.bf16.mxu0 0
        %462 = vmatpush1.bf16.msra.mxu0 0
        %463 = vmatprep.subr.bf16.mxu0 0
        %464 = vmatpush1.bf16.msra.mxu0 0
        %465 = vmatprep.subr.bf16.mxu0 0
        %466 = vmatpush1.bf16.msra.mxu0 0
        %467 = vmatprep.subr.bf16.mxu0 0
        %468 = vmatpush1.bf16.msra.mxu0 0
        %469 = vmatprep.subr.bf16.mxu0 0
        %470 = vmatpush1.bf16.msra.mxu0 0
        %471 = vmatprep.subr.bf16.mxu0 0
        %472 = vmatpush1.bf16.msra.mxu0 0
        %473 = vmatprep.subr.bf16.mxu0 0
        %474 = vmatpush1.bf16.msra.mxu0 0
        %475 = vmatprep.subr.bf16.mxu0 0
        %476 = vmatpush1.bf16.msra.mxu0 0
        %477 = vmatprep.subr.bf16.mxu0 0
        %478 = vmatpush1.bf16.msra.mxu0 0
        %479 = vmatprep.subr.bf16.mxu0 0
        %480 = vmatpush1.bf16.msra.mxu0 0
        %481 = vmatprep.subr.bf16.mxu0 0
        %482 = vmatpush1.bf16.msra.mxu0 0
        %483 = vmatprep.subr.bf16.mxu0 0
        %484 = vmatpush1.bf16.msra.mxu0 0
        %485 = vmatprep.subr.bf16.mxu0 0
        %486 = vmatpush1.bf16.msra.mxu0 0
        %487 = vmatprep.subr.bf16.mxu0 0
        %488 = vmatpush1.bf16.msra.mxu0 0
        %489 = vmatprep.subr.bf16.mxu0 0
        %490 = vmatpush1.bf16.msra.mxu0 0
        %491 = vmatprep.mubr.bf16.mxu0 0
        %492 = vmatmul.mubr.bf16.gmra.mrb[0].mxu0 %v362
        %v493 = vpop.f32.mrb[0].mxu0
        %v494 = vadd.f32 %v313, %v493
        %v495 = vpop.f32.mrb[0].mxu0
        %v496 = vadd.f32 %v317, %v495
        %v497 = vpop.f32.mrb[0].mxu0
        %v498 = vadd.f32 %v313, %v497
        %v499 = vpop.f32.mrb[0].mxu0
        %v500 = vadd.f32 %v317, %v499
        %501 = vmatprep.mubr.bf16.mxu0 0
        %502 = vmatmul.mubr.bf16.gmra.mrb[0].mxu0 %v365
        %v503 = vpop.f32.mrb[0].mxu0
        %v504 = vadd.f32 %v313, %v503
        %v505 = vpop.f32.mrb[0].mxu0
        %v506 = vadd.f32 %v317, %v505
        %v507 = vpop.f32.mrb[0].mxu0
        %v508 = vadd.f32 %v313, %v507
        %v509 = vpop.f32.mrb[0].mxu0
        %v510 = vadd.f32 %v317, %v509
        %511 = vmatprep.mubr.bf16.mxu0 0
        %512 = vmatmul.mubr.bf16.gmra.mrb[0].mxu0 %v368
        %v513 = vpop.f32.mrb[0].mxu0
        %v514 = vadd.f32 %v313, %v513
        %v515 = vpop.f32.mrb[0].mxu0
        %v516 = vadd.f32 %v317, %v515
        %v517 = vpop.f32.mrb[0].mxu0
        %v518 = vadd.f32 %v313, %v517
        %v519 = vpop.f32.mrb[0].mxu0
        %v520 = vadd.f32 %v317, %v519
        %521 = vmatprep.mubr.bf16.mxu0 0
        %522 = vmatmul.mubr.bf16.gmra.mrb[0].mxu0 %v371
        %v523 = vpop.f32.mrb[0].mxu0
        %v524 = vadd.f32 %v313, %v523
        %v525 = vpop.f32.mrb[0].mxu0
        %v526 = vadd.f32 %v317, %v525
        %v527 = vpop.f32.mrb[0].mxu0
        %v528 = vadd.f32 %v313, %v527
        %v529 = vpop.f32.mrb[0].mxu0
        %v530 = vadd.f32 %v317, %v529
        %531 = vdwg.mxu0
        %532 = vst [vmem:[#allocation2] sm:$0xff] %v421
        %533 = vst [vmem:[#allocation2 + $0x8] sm:$0xff] %v423
        %534 = vst [vmem:[#allocation2 + $0x10] sm:$0xff] %v494
        %535 = vst [vmem:[#allocation2 + $0x18] sm:$0xff] %v496
        %536 = vst [vmem:[#allocation2 + $0x20] sm:$0xff] %v425
        %537 = vst [vmem:[#allocation2 + $0x28] sm:$0xff] %v427
        %538 = vst [vmem:[#allocation2 + $0x30] sm:$0xff] %v498
        %539 = vst [vmem:[#allocation2 + $0x38] sm:$0xff] %v500
        %540 = vst [vmem:[#allocation2 + $0x40] sm:$0xff] %v431
        %541 = vst [vmem:[#allocation2 + $0x48] sm:$0xff] %v433
        %542 = vst [vmem:[#allocation2 + $0x50] sm:$0xff] %v504
        %543 = vst [vmem:[#allocation2 + $0x58] sm:$0xff] %v506
        %544 = vst [vmem:[#allocation2 + $0x60] sm:$0xff] %v435
        %545 = vst [vmem:[#allocation2 + $0x68] sm:$0xff] %v437
        %546 = vst [vmem:[#allocation2 + $0x70] sm:$0xff] %v508
        %547 = vst [vmem:[#allocation2 + $0x78] sm:$0xff] %v510
        %548 = vst [vmem:[#allocation2 + $0x80] sm:$0xff] %v441
        %549 = vst [vmem:[#allocation2 + $0x88] sm:$0xff] %v443
        %550 = vst [vmem:[#allocation2 + $0x90] sm:$0xff] %v514
        %551 = vst [vmem:[#allocation2 + $0x98] sm:$0xff] %v516
        %552 = vst [vmem:[#allocation2 + $0xa0] sm:$0xff] %v445
        %553 = vst [vmem:[#allocation2 + $0xa8] sm:$0xff] %v447
        %554 = vst [vmem:[#allocation2 + $0xb0] sm:$0xff] %v518
        %555 = vst [vmem:[#allocation2 + $0xb8] sm:$0xff] %v520
        %556 = vst [vmem:[#allocation2 + $0xc0] sm:$0xff] %v451
        %557 = vst [vmem:[#allocation2 + $0xc8] sm:$0xff] %v453
        %558 = vst [vmem:[#allocation2 + $0xd0] sm:$0xff] %v524
        %559 = vst [vmem:[#allocation2 + $0xd8] sm:$0xff] %v526
        %560 = vst [vmem:[#allocation2 + $0xe0] sm:$0xff] %v455
        %561 = vst [vmem:[#allocation2 + $0xe8] sm:$0xff] %v457
        %562 = vst [vmem:[#allocation2 + $0xf0] sm:$0xff] %v528
        %563 = vst [vmem:[#allocation2 + $0xf8] sm:$0xff] %v530
        %v564 = vld [vmem:[#allocation3] sm:$0xff]
        %v565 = vld [vmem:[#allocation4] sm:$0xff]
        %v566 = vld [vmem:[#allocation2] sm:$0xff]
        %v567 = vld [vmem:[#allocation2 + $0x8] sm:$0xff]
        %v568 = vld [vmem:[#allocation2 + $0x10] sm:$0xff]
        %v569 = vld [vmem:[#allocation2 + $0x18] sm:$0xff]
        %v570 = vpack.c.bf16 %v564, %v564
        %v571 = vld [vmem:[#allocation5] sm:$0xff]
        %v572 = vld [vmem:[#allocation5 + $0x8] sm:$0xff]
        %v573 = vld [vmem:[#allocation5 + $0x10] sm:$0xff]
        %v574 = vld [vmem:[#allocation5 + $0x18] sm:$0xff]
        %v575 = vld [vmem:[#allocation5 + $0x20] sm:$0xff]
        %v576 = vld [vmem:[#allocation5 + $0x28] sm:$0xff]
        %v577 = vld [vmem:[#allocation5 + $0x30] sm:$0xff]
        %v578 = vld [vmem:[#allocation5 + $0x38] sm:$0xff]
        %v579 = vld [vmem:[#allocation5 + $0x40] sm:$0xff]
        %v580 = vld [vmem:[#allocation5 + $0x48] sm:$0xff]
        %v581 = vld [vmem:[#allocation5 + $0x50] sm:$0xff]
        %v582 = vld [vmem:[#allocation5 + $0x58] sm:$0xff]
        %v583 = vld [vmem:[#allocation5 + $0x60] sm:$0xff]
        %v584 = vld [vmem:[#allocation5 + $0x68] sm:$0xff]
        %v585 = vld [vmem:[#allocation5 + $0x70] sm:$0xff]
        %v586 = vld [vmem:[#allocation5 + $0x78] sm:$0xff]
        %v587 = vld [vmem:[#allocation5 + $0x80] sm:$0xff]
        %v588 = vld [vmem:[#allocation5 + $0x88] sm:$0xff]
        %v589 = vld [vmem:[#allocation5 + $0x90] sm:$0xff]
        %v590 = vld [vmem:[#allocation5 + $0x98] sm:$0xff]
        %v591 = vld [vmem:[#allocation5 + $0xa0] sm:$0xff]
        %v592 = vld [vmem:[#allocation5 + $0xa8] sm:$0xff]
        %v593 = vld [vmem:[#allocation5 + $0xb0] sm:$0xff]
        %v594 = vld [vmem:[#allocation5 + $0xb8] sm:$0xff]
        %v595 = vld [vmem:[#allocation5 + $0xc0] sm:$0xff]
        %v596 = vld [vmem:[#allocation5 + $0xc8] sm:$0xff]
        %v597 = vld [vmem:[#allocation5 + $0xd0] sm:$0xff]
        %v598 = vld [vmem:[#allocation5 + $0xd8] sm:$0xff]
        %v599 = vld [vmem:[#allocation5 + $0xe0] sm:$0xff]
        %v600 = vld [vmem:[#allocation5 + $0xe8] sm:$0xff]
        %v601 = vld [vmem:[#allocation5 + $0xf0] sm:$0xff]
        %v602 = vld [vmem:[#allocation5 + $0xf8] sm:$0xff]
        %v635 = vunpack.c.l.b16 %v571
        %v636 = vunpack.c.h.b16 %v571
        %v637 = vunpack.c.l.b16 %v572
        %v638 = vunpack.c.h.b16 %v572
        %v639 = vunpack.c.l.b16 %v573
        %v640 = vunpack.c.h.b16 %v573
        %v641 = vunpack.c.l.b16 %v574
        %v642 = vunpack.c.h.b16 %v574
        %v643 = vunpack.c.l.b16 %v575
        %v644 = vunpack.c.h.b16 %v575
        %v645 = vunpack.c.l.b16 %v576
        %v646 = vunpack.c.h.b16 %v576
        %v647 = vunpack.c.l.b16 %v577
        %v648 = vunpack.c.h.b16 %v577
        %v649 = vunpack.c.l.b16 %v578
        %v650 = vunpack.c.h.b16 %v578
        %v651 = vunpack.c.l.b16 %v579
        %v652 = vunpack.c.h.b16 %v579
        %v653 = vunpack.c.l.b16 %v580
        %v654 = vunpack.c.h.b16 %v580
        %v655 = vunpack.c.l.b16 %v581
        %v656 = vunpack.c.h.b16 %v581
        %v657 = vunpack.c.l.b16 %v582
        %v658 = vunpack.c.h.b16 %v582
        %v659 = vunpack.c.l.b16 %v583
        %v660 = vunpack.c.h.b16 %v583
        %v661 = vunpack.c.l.b16 %v584
        %v662 = vunpack.c.h.b16 %v584
        %v663 = vunpack.c.l.b16 %v585
        %v664 = vunpack.c.h.b16 %v585
        %v665 = vunpack.c.l.b16 %v586
        %v666 = vunpack.c.h.b16 %v586
        %v667 = vunpack.c.l.b16 %v587
        %v668 = vunpack.c.h.b16 %v587
        %v669 = vunpack.c.l.b16 %v588
        %v670 = vunpack.c.h.b16 %v588
        %v671 = vunpack.c.l.b16 %v589
        %v672 = vunpack.c.h.b16 %v589
        %v673 = vunpack.c.l.b16 %v590
        %v674 = vunpack.c.h.b16 %v590
        %v675 = vunpack.c.l.b16 %v591
        %v676 = vunpack.c.h.b16 %v591
        %v677 = vunpack.c.l.b16 %v592
        %v678 = vunpack.c.h.b16 %v592
        %v679 = vunpack.c.l.b16 %v593
        %v680 = vunpack.c.h.b16 %v593
        %v681 = vunpack.c.l.b16 %v594
        %v682 = vunpack.c.h.b16 %v594
        %v683 = vunpack.c.l.b16 %v595
        %v684 = vunpack.c.h.b16 %v595
        %v685 = vunpack.c.l.b16 %v596
        %v686 = vunpack.c.h.b16 %v596
        %v687 = vunpack.c.l.b16 %v597
        %v688 = vunpack.c.h.b16 %v597
        %v689 = vunpack.c.l.b16 %v598
        %v690 = vunpack.c.h.b16 %v598
        %v691 = vunpack.c.l.b16 %v599
        %v692 = vunpack.c.h.b16 %v599
        %v693 = vunpack.c.l.b16 %v600
        %v694 = vunpack.c.h.b16 %v600
        %v695 = vunpack.c.l.b16 %v601
        %v696 = vunpack.c.h.b16 %v601
        %v697 = vunpack.c.l.b16 %v602
        %v698 = vunpack.c.h.b16 %v602
        %v699 = vpack.c.b16 %v639, %v635
        %v700 = vpack.c.b16 %v640, %v636
        %v701 = vpack.c.b16 %v641, %v637
        %v702 = vpack.c.b16 %v642, %v638
        %v703 = vpack.c.b16 %v647, %v643
        %v704 = vpack.c.b16 %v648, %v644
        %v705 = vpack.c.b16 %v649, %v645
        %v706 = vpack.c.b16 %v650, %v646
        %v707 = vpack.c.b16 %v655, %v651
        %v708 = vpack.c.b16 %v656, %v652
        %v709 = vpack.c.b16 %v657, %v653
        %v710 = vpack.c.b16 %v658, %v654
        %v711 = vpack.c.b16 %v663, %v659
        %v712 = vpack.c.b16 %v664, %v660
        %v713 = vpack.c.b16 %v665, %v661
        %v714 = vpack.c.b16 %v666, %v662
        %v715 = vpack.c.b16 %v671, %v667
        %v716 = vpack.c.b16 %v672, %v668
        %v717 = vpack.c.b16 %v673, %v669
        %v718 = vpack.c.b16 %v674, %v670
        %v719 = vpack.c.b16 %v679, %v675
        %v720 = vpack.c.b16 %v680, %v676
        %v721 = vpack.c.b16 %v681, %v677
        %v722 = vpack.c.b16 %v682, %v678
        %v723 = vpack.c.b16 %v687, %v683
        %v724 = vpack.c.b16 %v688, %v684
        %v725 = vpack.c.b16 %v689, %v685
        %v726 = vpack.c.b16 %v690, %v686
        %v727 = vpack.c.b16 %v695, %v691
        %v728 = vpack.c.b16 %v696, %v692
        %v729 = vpack.c.b16 %v697, %v693
        %v730 = vpack.c.b16 %v698, %v694
        %763 = vmatprep.subr.bf16.mxu0 %v700
        %764 = vmatpush1.bf16.msra.mxu0 %v699
        %765 = vmatprep.subr.bf16.mxu0 %v704
        %766 = vmatpush1.bf16.msra.mxu0 %v703
        %767 = vmatprep.subr.bf16.mxu0 %v708
        %768 = vmatpush1.bf16.msra.mxu0 %v707
        %769 = vmatprep.subr.bf16.mxu0 %v712
        %770 = vmatpush1.bf16.msra.mxu0 %v711
        %771 = vmatprep.subr.bf16.mxu0 %v716
        %772 = vmatpush1.bf16.msra.mxu0 %v715
        %773 = vmatprep.subr.bf16.mxu0 %v720
        %774 = vmatpush1.bf16.msra.mxu0 %v719
        %775 = vmatprep.subr.bf16.mxu0 %v724
        %776 = vmatpush1.bf16.msra.mxu0 %v723
        %777 = vmatprep.subr.bf16.mxu0 %v728
        %778 = vmatpush1.bf16.msra.mxu0 %v727
        %779 = vmatprep.subr.bf16.mxu0 0
        %780 = vmatpush1.bf16.msra.mxu0 0
        %781 = vmatprep.subr.bf16.mxu0 0
        %782 = vmatpush1.bf16.msra.mxu0 0
        %783 = vmatprep.subr.bf16.mxu0 0
        %784 = vmatpush1.bf16.msra.mxu0 0
        %785 = vmatprep.subr.bf16.mxu0 0
        %786 = vmatpush1.bf16.msra.mxu0 0
        %787 = vmatprep.subr.bf16.mxu0 0
        %788 = vmatpush1.bf16.msra.mxu0 0
        %789 = vmatprep.subr.bf16.mxu0 0
        %790 = vmatpush1.bf16.msra.mxu0 0
        %791 = vmatprep.subr.bf16.mxu0 0
        %792 = vmatpush1.bf16.msra.mxu0 0
        %793 = vmatprep.subr.bf16.mxu0 0
        %794 = vmatpush1.bf16.msra.mxu0 0
        %795 = vmatprep.mubr.bf16.mxu0 0
        %796 = vmatmul.mubr.bf16.gmra.mrb[0].mxu0 %v570
        %v797 = vpop.f32.mrb[0].mxu0
        %v798 = vadd.f32 0.0, %v797
        %v799 = vpop.f32.mrb[0].mxu0
        %v800 = vadd.f32 0.0, %v799
        %v801 = vpop.f32.mrb[0].mxu0
        %v802 = vpop.f32.mrb[0].mxu0
        %803 = vdwg.mxu0
        %804 = vmatprep.subr.bf16.mxu0 %v702
        %805 = vmatpush1.bf16.msra.mxu0 %v701
        %806 = vmatprep.subr.bf16.mxu0 %v706
        %807 = vmatpush1.bf16.msra.mxu0 %v705
        %808 = vmatprep.subr.bf16.mxu0 %v710
        %809 = vmatpush1.bf16.msra.mxu0 %v709
        %810 = vmatprep.subr.bf16.mxu0 %v714
        %811 = vmatpush1.bf16.msra.mxu0 %v713
        %812 = vmatprep.subr.bf16.mxu0 %v718
        %813 = vmatpush1.bf16.msra.mxu0 %v717
        %814 = vmatprep.subr.bf16.mxu0 %v722
        %815 = vmatpush1.bf16.msra.mxu0 %v721
        %816 = vmatprep.subr.bf16.mxu0 %v726
        %817 = vmatpush1.bf16.msra.mxu0 %v725
        %818 = vmatprep.subr.bf16.mxu0 %v730
        %819 = vmatpush1.bf16.msra.mxu0 %v729
        %820 = vmatprep.subr.bf16.mxu0 0
        %821 = vmatpush1.bf16.msra.mxu0 0
        %822 = vmatprep.subr.bf16.mxu0 0
        %823 = vmatpush1.bf16.msra.mxu0 0
        %824 = vmatprep.subr.bf16.mxu0 0
        %825 = vmatpush1.bf16.msra.mxu0 0
        %826 = vmatprep.subr.bf16.mxu0 0
        %827 = vmatpush1.bf16.msra.mxu0 0
        %828 = vmatprep.subr.bf16.mxu0 0
        %829 = vmatpush1.bf16.msra.mxu0 0
        %830 = vmatprep.subr.bf16.mxu0 0
        %831 = vmatpush1.bf16.msra.mxu0 0
        %832 = vmatprep.subr.bf16.mxu0 0
        %833 = vmatpush1.bf16.msra.mxu0 0
        %834 = vmatprep.subr.bf16.mxu0 0
        %835 = vmatpush1.bf16.msra.mxu0 0
        %836 = vmatprep.mubr.bf16.mxu0 0
        %837 = vmatmul.mubr.bf16.gmra.mrb[0].mxu0 %v570
        %v838 = vpop.f32.mrb[0].mxu0
        %v839 = vadd.f32 0.0, %v838
        %v840 = vpop.f32.mrb[0].mxu0
        %v841 = vadd.f32 0.0, %v840
        %v842 = vpop.f32.mrb[0].mxu0
        %v843 = vpop.f32.mrb[0].mxu0
        %844 = vdwg.mxu0
        %v845 = vadd.f32 %v566, %v798
        %v846 = vadd.f32 %v567, %v800
        %v847 = vadd.f32 %v568, %v839
        %v848 = vadd.f32 %v569, %v841
        %v849 = vxor.u32 %v845, 2147483648
        %v850 = vxor.u32 %v846, 2147483648
        %v851 = vxor.u32 %v847, 2147483648
        %v852 = vmul.f32 %v849, 1.442695
        %v853 = vpow.pop %v852
        %v854 = vmul.f32 %v850, 1.442695
        %v855 = vpow.pop %v854
        %v856 = vmul.f32 %v851, 1.442695
        %v857 = vpow.pop %v856
        %v858 = vadd.f32 %v853, 1.0
        %v859 = vadd.f32 %v855, 1.0
        %v860 = vadd.f32 %v857, 1.0
        %v861 = vrcp.pop %v858
        %v862 = vmul.f32 1.0, %v861
        %v863 = vrcp.pop %v859
        %v864 = vmul.f32 1.0, %v863
        %v865 = vrcp.pop %v860
        %v866 = vmul.f32 1.0, %v865
        %v867 = vtanh.pop %v848
        %v868 = vmul.f32 %v864, %v565
        %v869 = vmul.f32 %v862, %v867
        %v870 = vadd.f32 %v868, %v869
        %v871 = vtanh.pop %v870
        %v872 = vmul.f32 %v866, %v871
        %s873 = smul.u32 %s24, 8
        %p874 = scmp.lt.s32.totalorder %s873, 35
        %s875 = scalar_select %p874, 1, 0
        %v876 = vstv %s875
        %vm877 = vcmp.eq.s32.totalorder %v876, 1
        %v878 = vsel %vm877, %v870, %v565
        %v879 = vsel %vm877, %v872, %v564
        %v880 = vld [vmem:[#allocation2 + $0x20] sm:$0xff]
        %v881 = vld [vmem:[#allocation2 + $0x28] sm:$0xff]
        %v882 = vld [vmem:[#allocation2 + $0x30] sm:$0xff]
        %v883 = vld [vmem:[#allocation2 + $0x38] sm:$0xff]
        %v884 = vpack.c.bf16 %v879, %v879
        %885 = vmatprep.subr.bf16.mxu0 %v700
        %886 = vmatpush1.bf16.msra.mxu0 %v699
        %887 = vmatprep.subr.bf16.mxu0 %v704
        %888 = vmatpush1.bf16.msra.mxu0 %v703
        %889 = vmatprep.subr.bf16.mxu0 %v708
        %890 = vmatpush1.bf16.msra.mxu0 %v707
        %891 = vmatprep.subr.bf16.mxu0 %v712
        %892 = vmatpush1.bf16.msra.mxu0 %v711
        %893 = vmatprep.subr.bf16.mxu0 %v716
        %894 = vmatpush1.bf16.msra.mxu0 %v715
        %895 = vmatprep.subr.bf16.mxu0 %v720
        %896 = vmatpush1.bf16.msra.mxu0 %v719
        %897 = vmatprep.subr.bf16.mxu0 %v724
        %898 = vmatpush1.bf16.msra.mxu0 %v723
        %899 = vmatprep.subr.bf16.mxu0 %v728
        %900 = vmatpush1.bf16.msra.mxu0 %v727
        %901 = vmatprep.subr.bf16.mxu0 0
        %902 = vmatpush1.bf16.msra.mxu0 0
        %903 = vmatprep.subr.bf16.mxu0 0
        %904 = vmatpush1.bf16.msra.mxu0 0
        %905 = vmatprep.subr.bf16.mxu0 0
        %906 = vmatpush1.bf16.msra.mxu0 0
        %907 = vmatprep.subr.bf16.mxu0 0
        %908 = vmatpush1.bf16.msra.mxu0 0
        %909 = vmatprep.subr.bf16.mxu0 0
        %910 = vmatpush1.bf16.msra.mxu0 0
        %911 = vmatprep.subr.bf16.mxu0 0
        %912 = vmatpush1.bf16.msra.mxu0 0
        %913 = vmatprep.subr.bf16.mxu0 0
        %914 = vmatpush1.bf16.msra.mxu0 0
        %915 = vmatprep.subr.bf16.mxu0 0
        %916 = vmatpush1.bf16.msra.mxu0 0
        %917 = vmatprep.mubr.bf16.mxu0 0
        %918 = vmatmul.mubr.bf16.gmra.mrb[0].mxu0 %v884
        %v919 = vpop.f32.mrb[0].mxu0
        %v920 = vadd.f32 0.0, %v919
        %v921 = vpop.f32.mrb[0].mxu0
        %v922 = vadd.f32 0.0, %v921
        %v923 = vpop.f32.mrb[0].mxu0
        %v924 = vpop.f32.mrb[0].mxu0
        %925 = vdwg.mxu0
        %926 = vmatprep.subr.bf16.mxu0 %v702
        %927 = vmatpush1.bf16.msra.mxu0 %v701
        %928 = vmatprep.subr.bf16.mxu0 %v706
        %929 = vmatpush1.bf16.msra.mxu0 %v705
        %930 = vmatprep.subr.bf16.mxu0 %v710
        %931 = vmatpush1.bf16.msra.mxu0 %v709
        %932 = vmatprep.subr.bf16.mxu0 %v714
        %933 = vmatpush1.bf16.msra.mxu0 %v713
        %934 = vmatprep.subr.bf16.mxu0 %v718
        %935 = vmatpush1.bf16.msra.mxu0 %v717
        %936 = vmatprep.subr.bf16.mxu0 %v722
        %937 = vmatpush1.bf16.msra.mxu0 %v721
        %938 = vmatprep.subr.bf16.mxu0 %v726
        %939 = vmatpush1.bf16.msra.mxu0 %v725
        %940 = vmatprep.subr.bf16.mxu0 %v730
        %941 = vmatpush1.bf16.msra.mxu0 %v729
        %942 = vmatprep.subr.bf16.mxu0 0
        %943 = vmatpush1.bf16.msra.mxu0 0
        %944 = vmatprep.subr.bf16.mxu0 0
        %945 = vmatpush1.bf16.msra.mxu0 0
        %946 = vmatprep.subr.bf16.mxu0 0
        %947 = vmatpush1.bf16.msra.mxu0 0
        %948 = vmatprep.subr.bf16.mxu0 0
        %949 = vmatpush1.bf16.msra.mxu0 0
        %950 = vmatprep.subr.bf16.mxu0 0
        %951 = vmatpush1.bf16.msra.mxu0 0
        %952 = vmatprep.subr.bf16.mxu0 0
        %953 = vmatpush1.bf16.msra.mxu0 0
        %954 = vmatprep.subr.bf16.mxu0 0
        %955 = vmatpush1.bf16.msra.mxu0 0
        %956 = vmatprep.subr.bf16.mxu0 0
        %957 = vmatpush1.bf16.msra.mxu0 0
        %958 = vmatprep.mubr.bf16.mxu0 0
        %959 = vmatmul.mubr.bf16.gmra.mrb[0].mxu0 %v884
        %v960 = vpop.f32.mrb[0].mxu0
        %v961 = vadd.f32 0.0, %v960
        %v962 = vpop.f32.mrb[0].mxu0
        %v963 = vadd.f32 0.0, %v962
        %v964 = vpop.f32.mrb[0].mxu0
        %v965 = vpop.f32.mrb[0].mxu0
        %966 = vdwg.mxu0
        %v967 = vadd.f32 %v880, %v920
        %v968 = vadd.f32 %v881, %v922
        %v969 = vadd.f32 %v882, %v961
        %v970 = vadd.f32 %v883, %v963
        %v971 = vxor.u32 %v967, 2147483648
        %v972 = vxor.u32 %v968, 2147483648
        %v973 = vxor.u32 %v969, 2147483648
        %v974 = vmul.f32 %v971, 1.442695
        %v975 = vpow.pop %v974
        %v976 = vmul.f32 %v972, 1.442695
        %v977 = vpow.pop %v976
        %v978 = vmul.f32 %v973, 1.442695
        %v979 = vpow.pop %v978
        %v980 = vadd.f32 %v975, 1.0
        %v981 = vadd.f32 %v977, 1.0
        %v982 = vadd.f32 %v979, 1.0
        %v983 = vrcp.pop %v980
        %v984 = vmul.f32 1.0, %v983
        %v985 = vrcp.pop %v981
        %v986 = vmul.f32 1.0, %v985
        %v987 = vrcp.pop %v982
        %v988 = vmul.f32 1.0, %v987
        %v989 = vtanh.pop %v970
        %v990 = vmul.f32 %v986, %v878
        %v991 = vmul.f32 %v984, %v989
        %v992 = vadd.f32 %v990, %v991
        %v993 = vtanh.pop %v992
        %v994 = vmul.f32 %v988, %v993
        %s995 = sadd.s32 %s873, 1
        %p996 = scmp.lt.s32.totalorder %s995, 35
        %s997 = scalar_select %p996, 1, 0
        %v998 = vstv %s997
        %vm999 = vcmp.eq.s32.totalorder %v998, 1
        %v1000 = vsel %vm999, %v992, %v878
        %v1001 = vsel %vm999, %v994, %v879
        %v1002 = vld [vmem:[#allocation2 + $0x40] sm:$0xff]
        %v1003 = vld [vmem:[#allocation2 + $0x48] sm:$0xff]
        %v1004 = vld [vmem:[#allocation2 + $0x50] sm:$0xff]
        %v1005 = vld [vmem:[#allocation2 + $0x58] sm:$0xff]
        %v1006 = vpack.c.bf16 %v1001, %v1001
        %1007 = vmatprep.subr.bf16.mxu0 %v700
        %1008 = vmatpush1.bf16.msra.mxu0 %v699
        %1009 = vmatprep.subr.bf16.mxu0 %v704
        %1010 = vmatpush1.bf16.msra.mxu0 %v703
        %1011 = vmatprep.subr.bf16.mxu0 %v708
        %1012 = vmatpush1.bf16.msra.mxu0 %v707
        %1013 = vmatprep.subr.bf16.mxu0 %v712
        %1014 = vmatpush1.bf16.msra.mxu0 %v711
        %1015 = vmatprep.subr.bf16.mxu0 %v716
        %1016 = vmatpush1.bf16.msra.mxu0 %v715
        %1017 = vmatprep.subr.bf16.mxu0 %v720
        %1018 = vmatpush1.bf16.msra.mxu0 %v719
        %1019 = vmatprep.subr.bf16.mxu0 %v724
        %1020 = vmatpush1.bf16.msra.mxu0 %v723
        %1021 = vmatprep.subr.bf16.mxu0 %v728
        %1022 = vmatpush1.bf16.msra.mxu0 %v727
        %1023 = vmatprep.subr.bf16.mxu0 0
        %1024 = vmatpush1.bf16.msra.mxu0 0
        %1025 = vmatprep.subr.bf16.mxu0 0
        %1026 = vmatpush1.bf16.msra.mxu0 0
        %1027 = vmatprep.subr.bf16.mxu0 0
        %1028 = vmatpush1.bf16.msra.mxu0 0
        %1029 = vmatprep.subr.bf16.mxu0 0
        %1030 = vmatpush1.bf16.msra.mxu0 0
        %1031 = vmatprep.subr.bf16.mxu0 0
        %1032 = vmatpush1.bf16.msra.mxu0 0
        %1033 = vmatprep.subr.bf16.mxu0 0
        %1034 = vmatpush1.bf16.msra.mxu0 0
        %1035 = vmatprep.subr.bf16.mxu0 0
        %1036 = vmatpush1.bf16.msra.mxu0 0
        %1037 = vmatprep.subr.bf16.mxu0 0
        %1038 = vmatpush1.bf16.msra.mxu0 0
        %1039 = vmatprep.mubr.bf16.mxu0 0
        %1040 = vmatmul.mubr.bf16.gmra.mrb[0].mxu0 %v1006
        %v1041 = vpop.f32.mrb[0].mxu0
        %v1042 = vadd.f32 0.0, %v1041
        %v1043 = vpop.f32.mrb[0].mxu0
        %v1044 = vadd.f32 0.0, %v1043
        %v1045 = vpop.f32.mrb[0].mxu0
        %v1046 = vpop.f32.mrb[0].mxu0
        %1047 = vdwg.mxu0
        %1048 = vmatprep.subr.bf16.mxu0 %v702
        %1049 = vmatpush1.bf16.msra.mxu0 %v701
        %1050 = vmatprep.subr.bf16.mxu0 %v706
        %1051 = vmatpush1.bf16.msra.mxu0 %v705
        %1052 = vmatprep.subr.bf16.mxu0 %v710
        %1053 = vmatpush1.bf16.msra.mxu0 %v709
        %1054 = vmatprep.subr.bf16.mxu0 %v714
        %1055 = vmatpush1.bf16.msra.mxu0 %v713
        %1056 = vmatprep.subr.bf16.mxu0 %v718
        %1057 = vmatpush1.bf16.msra.mxu0 %v717
        %1058 = vmatprep.subr.bf16.mxu0 %v722
        %1059 = vmatpush1.bf16.msra.mxu0 %v721
        %1060 = vmatprep.subr.bf16.mxu0 %v726
        %1061 = vmatpush1.bf16.msra.mxu0 %v725
        %1062 = vmatprep.subr.bf16.mxu0 %v730
        %1063 = vmatpush1.bf16.msra.mxu0 %v729
        %1064 = vmatprep.subr.bf16.mxu0 0
        %1065 = vmatpush1.bf16.msra.mxu0 0
        %1066 = vmatprep.subr.bf16.mxu0 0
        %1067 = vmatpush1.bf16.msra.mxu0 0
        %1068 = vmatprep.subr.bf16.mxu0 0
        %1069 = vmatpush1.bf16.msra.mxu0 0
        %1070 = vmatprep.subr.bf16.mxu0 0
        %1071 = vmatpush1.bf16.msra.mxu0 0
        %1072 = vmatprep.subr.bf16.mxu0 0
        %1073 = vmatpush1.bf16.msra.mxu0 0
        %1074 = vmatprep.subr.bf16.mxu0 0
        %1075 = vmatpush1.bf16.msra.mxu0 0
        %1076 = vmatprep.subr.bf16.mxu0 0
        %1077 = vmatpush1.bf16.msra.mxu0 0
        %1078 = vmatprep.subr.bf16.mxu0 0
        %1079 = vmatpush1.bf16.msra.mxu0 0
        %1080 = vmatprep.mubr.bf16.mxu0 0
        %1081 = vmatmul.mubr.bf16.gmra.mrb[0].mxu0 %v1006
        %v1082 = vpop.f32.mrb[0].mxu0
        %v1083 = vadd.f32 0.0, %v1082
        %v1084 = vpop.f32.mrb[0].mxu0
        %v1085 = vadd.f32 0.0, %v1084
        %v1086 = vpop.f32.mrb[0].mxu0
        %v1087 = vpop.f32.mrb[0].mxu0
        %1088 = vdwg.mxu0
        %v1089 = vadd.f32 %v1002, %v1042
        %v1090 = vadd.f32 %v1003, %v1044
        %v1091 = vadd.f32 %v1004, %v1083
        %v1092 = vadd.f32 %v1005, %v1085
        %v1093 = vxor.u32 %v1089, 2147483648
        %v1094 = vxor.u32 %v1090, 2147483648
        %v1095 = vxor.u32 %v1091, 2147483648
        %v1096 = vmul.f32 %v1093, 1.442695
        %v1097 = vpow.pop %v1096
        %v1098 = vmul.f32 %v1094, 1.442695
        %v1099 = vpow.pop %v1098
        %v1100 = vmul.f32 %v1095, 1.442695
        %v1101 = vpow.pop %v1100
        %v1102 = vadd.f32 %v1097, 1.0
        %v1103 = vadd.f32 %v1099, 1.0
        %v1104 = vadd.f32 %v1101, 1.0
        %v1105 = vrcp.pop %v1102
        %v1106 = vmul.f32 1.0, %v1105
        %v1107 = vrcp.pop %v1103
        %v1108 = vmul.f32 1.0, %v1107
        %v1109 = vrcp.pop %v1104
        %v1110 = vmul.f32 1.0, %v1109
        %v1111 = vtanh.pop %v1092
        %v1112 = vmul.f32 %v1108, %v1000
        %v1113 = vmul.f32 %v1106, %v1111
        %v1114 = vadd.f32 %v1112, %v1113
        %v1115 = vtanh.pop %v1114
        %v1116 = vmul.f32 %v1110, %v1115
        %s1117 = sadd.s32 %s873, 2
        %p1118 = scmp.lt.s32.totalorder %s1117, 35
        %s1119 = scalar_select %p1118, 1, 0
        %v1120 = vstv %s1119
        %vm1121 = vcmp.eq.s32.totalorder %v1120, 1
        %v1122 = vsel %vm1121, %v1114, %v1000
        %v1123 = vsel %vm1121, %v1116, %v1001
        %v1124 = vld [vmem:[#allocation2 + $0x60] sm:$0xff]
        %v1125 = vld [vmem:[#allocation2 + $0x68] sm:$0xff]
        %v1126 = vld [vmem:[#allocation2 + $0x70] sm:$0xff]
        %v1127 = vld [vmem:[#allocation2 + $0x78] sm:$0xff]
        %v1128 = vpack.c.bf16 %v1123, %v1123
        %1129 = vmatprep.subr.bf16.mxu0 %v700
        %1130 = vmatpush1.bf16.msra.mxu0 %v699
        %1131 = vmatprep.subr.bf16.mxu0 %v704
        %1132 = vmatpush1.bf16.msra.mxu0 %v703
        %1133 = vmatprep.subr.bf16.mxu0 %v708
        %1134 = vmatpush1.bf16.msra.mxu0 %v707
        %1135 = vmatprep.subr.bf16.mxu0 %v712
        %1136 = vmatpush1.bf16.msra.mxu0 %v711
        %1137 = vmatprep.subr.bf16.mxu0 %v716
        %1138 = vmatpush1.bf16.msra.mxu0 %v715
        %1139 = vmatprep.subr.bf16.mxu0 %v720
        %1140 = vmatpush1.bf16.msra.mxu0 %v719
        %1141 = vmatprep.subr.bf16.mxu0 %v724
        %1142 = vmatpush1.bf16.msra.mxu0 %v723
        %1143 = vmatprep.subr.bf16.mxu0 %v728
        %1144 = vmatpush1.bf16.msra.mxu0 %v727
        %1145 = vmatprep.subr.bf16.mxu0 0
        %1146 = vmatpush1.bf16.msra.mxu0 0
        %1147 = vmatprep.subr.bf16.mxu0 0
        %1148 = vmatpush1.bf16.msra.mxu0 0
        %1149 = vmatprep.subr.bf16.mxu0 0
        %1150 = vmatpush1.bf16.msra.mxu0 0
        %1151 = vmatprep.subr.bf16.mxu0 0
        %1152 = vmatpush1.bf16.msra.mxu0 0
        %1153 = vmatprep.subr.bf16.mxu0 0
        %1154 = vmatpush1.bf16.msra.mxu0 0
        %1155 = vmatprep.subr.bf16.mxu0 0
        %1156 = vmatpush1.bf16.msra.mxu0 0
        %1157 = vmatprep.subr.bf16.mxu0 0
        %1158 = vmatpush1.bf16.msra.mxu0 0
        %1159 = vmatprep.subr.bf16.mxu0 0
        %1160 = vmatpush1.bf16.msra.mxu0 0
        %1161 = vmatprep.mubr.bf16.mxu0 0
        %1162 = vmatmul.mubr.bf16.gmra.mrb[0].mxu0 %v1128
        %v1163 = vpop.f32.mrb[0].mxu0
        %v1164 = vadd.f32 0.0, %v1163
        %v1165 = vpop.f32.mrb[0].mxu0
        %v1166 = vadd.f32 0.0, %v1165
        %v1167 = vpop.f32.mrb[0].mxu0
        %v1168 = vpop.f32.mrb[0].mxu0
        %1169 = vdwg.mxu0
        %1170 = vmatprep.subr.bf16.mxu0 %v702
        %1171 = vmatpush1.bf16.msra.mxu0 %v701
        %1172 = vmatprep.subr.bf16.mxu0 %v706
        %1173 = vmatpush1.bf16.msra.mxu0 %v705
        %1174 = vmatprep.subr.bf16.mxu0 %v710
        %1175 = vmatpush1.bf16.msra.mxu0 %v709
        %1176 = vmatprep.subr.bf16.mxu0 %v714
        %1177 = vmatpush1.bf16.msra.mxu0 %v713
        %1178 = vmatprep.subr.bf16.mxu0 %v718
        %1179 = vmatpush1.bf16.msra.mxu0 %v717
        %1180 = vmatprep.subr.bf16.mxu0 %v722
        %1181 = vmatpush1.bf16.msra.mxu0 %v721
        %1182 = vmatprep.subr.bf16.mxu0 %v726
        %1183 = vmatpush1.bf16.msra.mxu0 %v725
        %1184 = vmatprep.subr.bf16.mxu0 %v730
        %1185 = vmatpush1.bf16.msra.mxu0 %v729
        %1186 = vmatprep.subr.bf16.mxu0 0
        %1187 = vmatpush1.bf16.msra.mxu0 0
        %1188 = vmatprep.subr.bf16.mxu0 0
        %1189 = vmatpush1.bf16.msra.mxu0 0
        %1190 = vmatprep.subr.bf16.mxu0 0
        %1191 = vmatpush1.bf16.msra.mxu0 0
        %1192 = vmatprep.subr.bf16.mxu0 0
        %1193 = vmatpush1.bf16.msra.mxu0 0
        %1194 = vmatprep.subr.bf16.mxu0 0
        %1195 = vmatpush1.bf16.msra.mxu0 0
        %1196 = vmatprep.subr.bf16.mxu0 0
        %1197 = vmatpush1.bf16.msra.mxu0 0
        %1198 = vmatprep.subr.bf16.mxu0 0
        %1199 = vmatpush1.bf16.msra.mxu0 0
        %1200 = vmatprep.subr.bf16.mxu0 0
        %1201 = vmatpush1.bf16.msra.mxu0 0
        %1202 = vmatprep.mubr.bf16.mxu0 0
        %1203 = vmatmul.mubr.bf16.gmra.mrb[0].mxu0 %v1128
        %v1204 = vpop.f32.mrb[0].mxu0
        %v1205 = vadd.f32 0.0, %v1204
        %v1206 = vpop.f32.mrb[0].mxu0
        %v1207 = vadd.f32 0.0, %v1206
        %v1208 = vpop.f32.mrb[0].mxu0
        %v1209 = vpop.f32.mrb[0].mxu0
        %1210 = vdwg.mxu0
        %v1211 = vadd.f32 %v1124, %v1164
        %v1212 = vadd.f32 %v1125, %v1166
        %v1213 = vadd.f32 %v1126, %v1205
        %v1214 = vadd.f32 %v1127, %v1207
        %v1215 = vxor.u32 %v1211, 2147483648
        %v1216 = vxor.u32 %v1212, 2147483648
        %v1217 = vxor.u32 %v1213, 2147483648
        %v1218 = vmul.f32 %v1215, 1.442695
        %v1219 = vpow.pop %v1218
        %v1220 = vmul.f32 %v1216, 1.442695
        %v1221 = vpow.pop %v1220
        %v1222 = vmul.f32 %v1217, 1.442695
        %v1223 = vpow.pop %v1222
        %v1224 = vadd.f32 %v1219, 1.0
        %v1225 = vadd.f32 %v1221, 1.0
        %v1226 = vadd.f32 %v1223, 1.0
        %v1227 = vrcp.pop %v1224
        %v1228 = vmul.f32 1.0, %v1227
        %v1229 = vrcp.pop %v1225
        %v1230 = vmul.f32 1.0, %v1229
        %v1231 = vrcp.pop %v1226
        %v1232 = vmul.f32 1.0, %v1231
        %v1233 = vtanh.pop %v1214
        %v1234 = vmul.f32 %v1230, %v1122
        %v1235 = vmul.f32 %v1228, %v1233
        %v1236 = vadd.f32 %v1234, %v1235
        %v1237 = vtanh.pop %v1236
        %v1238 = vmul.f32 %v1232, %v1237
        %s1239 = sadd.s32 %s873, 3
        %p1240 = scmp.lt.s32.totalorder %s1239, 35
        %s1241 = scalar_select %p1240, 1, 0
        %v1242 = vstv %s1241
        %vm1243 = vcmp.eq.s32.totalorder %v1242, 1
        %v1244 = vsel %vm1243, %v1236, %v1122
        %v1245 = vsel %vm1243, %v1238, %v1123
        %v1246 = vld [vmem:[#allocation2 + $0x80] sm:$0xff]
        %v1247 = vld [vmem:[#allocation2 + $0x88] sm:$0xff]
        %v1248 = vld [vmem:[#allocation2 + $0x90] sm:$0xff]
        %v1249 = vld [vmem:[#allocation2 + $0x98] sm:$0xff]
        %v1250 = vpack.c.bf16 %v1245, %v1245
        %1251 = vmatprep.subr.bf16.mxu0 %v700
        %1252 = vmatpush1.bf16.msra.mxu0 %v699
        %1253 = vmatprep.subr.bf16.mxu0 %v704
        %1254 = vmatpush1.bf16.msra.mxu0 %v703
        %1255 = vmatprep.subr.bf16.mxu0 %v708
        %1256 = vmatpush1.bf16.msra.mxu0 %v707
        %1257 = vmatprep.subr.bf16.mxu0 %v712
        %1258 = vmatpush1.bf16.msra.mxu0 %v711
        %1259 = vmatprep.subr.bf16.mxu0 %v716
        %1260 = vmatpush1.bf16.msra.mxu0 %v715
        %1261 = vmatprep.subr.bf16.mxu0 %v720
        %1262 = vmatpush1.bf16.msra.mxu0 %v719
        %1263 = vmatprep.subr.bf16.mxu0 %v724
        %1264 = vmatpush1.bf16.msra.mxu0 %v723
        %1265 = vmatprep.subr.bf16.mxu0 %v728
        %1266 = vmatpush1.bf16.msra.mxu0 %v727
        %1267 = vmatprep.subr.bf16.mxu0 0
        %1268 = vmatpush1.bf16.msra.mxu0 0
        %1269 = vmatprep.subr.bf16.mxu0 0
        %1270 = vmatpush1.bf16.msra.mxu0 0
        %1271 = vmatprep.subr.bf16.mxu0 0
        %1272 = vmatpush1.bf16.msra.mxu0 0
        %1273 = vmatprep.subr.bf16.mxu0 0
        %1274 = vmatpush1.bf16.msra.mxu0 0
        %1275 = vmatprep.subr.bf16.mxu0 0
        %1276 = vmatpush1.bf16.msra.mxu0 0
        %1277 = vmatprep.subr.bf16.mxu0 0
        %1278 = vmatpush1.bf16.msra.mxu0 0
        %1279 = vmatprep.subr.bf16.mxu0 0
        %1280 = vmatpush1.bf16.msra.mxu0 0
        %1281 = vmatprep.subr.bf16.mxu0 0
        %1282 = vmatpush1.bf16.msra.mxu0 0
        %1283 = vmatprep.mubr.bf16.mxu0 0
        %1284 = vmatmul.mubr.bf16.gmra.mrb[0].mxu0 %v1250
        %v1285 = vpop.f32.mrb[0].mxu0
        %v1286 = vadd.f32 0.0, %v1285
        %v1287 = vpop.f32.mrb[0].mxu0
        %v1288 = vadd.f32 0.0, %v1287
        %v1289 = vpop.f32.mrb[0].mxu0
        %v1290 = vpop.f32.mrb[0].mxu0
        %1291 = vdwg.mxu0
        %1292 = vmatprep.subr.bf16.mxu0 %v702
        %1293 = vmatpush1.bf16.msra.mxu0 %v701
        %1294 = vmatprep.subr.bf16.mxu0 %v706
        %1295 = vmatpush1.bf16.msra.mxu0 %v705
        %1296 = vmatprep.subr.bf16.mxu0 %v710
        %1297 = vmatpush1.bf16.msra.mxu0 %v709
        %1298 = vmatprep.subr.bf16.mxu0 %v714
        %1299 = vmatpush1.bf16.msra.mxu0 %v713
        %1300 = vmatprep.subr.bf16.mxu0 %v718
        %1301 = vmatpush1.bf16.msra.mxu0 %v717
        %1302 = vmatprep.subr.bf16.mxu0 %v722
        %1303 = vmatpush1.bf16.msra.mxu0 %v721
        %1304 = vmatprep.subr.bf16.mxu0 %v726
        %1305 = vmatpush1.bf16.msra.mxu0 %v725
        %1306 = vmatprep.subr.bf16.mxu0 %v730
        %1307 = vmatpush1.bf16.msra.mxu0 %v729
        %1308 = vmatprep.subr.bf16.mxu0 0
        %1309 = vmatpush1.bf16.msra.mxu0 0
        %1310 = vmatprep.subr.bf16.mxu0 0
        %1311 = vmatpush1.bf16.msra.mxu0 0
        %1312 = vmatprep.subr.bf16.mxu0 0
        %1313 = vmatpush1.bf16.msra.mxu0 0
        %1314 = vmatprep.subr.bf16.mxu0 0
        %1315 = vmatpush1.bf16.msra.mxu0 0
        %1316 = vmatprep.subr.bf16.mxu0 0
        %1317 = vmatpush1.bf16.msra.mxu0 0
        %1318 = vmatprep.subr.bf16.mxu0 0
        %1319 = vmatpush1.bf16.msra.mxu0 0
        %1320 = vmatprep.subr.bf16.mxu0 0
        %1321 = vmatpush1.bf16.msra.mxu0 0
        %1322 = vmatprep.subr.bf16.mxu0 0
        %1323 = vmatpush1.bf16.msra.mxu0 0
        %1324 = vmatprep.mubr.bf16.mxu0 0
        %1325 = vmatmul.mubr.bf16.gmra.mrb[0].mxu0 %v1250
        %v1326 = vpop.f32.mrb[0].mxu0
        %v1327 = vadd.f32 0.0, %v1326
        %v1328 = vpop.f32.mrb[0].mxu0
        %v1329 = vadd.f32 0.0, %v1328
        %v1330 = vpop.f32.mrb[0].mxu0
        %v1331 = vpop.f32.mrb[0].mxu0
        %1332 = vdwg.mxu0
        %v1333 = vadd.f32 %v1246, %v1286
        %v1334 = vadd.f32 %v1247, %v1288
        %v1335 = vadd.f32 %v1248, %v1327
        %v1336 = vadd.f32 %v1249, %v1329
        %v1337 = vxor.u32 %v1333, 2147483648
        %v1338 = vxor.u32 %v1334, 2147483648
        %v1339 = vxor.u32 %v1335, 2147483648
        %v1340 = vmul.f32 %v1337, 1.442695
        %v1341 = vpow.pop %v1340
        %v1342 = vmul.f32 %v1338, 1.442695
        %v1343 = vpow.pop %v1342
        %v1344 = vmul.f32 %v1339, 1.442695
        %v1345 = vpow.pop %v1344
        %v1346 = vadd.f32 %v1341, 1.0
        %v1347 = vadd.f32 %v1343, 1.0
        %v1348 = vadd.f32 %v1345, 1.0
        %v1349 = vrcp.pop %v1346
        %v1350 = vmul.f32 1.0, %v1349
        %v1351 = vrcp.pop %v1347
        %v1352 = vmul.f32 1.0, %v1351
        %v1353 = vrcp.pop %v1348
        %v1354 = vmul.f32 1.0, %v1353
        %v1355 = vtanh.pop %v1336
        %v1356 = vmul.f32 %v1352, %v1244
        %v1357 = vmul.f32 %v1350, %v1355
        %v1358 = vadd.f32 %v1356, %v1357
        %v1359 = vtanh.pop %v1358
        %v1360 = vmul.f32 %v1354, %v1359
        %s1361 = sadd.s32 %s873, 4
        %p1362 = scmp.lt.s32.totalorder %s1361, 35
        %s1363 = scalar_select %p1362, 1, 0
        %v1364 = vstv %s1363
        %vm1365 = vcmp.eq.s32.totalorder %v1364, 1
        %v1366 = vsel %vm1365, %v1358, %v1244
        %v1367 = vsel %vm1365, %v1360, %v1245
        %v1368 = vld [vmem:[#allocation2 + $0xa0] sm:$0xff]
        %v1369 = vld [vmem:[#allocation2 + $0xa8] sm:$0xff]
        %v1370 = vld [vmem:[#allocation2 + $0xb0] sm:$0xff]
        %v1371 = vld [vmem:[#allocation2 + $0xb8] sm:$0xff]
        %v1372 = vpack.c.bf16 %v1367, %v1367
        %1373 = vmatprep.subr.bf16.mxu0 %v700
        %1374 = vmatpush1.bf16.msra.mxu0 %v699
        %1375 = vmatprep.subr.bf16.mxu0 %v704
        %1376 = vmatpush1.bf16.msra.mxu0 %v703
        %1377 = vmatprep.subr.bf16.mxu0 %v708
        %1378 = vmatpush1.bf16.msra.mxu0 %v707
        %1379 = vmatprep.subr.bf16.mxu0 %v712
        %1380 = vmatpush1.bf16.msra.mxu0 %v711
        %1381 = vmatprep.subr.bf16.mxu0 %v716
        %1382 = vmatpush1.bf16.msra.mxu0 %v715
        %1383 = vmatprep.subr.bf16.mxu0 %v720
        %1384 = vmatpush1.bf16.msra.mxu0 %v719
        %1385 = vmatprep.subr.bf16.mxu0 %v724
        %1386 = vmatpush1.bf16.msra.mxu0 %v723
        %1387 = vmatprep.subr.bf16.mxu0 %v728
        %1388 = vmatpush1.bf16.msra.mxu0 %v727
        %1389 = vmatprep.subr.bf16.mxu0 0
        %1390 = vmatpush1.bf16.msra.mxu0 0
        %1391 = vmatprep.subr.bf16.mxu0 0
        %1392 = vmatpush1.bf16.msra.mxu0 0
        %1393 = vmatprep.subr.bf16.mxu0 0
        %1394 = vmatpush1.bf16.msra.mxu0 0
        %1395 = vmatprep.subr.bf16.mxu0 0
        %1396 = vmatpush1.bf16.msra.mxu0 0
        %1397 = vmatprep.subr.bf16.mxu0 0
        %1398 = vmatpush1.bf16.msra.mxu0 0
        %1399 = vmatprep.subr.bf16.mxu0 0
        %1400 = vmatpush1.bf16.msra.mxu0 0
        %1401 = vmatprep.subr.bf16.mxu0 0
        %1402 = vmatpush1.bf16.msra.mxu0 0
        %1403 = vmatprep.subr.bf16.mxu0 0
        %1404 = vmatpush1.bf16.msra.mxu0 0
        %1405 = vmatprep.mubr.bf16.mxu0 0
        %1406 = vmatmul.mubr.bf16.gmra.mrb[0].mxu0 %v1372
        %v1407 = vpop.f32.mrb[0].mxu0
        %v1408 = vadd.f32 0.0, %v1407
        %v1409 = vpop.f32.mrb[0].mxu0
        %v1410 = vadd.f32 0.0, %v1409
        %v1411 = vpop.f32.mrb[0].mxu0
        %v1412 = vpop.f32.mrb[0].mxu0
        %1413 = vdwg.mxu0
        %1414 = vmatprep.subr.bf16.mxu0 %v702
        %1415 = vmatpush1.bf16.msra.mxu0 %v701
        %1416 = vmatprep.subr.bf16.mxu0 %v706
        %1417 = vmatpush1.bf16.msra.mxu0 %v705
        %1418 = vmatprep.subr.bf16.mxu0 %v710
        %1419 = vmatpush1.bf16.msra.mxu0 %v709
        %1420 = vmatprep.subr.bf16.mxu0 %v714
        %1421 = vmatpush1.bf16.msra.mxu0 %v713
        %1422 = vmatprep.subr.bf16.mxu0 %v718
        %1423 = vmatpush1.bf16.msra.mxu0 %v717
        %1424 = vmatprep.subr.bf16.mxu0 %v722
        %1425 = vmatpush1.bf16.msra.mxu0 %v721
        %1426 = vmatprep.subr.bf16.mxu0 %v726
        %1427 = vmatpush1.bf16.msra.mxu0 %v725
        %1428 = vmatprep.subr.bf16.mxu0 %v730
        %1429 = vmatpush1.bf16.msra.mxu0 %v729
        %1430 = vmatprep.subr.bf16.mxu0 0
        %1431 = vmatpush1.bf16.msra.mxu0 0
        %1432 = vmatprep.subr.bf16.mxu0 0
        %1433 = vmatpush1.bf16.msra.mxu0 0
        %1434 = vmatprep.subr.bf16.mxu0 0
        %1435 = vmatpush1.bf16.msra.mxu0 0
        %1436 = vmatprep.subr.bf16.mxu0 0
        %1437 = vmatpush1.bf16.msra.mxu0 0
        %1438 = vmatprep.subr.bf16.mxu0 0
        %1439 = vmatpush1.bf16.msra.mxu0 0
        %1440 = vmatprep.subr.bf16.mxu0 0
        %1441 = vmatpush1.bf16.msra.mxu0 0
        %1442 = vmatprep.subr.bf16.mxu0 0
        %1443 = vmatpush1.bf16.msra.mxu0 0
        %1444 = vmatprep.subr.bf16.mxu0 0
        %1445 = vmatpush1.bf16.msra.mxu0 0
        %1446 = vmatprep.mubr.bf16.mxu0 0
        %1447 = vmatmul.mubr.bf16.gmra.mrb[0].mxu0 %v1372
        %v1448 = vpop.f32.mrb[0].mxu0
        %v1449 = vadd.f32 0.0, %v1448
        %v1450 = vpop.f32.mrb[0].mxu0
        %v1451 = vadd.f32 0.0, %v1450
        %v1452 = vpop.f32.mrb[0].mxu0
        %v1453 = vpop.f32.mrb[0].mxu0
        %1454 = vdwg.mxu0
        %v1455 = vadd.f32 %v1368, %v1408
        %v1456 = vadd.f32 %v1369, %v1410
        %v1457 = vadd.f32 %v1370, %v1449
        %v1458 = vadd.f32 %v1371, %v1451
        %v1459 = vxor.u32 %v1455, 2147483648
        %v1460 = vxor.u32 %v1456, 2147483648
        %v1461 = vxor.u32 %v1457, 2147483648
        %v1462 = vmul.f32 %v1459, 1.442695
        %v1463 = vpow.pop %v1462
        %v1464 = vmul.f32 %v1460, 1.442695
        %v1465 = vpow.pop %v1464
        %v1466 = vmul.f32 %v1461, 1.442695
        %v1467 = vpow.pop %v1466
        %v1468 = vadd.f32 %v1463, 1.0
        %v1469 = vadd.f32 %v1465, 1.0
        %v1470 = vadd.f32 %v1467, 1.0
        %v1471 = vrcp.pop %v1468
        %v1472 = vmul.f32 1.0, %v1471
        %v1473 = vrcp.pop %v1469
        %v1474 = vmul.f32 1.0, %v1473
        %v1475 = vrcp.pop %v1470
        %v1476 = vmul.f32 1.0, %v1475
        %v1477 = vtanh.pop %v1458
        %v1478 = vmul.f32 %v1474, %v1366
        %v1479 = vmul.f32 %v1472, %v1477
        %v1480 = vadd.f32 %v1478, %v1479
        %v1481 = vtanh.pop %v1480
        %v1482 = vmul.f32 %v1476, %v1481
        %s1483 = sadd.s32 %s873, 5
        %p1484 = scmp.lt.s32.totalorder %s1483, 35
        %s1485 = scalar_select %p1484, 1, 0
        %v1486 = vstv %s1485
        %vm1487 = vcmp.eq.s32.totalorder %v1486, 1
        %v1488 = vsel %vm1487, %v1480, %v1366
        %v1489 = vsel %vm1487, %v1482, %v1367
        %v1490 = vld [vmem:[#allocation2 + $0xc0] sm:$0xff]
        %v1491 = vld [vmem:[#allocation2 + $0xc8] sm:$0xff]
        %v1492 = vld [vmem:[#allocation2 + $0xd0] sm:$0xff]
        %v1493 = vld [vmem:[#allocation2 + $0xd8] sm:$0xff]
        %v1494 = vpack.c.bf16 %v1489, %v1489
        %1495 = vmatprep.subr.bf16.mxu0 %v700
        %1496 = vmatpush1.bf16.msra.mxu0 %v699
        %1497 = vmatprep.subr.bf16.mxu0 %v704
        %1498 = vmatpush1.bf16.msra.mxu0 %v703
        %1499 = vmatprep.subr.bf16.mxu0 %v708
        %1500 = vmatpush1.bf16.msra.mxu0 %v707
        %1501 = vmatprep.subr.bf16.mxu0 %v712
        %1502 = vmatpush1.bf16.msra.mxu0 %v711
        %1503 = vmatprep.subr.bf16.mxu0 %v716
        %1504 = vmatpush1.bf16.msra.mxu0 %v715
        %1505 = vmatprep.subr.bf16.mxu0 %v720
        %1506 = vmatpush1.bf16.msra.mxu0 %v719
        %1507 = vmatprep.subr.bf16.mxu0 %v724
        %1508 = vmatpush1.bf16.msra.mxu0 %v723
        %1509 = vmatprep.subr.bf16.mxu0 %v728
        %1510 = vmatpush1.bf16.msra.mxu0 %v727
        %1511 = vmatprep.subr.bf16.mxu0 0
        %1512 = vmatpush1.bf16.msra.mxu0 0
        %1513 = vmatprep.subr.bf16.mxu0 0
        %1514 = vmatpush1.bf16.msra.mxu0 0
        %1515 = vmatprep.subr.bf16.mxu0 0
        %1516 = vmatpush1.bf16.msra.mxu0 0
        %1517 = vmatprep.subr.bf16.mxu0 0
        %1518 = vmatpush1.bf16.msra.mxu0 0
        %1519 = vmatprep.subr.bf16.mxu0 0
        %1520 = vmatpush1.bf16.msra.mxu0 0
        %1521 = vmatprep.subr.bf16.mxu0 0
        %1522 = vmatpush1.bf16.msra.mxu0 0
        %1523 = vmatprep.subr.bf16.mxu0 0
        %1524 = vmatpush1.bf16.msra.mxu0 0
        %1525 = vmatprep.subr.bf16.mxu0 0
        %1526 = vmatpush1.bf16.msra.mxu0 0
        %1527 = vmatprep.mubr.bf16.mxu0 0
        %1528 = vmatmul.mubr.bf16.gmra.mrb[0].mxu0 %v1494
        %v1529 = vpop.f32.mrb[0].mxu0
        %v1530 = vadd.f32 0.0, %v1529
        %v1531 = vpop.f32.mrb[0].mxu0
        %v1532 = vadd.f32 0.0, %v1531
        %v1533 = vpop.f32.mrb[0].mxu0
        %v1534 = vpop.f32.mrb[0].mxu0
        %1535 = vdwg.mxu0
        %1536 = vmatprep.subr.bf16.mxu0 %v702
        %1537 = vmatpush1.bf16.msra.mxu0 %v701
        %1538 = vmatprep.subr.bf16.mxu0 %v706
        %1539 = vmatpush1.bf16.msra.mxu0 %v705
        %1540 = vmatprep.subr.bf16.mxu0 %v710
        %1541 = vmatpush1.bf16.msra.mxu0 %v709
        %1542 = vmatprep.subr.bf16.mxu0 %v714
        %1543 = vmatpush1.bf16.msra.mxu0 %v713
        %1544 = vmatprep.subr.bf16.mxu0 %v718
        %1545 = vmatpush1.bf16.msra.mxu0 %v717
        %1546 = vmatprep.subr.bf16.mxu0 %v722
        %1547 = vmatpush1.bf16.msra.mxu0 %v721
        %1548 = vmatprep.subr.bf16.mxu0 %v726
        %1549 = vmatpush1.bf16.msra.mxu0 %v725
        %1550 = vmatprep.subr.bf16.mxu0 %v730
        %1551 = vmatpush1.bf16.msra.mxu0 %v729
        %1552 = vmatprep.subr.bf16.mxu0 0
        %1553 = vmatpush1.bf16.msra.mxu0 0
        %1554 = vmatprep.subr.bf16.mxu0 0
        %1555 = vmatpush1.bf16.msra.mxu0 0
        %1556 = vmatprep.subr.bf16.mxu0 0
        %1557 = vmatpush1.bf16.msra.mxu0 0
        %1558 = vmatprep.subr.bf16.mxu0 0
        %1559 = vmatpush1.bf16.msra.mxu0 0
        %1560 = vmatprep.subr.bf16.mxu0 0
        %1561 = vmatpush1.bf16.msra.mxu0 0
        %1562 = vmatprep.subr.bf16.mxu0 0
        %1563 = vmatpush1.bf16.msra.mxu0 0
        %1564 = vmatprep.subr.bf16.mxu0 0
        %1565 = vmatpush1.bf16.msra.mxu0 0
        %1566 = vmatprep.subr.bf16.mxu0 0
        %1567 = vmatpush1.bf16.msra.mxu0 0
        %1568 = vmatprep.mubr.bf16.mxu0 0
        %1569 = vmatmul.mubr.bf16.gmra.mrb[0].mxu0 %v1494
        %v1570 = vpop.f32.mrb[0].mxu0
        %v1571 = vadd.f32 0.0, %v1570
        %v1572 = vpop.f32.mrb[0].mxu0
        %v1573 = vadd.f32 0.0, %v1572
        %v1574 = vpop.f32.mrb[0].mxu0
        %v1575 = vpop.f32.mrb[0].mxu0
        %1576 = vdwg.mxu0
        %v1577 = vadd.f32 %v1490, %v1530
        %v1578 = vadd.f32 %v1491, %v1532
        %v1579 = vadd.f32 %v1492, %v1571
        %v1580 = vadd.f32 %v1493, %v1573
        %v1581 = vxor.u32 %v1577, 2147483648
        %v1582 = vxor.u32 %v1578, 2147483648
        %v1583 = vxor.u32 %v1579, 2147483648
        %v1584 = vmul.f32 %v1581, 1.442695
        %v1585 = vpow.pop %v1584
        %v1586 = vmul.f32 %v1582, 1.442695
        %v1587 = vpow.pop %v1586
        %v1588 = vmul.f32 %v1583, 1.442695
        %v1589 = vpow.pop %v1588
        %v1590 = vadd.f32 %v1585, 1.0
        %v1591 = vadd.f32 %v1587, 1.0
        %v1592 = vadd.f32 %v1589, 1.0
        %v1593 = vrcp.pop %v1590
        %v1594 = vmul.f32 1.0, %v1593
        %v1595 = vrcp.pop %v1591
        %v1596 = vmul.f32 1.0, %v1595
        %v1597 = vrcp.pop %v1592
        %v1598 = vmul.f32 1.0, %v1597
        %v1599 = vtanh.pop %v1580
        %v1600 = vmul.f32 %v1596, %v1488
        %v1601 = vmul.f32 %v1594, %v1599
        %v1602 = vadd.f32 %v1600, %v1601
        %v1603 = vtanh.pop %v1602
        %v1604 = vmul.f32 %v1598, %v1603
        %s1605 = sadd.s32 %s873, 6
        %p1606 = scmp.lt.s32.totalorder %s1605, 35
        %s1607 = scalar_select %p1606, 1, 0
        %v1608 = vstv %s1607
        %vm1609 = vcmp.eq.s32.totalorder %v1608, 1
        %v1610 = vsel %vm1609, %v1602, %v1488
        %v1611 = vsel %vm1609, %v1604, %v1489
        %v1612 = vld [vmem:[#allocation2 + $0xe0] sm:$0xff]
        %v1613 = vld [vmem:[#allocation2 + $0xe8] sm:$0xff]
        %v1614 = vld [vmem:[#allocation2 + $0xf0] sm:$0xff]
        %v1615 = vld [vmem:[#allocation2 + $0xf8] sm:$0xff]
        %v1616 = vpack.c.bf16 %v1611, %v1611
        %1617 = vmatprep.subr.bf16.mxu0 %v700
        %1618 = vmatpush1.bf16.msra.mxu0 %v699
        %1619 = vmatprep.subr.bf16.mxu0 %v704
        %1620 = vmatpush1.bf16.msra.mxu0 %v703
        %1621 = vmatprep.subr.bf16.mxu0 %v708
        %1622 = vmatpush1.bf16.msra.mxu0 %v707
        %1623 = vmatprep.subr.bf16.mxu0 %v712
        %1624 = vmatpush1.bf16.msra.mxu0 %v711
        %1625 = vmatprep.subr.bf16.mxu0 %v716
        %1626 = vmatpush1.bf16.msra.mxu0 %v715
        %1627 = vmatprep.subr.bf16.mxu0 %v720
        %1628 = vmatpush1.bf16.msra.mxu0 %v719
        %1629 = vmatprep.subr.bf16.mxu0 %v724
        %1630 = vmatpush1.bf16.msra.mxu0 %v723
        %1631 = vmatprep.subr.bf16.mxu0 %v728
        %1632 = vmatpush1.bf16.msra.mxu0 %v727
        %1633 = vmatprep.subr.bf16.mxu0 0
        %1634 = vmatpush1.bf16.msra.mxu0 0
        %1635 = vmatprep.subr.bf16.mxu0 0
        %1636 = vmatpush1.bf16.msra.mxu0 0
        %1637 = vmatprep.subr.bf16.mxu0 0
        %1638 = vmatpush1.bf16.msra.mxu0 0
        %1639 = vmatprep.subr.bf16.mxu0 0
        %1640 = vmatpush1.bf16.msra.mxu0 0
        %1641 = vmatprep.subr.bf16.mxu0 0
        %1642 = vmatpush1.bf16.msra.mxu0 0
        %1643 = vmatprep.subr.bf16.mxu0 0
        %1644 = vmatpush1.bf16.msra.mxu0 0
        %1645 = vmatprep.subr.bf16.mxu0 0
        %1646 = vmatpush1.bf16.msra.mxu0 0
        %1647 = vmatprep.subr.bf16.mxu0 0
        %1648 = vmatpush1.bf16.msra.mxu0 0
        %1649 = vmatprep.mubr.bf16.mxu0 0
        %1650 = vmatmul.mubr.bf16.gmra.mrb[0].mxu0 %v1616
        %v1651 = vpop.f32.mrb[0].mxu0
        %v1652 = vadd.f32 0.0, %v1651
        %v1653 = vpop.f32.mrb[0].mxu0
        %v1654 = vadd.f32 0.0, %v1653
        %v1655 = vpop.f32.mrb[0].mxu0
        %v1656 = vpop.f32.mrb[0].mxu0
        %1657 = vdwg.mxu0
        %1658 = vmatprep.subr.bf16.mxu0 %v702
        %1659 = vmatpush1.bf16.msra.mxu0 %v701
        %1660 = vmatprep.subr.bf16.mxu0 %v706
        %1661 = vmatpush1.bf16.msra.mxu0 %v705
        %1662 = vmatprep.subr.bf16.mxu0 %v710
        %1663 = vmatpush1.bf16.msra.mxu0 %v709
        %1664 = vmatprep.subr.bf16.mxu0 %v714
        %1665 = vmatpush1.bf16.msra.mxu0 %v713
        %1666 = vmatprep.subr.bf16.mxu0 %v718
        %1667 = vmatpush1.bf16.msra.mxu0 %v717
        %1668 = vmatprep.subr.bf16.mxu0 %v722
        %1669 = vmatpush1.bf16.msra.mxu0 %v721
        %1670 = vmatprep.subr.bf16.mxu0 %v726
        %1671 = vmatpush1.bf16.msra.mxu0 %v725
        %1672 = vmatprep.subr.bf16.mxu0 %v730
        %1673 = vmatpush1.bf16.msra.mxu0 %v729
        %1674 = vmatprep.subr.bf16.mxu0 0
        %1675 = vmatpush1.bf16.msra.mxu0 0
        %1676 = vmatprep.subr.bf16.mxu0 0
        %1677 = vmatpush1.bf16.msra.mxu0 0
        %1678 = vmatprep.subr.bf16.mxu0 0
        %1679 = vmatpush1.bf16.msra.mxu0 0
        %1680 = vmatprep.subr.bf16.mxu0 0
        %1681 = vmatpush1.bf16.msra.mxu0 0
        %1682 = vmatprep.subr.bf16.mxu0 0
        %1683 = vmatpush1.bf16.msra.mxu0 0
        %1684 = vmatprep.subr.bf16.mxu0 0
        %1685 = vmatpush1.bf16.msra.mxu0 0
        %1686 = vmatprep.subr.bf16.mxu0 0
        %1687 = vmatpush1.bf16.msra.mxu0 0
        %1688 = vmatprep.subr.bf16.mxu0 0
        %1689 = vmatpush1.bf16.msra.mxu0 0
        %1690 = vmatprep.mubr.bf16.mxu0 0
        %1691 = vmatmul.mubr.bf16.gmra.mrb[0].mxu0 %v1616
        %v1692 = vpop.f32.mrb[0].mxu0
        %v1693 = vadd.f32 0.0, %v1692
        %v1694 = vpop.f32.mrb[0].mxu0
        %v1695 = vadd.f32 0.0, %v1694
        %v1696 = vpop.f32.mrb[0].mxu0
        %v1697 = vpop.f32.mrb[0].mxu0
        %1698 = vdwg.mxu0
        %v1699 = vadd.f32 %v1612, %v1652
        %v1700 = vadd.f32 %v1613, %v1654
        %v1701 = vadd.f32 %v1614, %v1693
        %v1702 = vadd.f32 %v1615, %v1695
        %v1703 = vxor.u32 %v1699, 2147483648
        %v1704 = vxor.u32 %v1700, 2147483648
        %v1705 = vxor.u32 %v1701, 2147483648
        %v1706 = vmul.f32 %v1703, 1.442695
        %v1707 = vpow.pop %v1706
        %v1708 = vmul.f32 %v1704, 1.442695
        %v1709 = vpow.pop %v1708
        %v1710 = vmul.f32 %v1705, 1.442695
        %v1711 = vpow.pop %v1710
        %v1712 = vadd.f32 %v1707, 1.0
        %v1713 = vadd.f32 %v1709, 1.0
        %v1714 = vadd.f32 %v1711, 1.0
        %v1715 = vrcp.pop %v1712
        %v1716 = vmul.f32 1.0, %v1715
        %v1717 = vrcp.pop %v1713
        %v1718 = vmul.f32 1.0, %v1717
        %v1719 = vrcp.pop %v1714
        %v1720 = vmul.f32 1.0, %v1719
        %v1721 = vtanh.pop %v1702
        %v1722 = vmul.f32 %v1718, %v1610
        %v1723 = vmul.f32 %v1716, %v1721
        %v1724 = vadd.f32 %v1722, %v1723
        %v1725 = vtanh.pop %v1724
        %v1726 = vmul.f32 %v1720, %v1725
        %s1727 = sadd.s32 %s873, 7
        %p1728 = scmp.lt.s32.totalorder %s1727, 35
        %s1729 = scalar_select %p1728, 1, 0
        %v1730 = vstv %s1729
        %vm1731 = vcmp.eq.s32.totalorder %v1730, 1
        %v1732 = vsel %vm1731, %v1724, %v1610
        %v1733 = vsel %vm1731, %v1726, %v1611
        %1734 = vst [vmem:[#allocation3] sm:$0xff] %v1733
        %1735 = vst [vmem:[#allocation4] sm:$0xff] %v1732
        %p1736 = scmp.eq.s32.totalorder %s24, 4
        // Predicated region
        $region53: #{tpu_custom_call.1} parent=43 // pred_check
          %p1737 = pneg %p1736
        $region54: #{tpu_custom_call.1} parent=43 // pred_check_branch
          %1739 = sbr.rel (%p1737) target = $region56
        $region55: #{tpu_custom_call.1} parent=43 // pred_region
          %v1740 = vpack.c.bf16 %v1733, %v1733
          %v1741 = vld [vmem:[%s4] sm:$0xf]
          %v1742 = vld [vmem:[%s4 + $0x4] sm:$0xf]
          %v1743 = vld [vmem:[%s4 + $0x8] sm:$0xf]
          %v1744 = vld [vmem:[%s4 + $0xc] sm:$0xf]
          %v1745 = vld [vmem:[%s4 + $0x10] sm:$0xf]
          %v1746 = vld [vmem:[%s4 + $0x14] sm:$0xf]
          %v1747 = vld [vmem:[%s4 + $0x18] sm:$0xf]
          %v1748 = vld [vmem:[%s4 + $0x1c] sm:$0xf]
          %v1749 = vld [vmem:[%s4 + $0x20] sm:$0xf]
          %v1750 = vld [vmem:[%s4 + $0x24] sm:$0xf]
          %v1751 = vld [vmem:[%s4 + $0x28] sm:$0xf]
          %v1752 = vld [vmem:[%s4 + $0x2c] sm:$0xf]
          %v1753 = vld [vmem:[%s4 + $0x30] sm:$0xf]
          %v1754 = vld [vmem:[%s4 + $0x34] sm:$0xf]
          %v1755 = vld [vmem:[%s4 + $0x38] sm:$0xf]
          %v1756 = vld [vmem:[%s4 + $0x3c] sm:$0xf]
          %v1757 = vld [vmem:[%s5] sm:$0x1]
          %v1759 = vlaneseq
          %v1760 = vshrl.u32 %v1759, 7
          %v1761 = vsub.s32 0, %v1760
          %v1762 = vrot.slane %v1757, %v1761
          %v1780 = vunpack.c.l.b16 %v1741
          %v1781 = vunpack.c.l.b16 %v1742
          %v1782 = vunpack.c.l.b16 %v1743
          %v1783 = vunpack.c.l.b16 %v1744
          %v1784 = vunpack.c.l.b16 %v1745
          %v1785 = vunpack.c.l.b16 %v1746
          %v1786 = vunpack.c.l.b16 %v1747
          %v1787 = vunpack.c.l.b16 %v1748
          %v1788 = vunpack.c.l.b16 %v1749
          %v1789 = vunpack.c.l.b16 %v1750
          %v1790 = vunpack.c.l.b16 %v1751
          %v1791 = vunpack.c.l.b16 %v1752
          %v1792 = vunpack.c.l.b16 %v1753
          %v1793 = vunpack.c.l.b16 %v1754
          %v1794 = vunpack.c.l.b16 %v1755
          %v1795 = vunpack.c.l.b16 %v1756
          %v1796 = vpack.c.b16 %v1781, %v1780
          %v1797 = vpack.c.b16 %v1783, %v1782
          %v1798 = vpack.c.b16 %v1785, %v1784
          %v1799 = vpack.c.b16 %v1787, %v1786
          %v1800 = vpack.c.b16 %v1789, %v1788
          %v1801 = vpack.c.b16 %v1791, %v1790
          %v1802 = vpack.c.b16 %v1793, %v1792
          %v1803 = vpack.c.b16 %v1795, %v1794
          %1812 = vmatprep.subr.bf16.mxu0 0
          %1813 = vmatpush1.bf16.msra.mxu0 %v1796
          %1814 = vmatprep.subr.bf16.mxu0 0
          %1815 = vmatpush1.bf16.msra.mxu0 %v1797
          %1816 = vmatprep.subr.bf16.mxu0 0
          %1817 = vmatpush1.bf16.msra.mxu0 %v1798
          %1818 = vmatprep.subr.bf16.mxu0 0
          %1819 = vmatpush1.bf16.msra.mxu0 %v1799
          %1820 = vmatprep.subr.bf16.mxu0 0
          %1821 = vmatpush1.bf16.msra.mxu0 %v1800
          %1822 = vmatprep.subr.bf16.mxu0 0
          %1823 = vmatpush1.bf16.msra.mxu0 %v1801
          %1824 = vmatprep.subr.bf16.mxu0 0
          %1825 = vmatpush1.bf16.msra.mxu0 %v1802
          %1826 = vmatprep.subr.bf16.mxu0 0
          %1827 = vmatpush1.bf16.msra.mxu0 %v1803
          %1828 = vmatprep.subr.bf16.mxu0 0
          %1829 = vmatpush1.bf16.msra.mxu0 0
          %1830 = vmatprep.subr.bf16.mxu0 0
          %1831 = vmatpush1.bf16.msra.mxu0 0
          %1832 = vmatprep.subr.bf16.mxu0 0
          %1833 = vmatpush1.bf16.msra.mxu0 0
          %1834 = vmatprep.subr.bf16.mxu0 0
          %1835 = vmatpush1.bf16.msra.mxu0 0
          %1836 = vmatprep.subr.bf16.mxu0 0
          %1837 = vmatpush1.bf16.msra.mxu0 0
          %1838 = vmatprep.subr.bf16.mxu0 0
          %1839 = vmatpush1.bf16.msra.mxu0 0
          %1840 = vmatprep.subr.bf16.mxu0 0
          %1841 = vmatpush1.bf16.msra.mxu0 0
          %1842 = vmatprep.subr.bf16.mxu0 0
          %1843 = vmatpush1.bf16.msra.mxu0 0
          %1844 = vmatprep.mubr.bf16.mxu0 0
          %1845 = vmatmul.mubr.bf16.gmra.mrb[0].mxu0 %v1740
          %v1846 = vpop.f32.mrb[0].mxu0
          %v1847 = vadd.f32 %v1762, %v1846
          %v1848 = vpop.f32.mrb[0].mxu0
          %v1849 = vpop.f32.mrb[0].mxu0
          %v1850 = vpop.f32.mrb[0].mxu0
          %1851 = vdwg.mxu0
          %1852 = vst [vmem:[#allocation8] sm:$0xff] %v1847
        $region56: #{tpu_custom_call.1} parent=43 // pred_fallthru
          _
        // Predicated region
        $region57: #{tpu_custom_call.1} parent=43 // pred_check
          %p1853 = pneg %p182
        $region58: #{tpu_custom_call.1} parent=43 // pred_check_branch
          %1855 = sbr.rel (%p1853) target = $region60
        $region59: #{tpu_custom_call.1} parent=43 // pred_region
          %s1857 = ssub.s32 128, 128
          %1858 = vsyncadd [#allocation7], %s1857
          %s1859 = smul.addr %s23, 128
          %s1860 = scalar_lea.hbm %s6, %s1859
          %s1862 = sshll.u32 [#allocation8], 4
          %s1863 = int_to_ptr.vmem [resolvable:$true] %s1862
          %1865 = dma.vmem_to_hbm [thread:$0]  %s1863, 128, %s1860, [#allocation7]
        $region60: #{tpu_custom_call.1} parent=43 // pred_fallthru
          _
        // Predicated region
        $region61: #{tpu_custom_call.1} parent=43 // pred_check
          %p1866 = pneg %p182
        $region62: #{tpu_custom_call.1} parent=43 // pred_check_branch
          %1868 = sbr.rel (%p1866) target = $region64
        $region63: #{tpu_custom_call.1} parent=43 // pred_region
          %1869 = dma.done [#allocation7], 128
        $region64: #{tpu_custom_call.1} parent=43 // pred_fallthru
          _
      $region44: #{tpu_custom_call.1} parent=5 // pred_fallthru
        _
      %p1870 = scmp.le.s32.totalorder 2, %s14
      // Predicated region
      $region65: #{tpu_custom_call.1} parent=5 // pred_check
        %p1871 = pneg %p1870
      $region66: #{tpu_custom_call.1} parent=5 // pred_check_branch
        %1873 = sbr.rel (%p1871) target = $region68
      $region67: #{tpu_custom_call.1} parent=5 // pred_region
        %s1874 = ssub.s32 %s14, 2
      $region68: #{tpu_custom_call.1} parent=5 // pred_fallthru
        _
    $region6: #{tpu_custom_call.1} parent=1 // loop_footer
      %s18 = sadd.s32 1, %s14
    $region7: #{tpu_custom_call.1} parent=1 // loop_footer_branch
      %13 = sbr.rel target = $region3
    $region8: #{tpu_custom_call.1} parent=1 // loop_exit
      _
    %1875 = vsyncpa [#allocation6], 1
    %s1876 = scalar_lea.sflag [#allocation6], 1
    %1877 = vsyncpa %s1876, 1
    %1878 = vsyncpa [#allocation7], 1
    %s1879 = scalar_lea.sflag [#allocation7], 1
    %1880 = vsyncpa %s1879, 1

// kernel: tpu_custom_call.1
$region0: #{tpu_custom_call.1}
  #allocation0 [shape = 'u32[]', space=smem, size = 0x4, offset = 0x4, fixed_abs, tag = 'smem constant byte address 0x4 - core index']
  #allocation1 [shape = 'u32[144,128]{1,0:T(1,128)}', space=vmem, size = 0x12000, scoped, tag = 'internal scratch']
  #allocation2 [shape = 'f32[64,512]{1,0:T(8,128)}', space=vmem, size = 0x20000, scoped, tag = 'scratch operand']
  #allocation3 [shape = 'f32[8,128]{1,0:T(8,128)}', space=vmem, size = 0x1000, scoped, tag = 'scratch operand']
  #allocation4 [shape = 'f32[8,128]{1,0:T(8,128)}', space=vmem, size = 0x1000, scoped, tag = 'scratch operand']
  %s0 = inlined_call_operand.vmem [shape: bf16[5,1,64,4], index: 0, kind: input, shape index: {}]
  %s1 = inlined_call_operand.vmem [shape: bf16[4,512], index: 1, kind: input, shape index: {}]
  %s2 = inlined_call_operand.vmem [shape: f32[1,512], index: 2, kind: input, shape index: {}]
  %s3 = inlined_call_operand.hbm [shape: bf16[128,512], index: 3, kind: input, shape index: {}]
  %s4 = inlined_call_operand.vmem [shape: bf16[128,128], index: 4, kind: input, shape index: {}]
  %s5 = inlined_call_operand.vmem [shape: f32[1,128], index: 5, kind: input, shape index: {}]
  %s6 = inlined_call_operand.hbm [shape: f32[8,128], index: 6, kind: output, shape index: {}]
  %s7 = sld [smem:[#allocation0]]
  $region69: #{tpu_custom_call.1} parent=0
    _
  %s9 = ssub.s32 1, %s7
  %s10 = scalar_select 0, %s9, %s7
  $region1: #{tpu_custom_call.1} parent=0
    #allocation5 [shape = 'u8[131072]{0}', space=vmem, size = 0x20000, scoped, tag = 'input window, operand 3, single buffered']
    #allocation6 [shape = 's32[2]{0}', space=sflag, size = 0x8, scoped, tag = 'scoped memory for tpu_custom_call.1']
    #allocation7 [shape = 's32[2]{0}', space=sflag, size = 0x8, scoped, tag = 'scoped memory for tpu_custom_call.1']
    #allocation8 [shape = 'u8[4096]{0}', space=vmem, size = 0x1000, scoped, tag = 'output window, operand 0, single buffered']
    %11 = vsyncpa [#allocation6], 0
    %12 = vsyncpa [#allocation7], 0
    loop: start=0, step=1, limit=7
    $region2: #{tpu_custom_call.1} parent=1 // loop_pre_header
      _
    $region3: #{tpu_custom_call.1} parent=1 // loop_header
      %s14 = sphi 0, %s18
      %p15 = scmp.ge.s32.totalorder %s14, 7
      %s21 = sphi 0, %s33
      %s22 = sphi 0, %s29
      %s23 = sphi 0, %s21
      %s24 = sphi 0, %s22
      %s25 = sphi 0, %s23
      %s26 = sphi 0, %s24
      %s38 = sphi 0, %s40
      %s41 = sphi 0, %s38
      %s42 = sphi 0, %s41
      %s58 = sphi 0, %s42
      %s62 = sphi 0, %s62
      %s64 = sphi 0, %s62
      %s65 = sphi 0, %s64
      %s79 = sphi 0, %s65
      %s83 = sphi 0, %s83
      %s85 = sphi 0, %s83
      %s86 = sphi 0, %s85
      %s100 = sphi 0, %s86
      %s104 = sphi 0, %s104
      %s106 = sphi 0, %s104
      %s107 = sphi 0, %s106
      %s121 = sphi 0, %s107
      %s125 = sphi 0, %s125
      %s127 = sphi 0, %s125
      %s128 = sphi 0, %s127
      %s142 = sphi 0, %s128
      %s146 = sphi 0, %s146
      %s148 = sphi 0, %s146
      %s149 = sphi 0, %s148
      %s163 = sphi 0, %s149
      %s169 = sphi 0, %s171
      %s172 = sphi 0, %s169
      %s173 = sphi 0, %s172
      %s189 = sphi 0, %s173
    $region4: #{tpu_custom_call.1} parent=1 // loop_header_branch
      %17 = sbr.rel (%p15) target = $region8
    $region5: #{tpu_custom_call.1} parent=1 // loop_body
      %s19 = ssub.s32 %s14, 1
      %s20 = ssub.s32 %s14, 2
      %s27 = sadd.s32 1, %s22
      %p28 = scmp.ge.s32.totalorder %s27, 5
      %s29 = scalar_select %p28, 0, %s27
      %s30 = sadd.s32 1, %s21
      %s31 = scalar_select %p28, %s30, %s21
      %p32 = scmp.ge.s32.totalorder %s31, 1
      %s33 = scalar_select %p32, 0, %s31
      %s34 = ssub.s32 %s22, %s29
      %s35 = ssub.s32 %s21, %s33
      %s36 = sor.u32 %s34, %s35
      %p37 = scmp.eq.s32.totalorder %s36, 0
      %s39 = sadd.s32 %s38, 1
      %s40 = scalar_select %p37, %s38, %s39
      %p43 = pneg %p37
      %p44 = scmp.eq.s32.totalorder %s14, 4
      %p45 = por %p43, %p44
      %p46 = scmp.ne.s32.totalorder %s38, %s41
      %p47 = scmp.eq.s32.totalorder %s14, 0
      %p48 = por %p46, %p47
      %p49 = scmp.ne.s32.totalorder %s38, %s41
      %p50 = scmp.eq.s32.totalorder %s19, 4
      %p51 = por %p49, %p50
      %p52 = scmp.ne.s32.totalorder %s41, %s42
      %p53 = scmp.eq.s32.totalorder %s19, 0
      %p54 = por %p52, %p53
      %p55 = scmp.ne.s32.totalorder %s41, %s42
      %p56 = scmp.eq.s32.totalorder %s20, 4
      %p57 = por %p55, %p56
      %p59 = scmp.ne.s32.totalorder %s42, %s58
      %p60 = scmp.eq.s32.totalorder %s20, 0
      %p61 = por %p59, %p60
      %s63 = sadd.s32 %s62, 1
      %p66 = scmp.eq.s32.totalorder %s14, 4
      %p67 = scmp.ne.s32.totalorder %s62, %s64
      %p68 = scmp.eq.s32.totalorder %s14, 0
      %p69 = por %p67, %p68
      %p70 = scmp.ne.s32.totalorder %s62, %s64
      %p71 = scmp.eq.s32.totalorder %s19, 4
      %p72 = por %p70, %p71
      %p73 = scmp.ne.s32.totalorder %s64, %s65
      %p74 = scmp.eq.s32.totalorder %s19, 0
      %p75 = por %p73, %p74
      %p76 = scmp.ne.s32.totalorder %s64, %s65
      %p77 = scmp.eq.s32.totalorder %s20, 4
      %p78 = por %p76, %p77
      %p80 = scmp.ne.s32.totalorder %s65, %s79
      %p81 = scmp.eq.s32.totalorder %s20, 0
      %p82 = por %p80, %p81
      %s84 = sadd.s32 %s83, 1
      %p87 = scmp.eq.s32.totalorder %s14, 4
      %p88 = scmp.ne.s32.totalorder %s83, %s85
      %p89 = scmp.eq.s32.totalorder %s14, 0
      %p90 = por %p88, %p89
      %p91 = scmp.ne.s32.totalorder %s83, %s85
      %p92 = scmp.eq.s32.totalorder %s19, 4
      %p93 = por %p91, %p92
      %p94 = scmp.ne.s32.totalorder %s85, %s86
      %p95 = scmp.eq.s32.totalorder %s19, 0
      %p96 = por %p94, %p95
      %p97 = scmp.ne.s32.totalorder %s85, %s86
      %p98 = scmp.eq.s32.totalorder %s20, 4
      %p99 = por %p97, %p98
      %p101 = scmp.ne.s32.totalorder %s86, %s100
      %p102 = scmp.eq.s32.totalorder %s20, 0
      %p103 = por %p101, %p102
      %s105 = sadd.s32 %s104, 1
      %p108 = scmp.eq.s32.totalorder %s14, 4
      %p109 = scmp.ne.s32.totalorder %s104, %s106
      %p110 = scmp.eq.s32.totalorder %s14, 0
      %p111 = por %p109, %p110
      %p112 = scmp.ne.s32.totalorder %s104, %s106
      %p113 = scmp.eq.s32.totalorder %s19, 4
      %p114 = por %p112, %p113
      %p115 = scmp.ne.s32.totalorder %s106, %s107
      %p116 = scmp.eq.s32.totalorder %s19, 0
      %p117 = por %p115, %p116
      %p118 = scmp.ne.s32.totalorder %s106, %s107
      %p119 = scmp.eq.s32.totalorder %s20, 4
      %p120 = por %p118, %p119
      %p122 = scmp.ne.s32.totalorder %s107, %s121
      %p123 = scmp.eq.s32.totalorder %s20, 0
      %p124 = por %p122, %p123
      %s126 = sadd.s32 %s125, 1
      %p129 = scmp.eq.s32.totalorder %s14, 4
      %p130 = scmp.ne.s32.totalorder %s125, %s127
      %p131 = scmp.eq.s32.totalorder %s14, 0
      %p132 = por %p130, %p131
      %p133 = scmp.ne.s32.totalorder %s125, %s127
      %p134 = scmp.eq.s32.totalorder %s19, 4
      %p135 = por %p133, %p134
      %p136 = scmp.ne.s32.totalorder %s127, %s128
      %p137 = scmp.eq.s32.totalorder %s19, 0
      %p138 = por %p136, %p137
      %p139 = scmp.ne.s32.totalorder %s127, %s128
      %p140 = scmp.eq.s32.totalorder %s20, 4
      %p141 = por %p139, %p140
      %p143 = scmp.ne.s32.totalorder %s128, %s142
      %p144 = scmp.eq.s32.totalorder %s20, 0
      %p145 = por %p143, %p144
      %s147 = sadd.s32 %s146, 1
      %p150 = scmp.eq.s32.totalorder %s14, 4
      %p151 = scmp.ne.s32.totalorder %s146, %s148
      %p152 = scmp.eq.s32.totalorder %s14, 0
      %p153 = por %p151, %p152
      %p154 = scmp.ne.s32.totalorder %s146, %s148
      %p155 = scmp.eq.s32.totalorder %s19, 4
      %p156 = por %p154, %p155
      %p157 = scmp.ne.s32.totalorder %s148, %s149
      %p158 = scmp.eq.s32.totalorder %s19, 0
      %p159 = por %p157, %p158
      %p160 = scmp.ne.s32.totalorder %s148, %s149
      %p161 = scmp.eq.s32.totalorder %s20, 4
      %p162 = por %p160, %p161
      %p164 = scmp.ne.s32.totalorder %s149, %s163
      %p165 = scmp.eq.s32.totalorder %s20, 0
      %p166 = por %p164, %p165
      %s167 = ssub.s32 %s21, %s33
      %p168 = scmp.eq.s32.totalorder %s167, 0
      %s170 = sadd.s32 %s169, 1
      %s171 = scalar_select %p168, %s169, %s170
      %p174 = pneg %p168
      %p175 = scmp.eq.s32.totalorder %s14, 4
      %p176 = por %p174, %p175
      %p177 = scmp.ne.s32.totalorder %s169, %s172
      %p178 = scmp.eq.s32.totalorder %s14, 0
      %p179 = por %p177, %p178
      %p180 = scmp.ne.s32.totalorder %s169, %s172
      %p181 = scmp.eq.s32.totalorder %s19, 4
      %p182 = por %p180, %p181
      %p183 = scmp.ne.s32.totalorder %s172, %s173
      %p184 = scmp.eq.s32.totalorder %s19, 0
      %p185 = por %p183, %p184
      %p186 = scmp.ne.s32.totalorder %s172, %s173
      %p187 = scmp.eq.s32.totalorder %s20, 4
      %p188 = por %p186, %p187
      %p190 = scmp.ne.s32.totalorder %s173, %s189
      %p191 = scmp.eq.s32.totalorder %s20, 0
      %p192 = por %p190, %p191
      %p193 = scmp.le.s32.totalorder 1, %s14
      %p194 = scmp.lt.s32.totalorder %s14, 6
      %p195 = pnand %p193, %p194
      %p196 = pneg %p195
      // Predicated region
      $region9: #{tpu_custom_call.1} parent=5 // pred_check
        _
      $region10: #{tpu_custom_call.1} parent=5 // pred_check_branch
        %198 = sbr.rel (%p195) target = $region12
      $region11: #{tpu_custom_call.1} parent=5 // pred_region
        %s199 = ssub.s32 %s14, 1
        // Predicated region
        $region13: #{tpu_custom_call.1} parent=11 // pred_check
          %p200 = pneg %p75
        $region14: #{tpu_custom_call.1} parent=11 // pred_check_branch
          %202 = sbr.rel (%p200) target = $region16
        $region15: #{tpu_custom_call.1} parent=11 // pred_region
          _
        $region16: #{tpu_custom_call.1} parent=11 // pred_fallthru
          _
        // Predicated region
        $region17: #{tpu_custom_call.1} parent=11 // pred_check
          %p203 = pneg %p96
        $region18: #{tpu_custom_call.1} parent=11 // pred_check_branch
          %205 = sbr.rel (%p203) target = $region20
        $region19: #{tpu_custom_call.1} parent=11 // pred_region
          _
        $region20: #{tpu_custom_call.1} parent=11 // pred_fallthru
          _
        // Predicated region
        $region21: #{tpu_custom_call.1} parent=11 // pred_check
          %p206 = pneg %p117
        $region22: #{tpu_custom_call.1} parent=11 // pred_check_branch
          %208 = sbr.rel (%p206) target = $region24
        $region23: #{tpu_custom_call.1} parent=11 // pred_region
          %s210 = ssub.s32 4096, 4096
          %211 = vsyncadd [#allocation6], %s210
          %s212 = sshll.u32 [#allocation5], 4
          %s213 = int_to_ptr.vmem [resolvable:$true] %s212
          %218 = dma.hbm_to_vmem [thread:$0]  %s3, 4096, %s213, [#allocation6], 256, 256, 16
        $region24: #{tpu_custom_call.1} parent=11 // pred_fallthru
          _
        // Predicated region
        $region25: #{tpu_custom_call.1} parent=11 // pred_check
          %p219 = pneg %p138
        $region26: #{tpu_custom_call.1} parent=11 // pred_check_branch
          %221 = sbr.rel (%p219) target = $region28
        $region27: #{tpu_custom_call.1} parent=11 // pred_region
          _
        $region28: #{tpu_custom_call.1} parent=11 // pred_fallthru
          _
        // Predicated region
        $region29: #{tpu_custom_call.1} parent=11 // pred_check
          %p222 = pneg %p159
        $region30: #{tpu_custom_call.1} parent=11 // pred_check_branch
          %224 = sbr.rel (%p222) target = $region32
        $region31: #{tpu_custom_call.1} parent=11 // pred_region
          _
        $region32: #{tpu_custom_call.1} parent=11 // pred_fallthru
          _
      $region12: #{tpu_custom_call.1} parent=5 // pred_fallthru
        _
      %p225 = scmp.lt.s32.totalorder %s14, 5
      // Predicated region
      $region33: #{tpu_custom_call.1} parent=5 // pred_check
        %p226 = pneg %p225
      $region34: #{tpu_custom_call.1} parent=5 // pred_check_branch
        %228 = sbr.rel (%p226) target = $region36
      $region35: #{tpu_custom_call.1} parent=5 // pred_region
        // Predicated region
        $region37: #{tpu_custom_call.1} parent=35 // pred_check
          %p229 = pneg %p48
        $region38: #{tpu_custom_call.1} parent=35 // pred_check_branch
          %231 = sbr.rel (%p229) target = $region40
        $region39: #{tpu_custom_call.1} parent=35 // pred_region
          %p232 = scmp.lt.s32.totalorder %s22, 4
          %s233 = scalar_select %p232, %s22, 4
          %p234 = scmp.lt.s32.totalorder %s21, 0
          %s235 = scalar_select %p234, %s21, 0
          %s236 = smul.addr %s235, 8
          %s237 = smul.addr %s233, 8
          %s238 = sadd.s32 %s236, %s237
          %s239 = smul.addr %s238, 4
          %s240 = scalar_lea.vmem %s0, %s239
        $region40: #{tpu_custom_call.1} parent=35 // pred_fallthru
          _
      $region36: #{tpu_custom_call.1} parent=5 // pred_fallthru
        _
      %p241 = scmp.le.s32.totalorder 1, %s14
      %p242 = scmp.lt.s32.totalorder %s14, 6
      %p243 = pnand %p241, %p242
      %p244 = pneg %p243
      // Predicated region
      $region41: #{tpu_custom_call.1} parent=5 // pred_check
        _
      $region42: #{tpu_custom_call.1} parent=5 // pred_check_branch
        %246 = sbr.rel (%p243) target = $region44
      $region43: #{tpu_custom_call.1} parent=5 // pred_region
        %s247 = ssub.s32 %s14, 1
        // Predicated region
        $region45: #{tpu_custom_call.1} parent=43 // pred_check
          %p248 = pneg %p117
        $region46: #{tpu_custom_call.1} parent=43 // pred_check_branch
          %250 = sbr.rel (%p248) target = $region48
        $region47: #{tpu_custom_call.1} parent=43 // pred_region
          %251 = dma.done [#allocation6], 4096
        $region48: #{tpu_custom_call.1} parent=43 // pred_fallthru
          _
        %p252 = scmp.lt.s32.totalorder %s24, 4
        %s253 = scalar_select %p252, %s24, 4
        %p254 = scmp.lt.s32.totalorder %s23, 0
        %s255 = scalar_select %p254, %s23, 0
        %s256 = smul.addr %s255, 8
        %s257 = smul.addr %s253, 8
        %s258 = sadd.s32 %s256, %s257
        %s259 = smul.addr %s258, 4
        %s260 = scalar_lea.vmem %s0, %s259
        %p261 = pneg %p54
        %p262 = pneg %p51
        %p263 = pneg %p75
        %p264 = pneg %p72
        %p265 = pneg %p96
        %p266 = pneg %p93
        %p267 = pneg %p117
        %p268 = pneg %p114
        %p269 = pneg %p138
        %p270 = pneg %p135
        %p271 = pneg %p159
        %p272 = pneg %p156
        %p273 = pneg %p185
        %p274 = pneg %p182
        %p275 = scmp.lt.s32.totalorder %s24, 4
        %s276 = scalar_select %p275, %s24, 4
        %p277 = scmp.lt.s32.totalorder %s23, 0
        %s278 = scalar_select %p277, %s23, 0
        %s279 = smul.addr %s278, 8
        %s280 = smul.addr %s276, 8
        %s281 = sadd.s32 %s279, %s280
        %s282 = smul.addr %s281, 4
        %s283 = scalar_lea.vmem %s0, %s282
        %p285 = scmp.eq.s32.totalorder %s24, 0
        // Predicated region
        $region49: #{tpu_custom_call.1} parent=43 // pred_check
          %p286 = pneg %p285
        $region50: #{tpu_custom_call.1} parent=43 // pred_check_branch
          %288 = sbr.rel (%p286) target = $region52
        $region51: #{tpu_custom_call.1} parent=43 // pred_region
          %289 = vst [vmem:[#allocation3] sm:$0xff] 0.0
          %290 = vst [vmem:[#allocation4] sm:$0xff] 0.0
        $region52: #{tpu_custom_call.1} parent=43 // pred_fallthru
          _
        %v291 = vld [vmem:[%s283] sm:$0xf]
        %v292 = vld [vmem:[%s283 + $0x4] sm:$0xf]
        %v293 = vld [vmem:[%s283 + $0x8] sm:$0xf]
        %v294 = vld [vmem:[%s283 + $0xc] sm:$0xf]
        %v295 = vld [vmem:[%s283 + $0x10] sm:$0xf]
        %v296 = vld [vmem:[%s283 + $0x14] sm:$0xf]
        %v297 = vld [vmem:[%s283 + $0x18] sm:$0xf]
        %v298 = vld [vmem:[%s283 + $0x1c] sm:$0xf]
        %v299 = vld [vmem:[%s1] sm:$0xff]
        %v300 = vld [vmem:[%s2] sm:$0xf]
        %v302 = vlaneseq
        %v303 = vshrl.u32 %v302, 7
        %v304 = vsub.s32 0, %v303
        %v305 = vrot.slane %v300, %v304
        %v306 = vlaneseq
        %v307 = vshrl.u32 %v306, 7
        %v308 = vsub.s32 1, %v307
        %v309 = vrot.slane %v300, %v308
        %v310 = vlaneseq
        %v311 = vshrl.u32 %v310, 7
        %v312 = vsub.s32 2, %v311
        %v313 = vrot.slane %v300, %v312
        %v314 = vlaneseq
        %v315 = vshrl.u32 %v314, 7
        %v316 = vsub.s32 3, %v315
        %v317 = vrot.slane %v300, %v316
        %v330 = vunpack.c.l.b16 %v291
        %v331 = vunpack.c.l.b16 %v292
        %v332 = vunpack.c.l.b16 %v293
        %v333 = vunpack.c.l.b16 %v294
        %v334 = vunpack.c.l.b16 %v295
        %v335 = vunpack.c.l.b16 %v296
        %v336 = vunpack.c.l.b16 %v297
        %v337 = vunpack.c.l.b16 %v298
        %v338 = vpack.c.b16 %v331, %v330
        %v339 = vpack.c.b16 %v333, %v332
        %v340 = vpack.c.b16 %v335, %v334
        %v341 = vpack.c.b16 %v337, %v336
        %v343 = vcombine.high %v299, %v299
        %v345 = vunpack.c.l.s4 1983009808
        %v346 = vunpack.c.0.s8 %v345
        %v347 = vlaneseq
        %v348 = vshrl.u32 %v347, 7
        %v349 = vsub.s32 %v346, %v348
        %v350 = vrot.slane %v299, %v349
        %v352 = vunpack.c.l.s4 1983009808
        %v353 = vunpack.c.0.s8 %v352
        %v354 = vlaneseq
        %v355 = vshrl.u32 %v354, 7
        %v356 = vsub.s32 %v353, %v355
        %v357 = vrot.slane %v343, %v356
        %v358 = vcombine.high %v350, %v350
        %v359 = vcombine.high %v357, %v357
        %vm360 = vcmask 31744
        %v362 = vsel %vm360, %v338, 0
        %v365 = vsel %vm360, %v339, 0
        %v368 = vsel %vm360, %v340, 0
        %v371 = vsel %vm360, %v341, 0
        %vm373 = vcmask 1041408
        %v375 = vsel %vm373, %v350, 0
        %v378 = vsel %vm373, %v358, 0
        %v381 = vsel %vm373, %v357, 0
        %v384 = vsel %vm373, %v359, 0
        %386 = vmatprep.subr.bf16.mxu0 %v378
        %387 = vmatpush1.bf16.msra.mxu0 %v375
        %388 = vmatprep.subr.bf16.mxu0 0
        %389 = vmatpush1.bf16.msra.mxu0 0
        %390 = vmatprep.subr.bf16.mxu0 0
        %391 = vmatpush1.bf16.msra.mxu0 0
        %392 = vmatprep.subr.bf16.mxu0 0
        %393 = vmatpush1.bf16.msra.mxu0 0
        %394 = vmatprep.subr.bf16.mxu0 0
        %395 = vmatpush1.bf16.msra.mxu0 0
        %396 = vmatprep.subr.bf16.mxu0 0
        %397 = vmatpush1.bf16.msra.mxu0 0
        %398 = vmatprep.subr.bf16.mxu0 0
        %399 = vmatpush1.bf16.msra.mxu0 0
        %400 = vmatprep.subr.bf16.mxu0 0
        %401 = vmatpush1.bf16.msra.mxu0 0
        %402 = vmatprep.subr.bf16.mxu0 0
        %403 = vmatpush1.bf16.msra.mxu0 0
        %404 = vmatprep.subr.bf16.mxu0 0
        %405 = vmatpush1.bf16.msra.mxu0 0
        %406 = vmatprep.subr.bf16.mxu0 0
        %407 = vmatpush1.bf16.msra.mxu0 0
        %408 = vmatprep.subr.bf16.mxu0 0
        %409 = vmatpush1.bf16.msra.mxu0 0
        %410 = vmatprep.subr.bf16.mxu0 0
        %411 = vmatpush1.bf16.msra.mxu0 0
        %412 = vmatprep.subr.bf16.mxu0 0
        %413 = vmatpush1.bf16.msra.mxu0 0
        %414 = vmatprep.subr.bf16.mxu0 0
        %415 = vmatpush1.bf16.msra.mxu0 0
        %416 = vmatprep.subr.bf16.mxu0 0
        %417 = vmatpush1.bf16.msra.mxu0 0
        %418 = vmatprep.mubr.bf16.mxu0 0
        %419 = vmatmul.mubr.bf16.gmra.mrb[0].mxu0 %v362
        %v420 = vpop.f32.mrb[0].mxu0
        %v421 = vadd.f32 %v305, %v420
        %v422 = vpop.f32.mrb[0].mxu0
        %v423 = vadd.f32 %v309, %v422
        %v424 = vpop.f32.mrb[0].mxu0
        %v425 = vadd.f32 %v305, %v424
        %v426 = vpop.f32.mrb[0].mxu0
        %v427 = vadd.f32 %v309, %v426
        %428 = vmatprep.mubr.bf16.mxu0 0
        %429 = vmatmul.mubr.bf16.gmra.mrb[0].mxu0 %v365
        %v430 = vpop.f32.mrb[0].mxu0
        %v431 = vadd.f32 %v305, %v430
        %v432 = vpop.f32.mrb[0].mxu0
        %v433 = vadd.f32 %v309, %v432
        %v434 = vpop.f32.mrb[0].mxu0
        %v435 = vadd.f32 %v305, %v434
        %v436 = vpop.f32.mrb[0].mxu0
        %v437 = vadd.f32 %v309, %v436
        %438 = vmatprep.mubr.bf16.mxu0 0
        %439 = vmatmul.mubr.bf16.gmra.mrb[0].mxu0 %v368
        %v440 = vpop.f32.mrb[0].mxu0
        %v441 = vadd.f32 %v305, %v440
        %v442 = vpop.f32.mrb[0].mxu0
        %v443 = vadd.f32 %v309, %v442
        %v444 = vpop.f32.mrb[0].mxu0
        %v445 = vadd.f32 %v305, %v444
        %v446 = vpop.f32.mrb[0].mxu0
        %v447 = vadd.f32 %v309, %v446
        %448 = vmatprep.mubr.bf16.mxu0 0
        %449 = vmatmul.mubr.bf16.gmra.mrb[0].mxu0 %v371
        %v450 = vpop.f32.mrb[0].mxu0
        %v451 = vadd.f32 %v305, %v450
        %v452 = vpop.f32.mrb[0].mxu0
        %v453 = vadd.f32 %v309, %v452
        %v454 = vpop.f32.mrb[0].mxu0
        %v455 = vadd.f32 %v305, %v454
        %v456 = vpop.f32.mrb[0].mxu0
        %v457 = vadd.f32 %v309, %v456
        %458 = vdwg.mxu0
        %459 = vmatprep.subr.bf16.mxu0 %v384
        %460 = vmatpush1.bf16.msra.mxu0 %v381
        %461 = vmatprep.subr.bf16.mxu0 0
        %462 = vmatpush1.bf16.msra.mxu0 0
        %463 = vmatprep.subr.bf16.mxu0 0
        %464 = vmatpush1.bf16.msra.mxu0 0
        %465 = vmatprep.subr.bf16.mxu0 0
        %466 = vmatpush1.bf16.msra.mxu0 0
        %467 = vmatprep.subr.bf16.mxu0 0
        %468 = vmatpush1.bf16.msra.mxu0 0
        %469 = vmatprep.subr.bf16.mxu0 0
        %470 = vmatpush1.bf16.msra.mxu0 0
        %471 = vmatprep.subr.bf16.mxu0 0
        %472 = vmatpush1.bf16.msra.mxu0 0
        %473 = vmatprep.subr.bf16.mxu0 0
        %474 = vmatpush1.bf16.msra.mxu0 0
        %475 = vmatprep.subr.bf16.mxu0 0
        %476 = vmatpush1.bf16.msra.mxu0 0
        %477 = vmatprep.subr.bf16.mxu0 0
        %478 = vmatpush1.bf16.msra.mxu0 0
        %479 = vmatprep.subr.bf16.mxu0 0
        %480 = vmatpush1.bf16.msra.mxu0 0
        %481 = vmatprep.subr.bf16.mxu0 0
        %482 = vmatpush1.bf16.msra.mxu0 0
        %483 = vmatprep.subr.bf16.mxu0 0
        %484 = vmatpush1.bf16.msra.mxu0 0
        %485 = vmatprep.subr.bf16.mxu0 0
        %486 = vmatpush1.bf16.msra.mxu0 0
        %487 = vmatprep.subr.bf16.mxu0 0
        %488 = vmatpush1.bf16.msra.mxu0 0
        %489 = vmatprep.subr.bf16.mxu0 0
        %490 = vmatpush1.bf16.msra.mxu0 0
        %491 = vmatprep.mubr.bf16.mxu0 0
        %492 = vmatmul.mubr.bf16.gmra.mrb[0].mxu0 %v362
        %v493 = vpop.f32.mrb[0].mxu0
        %v494 = vadd.f32 %v313, %v493
        %v495 = vpop.f32.mrb[0].mxu0
        %v496 = vadd.f32 %v317, %v495
        %v497 = vpop.f32.mrb[0].mxu0
        %v498 = vadd.f32 %v313, %v497
        %v499 = vpop.f32.mrb[0].mxu0
        %v500 = vadd.f32 %v317, %v499
        %501 = vmatprep.mubr.bf16.mxu0 0
        %502 = vmatmul.mubr.bf16.gmra.mrb[0].mxu0 %v365
        %v503 = vpop.f32.mrb[0].mxu0
        %v504 = vadd.f32 %v313, %v503
        %v505 = vpop.f32.mrb[0].mxu0
        %v506 = vadd.f32 %v317, %v505
        %v507 = vpop.f32.mrb[0].mxu0
        %v508 = vadd.f32 %v313, %v507
        %v509 = vpop.f32.mrb[0].mxu0
        %v510 = vadd.f32 %v317, %v509
        %511 = vmatprep.mubr.bf16.mxu0 0
        %512 = vmatmul.mubr.bf16.gmra.mrb[0].mxu0 %v368
        %v513 = vpop.f32.mrb[0].mxu0
        %v514 = vadd.f32 %v313, %v513
        %v515 = vpop.f32.mrb[0].mxu0
        %v516 = vadd.f32 %v317, %v515
        %v517 = vpop.f32.mrb[0].mxu0
        %v518 = vadd.f32 %v313, %v517
        %v519 = vpop.f32.mrb[0].mxu0
        %v520 = vadd.f32 %v317, %v519
        %521 = vmatprep.mubr.bf16.mxu0 0
        %522 = vmatmul.mubr.bf16.gmra.mrb[0].mxu0 %v371
        %v523 = vpop.f32.mrb[0].mxu0
        %v524 = vadd.f32 %v313, %v523
        %v525 = vpop.f32.mrb[0].mxu0
        %v526 = vadd.f32 %v317, %v525
        %v527 = vpop.f32.mrb[0].mxu0
        %v528 = vadd.f32 %v313, %v527
        %v529 = vpop.f32.mrb[0].mxu0
        %v530 = vadd.f32 %v317, %v529
        %531 = vdwg.mxu0
        %532 = vst [vmem:[#allocation2] sm:$0xff] %v421
        %533 = vst [vmem:[#allocation2 + $0x8] sm:$0xff] %v423
        %534 = vst [vmem:[#allocation2 + $0x10] sm:$0xff] %v494
        %535 = vst [vmem:[#allocation2 + $0x18] sm:$0xff] %v496
        %536 = vst [vmem:[#allocation2 + $0x20] sm:$0xff] %v425
        %537 = vst [vmem:[#allocation2 + $0x28] sm:$0xff] %v427
        %538 = vst [vmem:[#allocation2 + $0x30] sm:$0xff] %v498
        %539 = vst [vmem:[#allocation2 + $0x38] sm:$0xff] %v500
        %540 = vst [vmem:[#allocation2 + $0x40] sm:$0xff] %v431
        %541 = vst [vmem:[#allocation2 + $0x48] sm:$0xff] %v433
        %542 = vst [vmem:[#allocation2 + $0x50] sm:$0xff] %v504
        %543 = vst [vmem:[#allocation2 + $0x58] sm:$0xff] %v506
        %544 = vst [vmem:[#allocation2 + $0x60] sm:$0xff] %v435
        %545 = vst [vmem:[#allocation2 + $0x68] sm:$0xff] %v437
        %546 = vst [vmem:[#allocation2 + $0x70] sm:$0xff] %v508
        %547 = vst [vmem:[#allocation2 + $0x78] sm:$0xff] %v510
        %548 = vst [vmem:[#allocation2 + $0x80] sm:$0xff] %v441
        %549 = vst [vmem:[#allocation2 + $0x88] sm:$0xff] %v443
        %550 = vst [vmem:[#allocation2 + $0x90] sm:$0xff] %v514
        %551 = vst [vmem:[#allocation2 + $0x98] sm:$0xff] %v516
        %552 = vst [vmem:[#allocation2 + $0xa0] sm:$0xff] %v445
        %553 = vst [vmem:[#allocation2 + $0xa8] sm:$0xff] %v447
        %554 = vst [vmem:[#allocation2 + $0xb0] sm:$0xff] %v518
        %555 = vst [vmem:[#allocation2 + $0xb8] sm:$0xff] %v520
        %556 = vst [vmem:[#allocation2 + $0xc0] sm:$0xff] %v451
        %557 = vst [vmem:[#allocation2 + $0xc8] sm:$0xff] %v453
        %558 = vst [vmem:[#allocation2 + $0xd0] sm:$0xff] %v524
        %559 = vst [vmem:[#allocation2 + $0xd8] sm:$0xff] %v526
        %560 = vst [vmem:[#allocation2 + $0xe0] sm:$0xff] %v455
        %561 = vst [vmem:[#allocation2 + $0xe8] sm:$0xff] %v457
        %562 = vst [vmem:[#allocation2 + $0xf0] sm:$0xff] %v528
        %563 = vst [vmem:[#allocation2 + $0xf8] sm:$0xff] %v530
        %v564 = vld [vmem:[#allocation3] sm:$0xff]
        %v565 = vld [vmem:[#allocation4] sm:$0xff]
        %v566 = vld [vmem:[#allocation2] sm:$0xff]
        %v567 = vld [vmem:[#allocation2 + $0x8] sm:$0xff]
        %v568 = vld [vmem:[#allocation2 + $0x10] sm:$0xff]
        %v569 = vld [vmem:[#allocation2 + $0x18] sm:$0xff]
        %v570 = vpack.c.bf16 %v564, %v564
        %v571 = vld [vmem:[#allocation5] sm:$0xff]
        %v572 = vld [vmem:[#allocation5 + $0x8] sm:$0xff]
        %v573 = vld [vmem:[#allocation5 + $0x10] sm:$0xff]
        %v574 = vld [vmem:[#allocation5 + $0x18] sm:$0xff]
        %v575 = vld [vmem:[#allocation5 + $0x20] sm:$0xff]
        %v576 = vld [vmem:[#allocation5 + $0x28] sm:$0xff]
        %v577 = vld [vmem:[#allocation5 + $0x30] sm:$0xff]
        %v578 = vld [vmem:[#allocation5 + $0x38] sm:$0xff]
        %v579 = vld [vmem:[#allocation5 + $0x40] sm:$0xff]
        %v580 = vld [vmem:[#allocation5 + $0x48] sm:$0xff]
        %v581 = vld [vmem:[#allocation5 + $0x50] sm:$0xff]
        %v582 = vld [vmem:[#allocation5 + $0x58] sm:$0xff]
        %v583 = vld [vmem:[#allocation5 + $0x60] sm:$0xff]
        %v584 = vld [vmem:[#allocation5 + $0x68] sm:$0xff]
        %v585 = vld [vmem:[#allocation5 + $0x70] sm:$0xff]
        %v586 = vld [vmem:[#allocation5 + $0x78] sm:$0xff]
        %v587 = vld [vmem:[#allocation5 + $0x80] sm:$0xff]
        %v588 = vld [vmem:[#allocation5 + $0x88] sm:$0xff]
        %v589 = vld [vmem:[#allocation5 + $0x90] sm:$0xff]
        %v590 = vld [vmem:[#allocation5 + $0x98] sm:$0xff]
        %v591 = vld [vmem:[#allocation5 + $0xa0] sm:$0xff]
        %v592 = vld [vmem:[#allocation5 + $0xa8] sm:$0xff]
        %v593 = vld [vmem:[#allocation5 + $0xb0] sm:$0xff]
        %v594 = vld [vmem:[#allocation5 + $0xb8] sm:$0xff]
        %v595 = vld [vmem:[#allocation5 + $0xc0] sm:$0xff]
        %v596 = vld [vmem:[#allocation5 + $0xc8] sm:$0xff]
        %v597 = vld [vmem:[#allocation5 + $0xd0] sm:$0xff]
        %v598 = vld [vmem:[#allocation5 + $0xd8] sm:$0xff]
        %v599 = vld [vmem:[#allocation5 + $0xe0] sm:$0xff]
        %v600 = vld [vmem:[#allocation5 + $0xe8] sm:$0xff]
        %v601 = vld [vmem:[#allocation5 + $0xf0] sm:$0xff]
        %v602 = vld [vmem:[#allocation5 + $0xf8] sm:$0xff]
        %v635 = vunpack.c.l.b16 %v571
        %v636 = vunpack.c.h.b16 %v571
        %v637 = vunpack.c.l.b16 %v572
        %v638 = vunpack.c.h.b16 %v572
        %v639 = vunpack.c.l.b16 %v573
        %v640 = vunpack.c.h.b16 %v573
        %v641 = vunpack.c.l.b16 %v574
        %v642 = vunpack.c.h.b16 %v574
        %v643 = vunpack.c.l.b16 %v575
        %v644 = vunpack.c.h.b16 %v575
        %v645 = vunpack.c.l.b16 %v576
        %v646 = vunpack.c.h.b16 %v576
        %v647 = vunpack.c.l.b16 %v577
        %v648 = vunpack.c.h.b16 %v577
        %v649 = vunpack.c.l.b16 %v578
        %v650 = vunpack.c.h.b16 %v578
        %v651 = vunpack.c.l.b16 %v579
        %v652 = vunpack.c.h.b16 %v579
        %v653 = vunpack.c.l.b16 %v580
        %v654 = vunpack.c.h.b16 %v580
        %v655 = vunpack.c.l.b16 %v581
        %v656 = vunpack.c.h.b16 %v581
        %v657 = vunpack.c.l.b16 %v582
        %v658 = vunpack.c.h.b16 %v582
        %v659 = vunpack.c.l.b16 %v583
        %v660 = vunpack.c.h.b16 %v583
        %v661 = vunpack.c.l.b16 %v584
        %v662 = vunpack.c.h.b16 %v584
        %v663 = vunpack.c.l.b16 %v585
        %v664 = vunpack.c.h.b16 %v585
        %v665 = vunpack.c.l.b16 %v586
        %v666 = vunpack.c.h.b16 %v586
        %v667 = vunpack.c.l.b16 %v587
        %v668 = vunpack.c.h.b16 %v587
        %v669 = vunpack.c.l.b16 %v588
        %v670 = vunpack.c.h.b16 %v588
        %v671 = vunpack.c.l.b16 %v589
        %v672 = vunpack.c.h.b16 %v589
        %v673 = vunpack.c.l.b16 %v590
        %v674 = vunpack.c.h.b16 %v590
        %v675 = vunpack.c.l.b16 %v591
        %v676 = vunpack.c.h.b16 %v591
        %v677 = vunpack.c.l.b16 %v592
        %v678 = vunpack.c.h.b16 %v592
        %v679 = vunpack.c.l.b16 %v593
        %v680 = vunpack.c.h.b16 %v593
        %v681 = vunpack.c.l.b16 %v594
        %v682 = vunpack.c.h.b16 %v594
        %v683 = vunpack.c.l.b16 %v595
        %v684 = vunpack.c.h.b16 %v595
        %v685 = vunpack.c.l.b16 %v596
        %v686 = vunpack.c.h.b16 %v596
        %v687 = vunpack.c.l.b16 %v597
        %v688 = vunpack.c.h.b16 %v597
        %v689 = vunpack.c.l.b16 %v598
        %v690 = vunpack.c.h.b16 %v598
        %v691 = vunpack.c.l.b16 %v599
        %v692 = vunpack.c.h.b16 %v599
        %v693 = vunpack.c.l.b16 %v600
        %v694 = vunpack.c.h.b16 %v600
        %v695 = vunpack.c.l.b16 %v601
        %v696 = vunpack.c.h.b16 %v601
        %v697 = vunpack.c.l.b16 %v602
        %v698 = vunpack.c.h.b16 %v602
        %v699 = vpack.c.b16 %v639, %v635
        %v700 = vpack.c.b16 %v640, %v636
        %v701 = vpack.c.b16 %v641, %v637
        %v702 = vpack.c.b16 %v642, %v638
        %v703 = vpack.c.b16 %v647, %v643
        %v704 = vpack.c.b16 %v648, %v644
        %v705 = vpack.c.b16 %v649, %v645
        %v706 = vpack.c.b16 %v650, %v646
        %v707 = vpack.c.b16 %v655, %v651
        %v708 = vpack.c.b16 %v656, %v652
        %v709 = vpack.c.b16 %v657, %v653
        %v710 = vpack.c.b16 %v658, %v654
        %v711 = vpack.c.b16 %v663, %v659
        %v712 = vpack.c.b16 %v664, %v660
        %v713 = vpack.c.b16 %v665, %v661
        %v714 = vpack.c.b16 %v666, %v662
        %v715 = vpack.c.b16 %v671, %v667
        %v716 = vpack.c.b16 %v672, %v668
        %v717 = vpack.c.b16 %v673, %v669
        %v718 = vpack.c.b16 %v674, %v670
        %v719 = vpack.c.b16 %v679, %v675
        %v720 = vpack.c.b16 %v680, %v676
        %v721 = vpack.c.b16 %v681, %v677
        %v722 = vpack.c.b16 %v682, %v678
        %v723 = vpack.c.b16 %v687, %v683
        %v724 = vpack.c.b16 %v688, %v684
        %v725 = vpack.c.b16 %v689, %v685
        %v726 = vpack.c.b16 %v690, %v686
        %v727 = vpack.c.b16 %v695, %v691
        %v728 = vpack.c.b16 %v696, %v692
        %v729 = vpack.c.b16 %v697, %v693
        %v730 = vpack.c.b16 %v698, %v694
        %763 = vmatprep.subr.bf16.mxu0 %v700
        %764 = vmatpush1.bf16.msra.mxu0 %v699
        %765 = vmatprep.subr.bf16.mxu0 %v704
        %766 = vmatpush1.bf16.msra.mxu0 %v703
        %767 = vmatprep.subr.bf16.mxu0 %v708
        %768 = vmatpush1.bf16.msra.mxu0 %v707
        %769 = vmatprep.subr.bf16.mxu0 %v712
        %770 = vmatpush1.bf16.msra.mxu0 %v711
        %771 = vmatprep.subr.bf16.mxu0 %v716
        %772 = vmatpush1.bf16.msra.mxu0 %v715
        %773 = vmatprep.subr.bf16.mxu0 %v720
        %774 = vmatpush1.bf16.msra.mxu0 %v719
        %775 = vmatprep.subr.bf16.mxu0 %v724
        %776 = vmatpush1.bf16.msra.mxu0 %v723
        %777 = vmatprep.subr.bf16.mxu0 %v728
        %778 = vmatpush1.bf16.msra.mxu0 %v727
        %779 = vmatprep.subr.bf16.mxu0 0
        %780 = vmatpush1.bf16.msra.mxu0 0
        %781 = vmatprep.subr.bf16.mxu0 0
        %782 = vmatpush1.bf16.msra.mxu0 0
        %783 = vmatprep.subr.bf16.mxu0 0
        %784 = vmatpush1.bf16.msra.mxu0 0
        %785 = vmatprep.subr.bf16.mxu0 0
        %786 = vmatpush1.bf16.msra.mxu0 0
        %787 = vmatprep.subr.bf16.mxu0 0
        %788 = vmatpush1.bf16.msra.mxu0 0
        %789 = vmatprep.subr.bf16.mxu0 0
        %790 = vmatpush1.bf16.msra.mxu0 0
        %791 = vmatprep.subr.bf16.mxu0 0
        %792 = vmatpush1.bf16.msra.mxu0 0
        %793 = vmatprep.subr.bf16.mxu0 0
        %794 = vmatpush1.bf16.msra.mxu0 0
        %795 = vmatprep.mubr.bf16.mxu0 0
        %796 = vmatmul.mubr.bf16.gmra.mrb[0].mxu0 %v570
        %v797 = vpop.f32.mrb[0].mxu0
        %v798 = vadd.f32 0.0, %v797
        %v799 = vpop.f32.mrb[0].mxu0
        %v800 = vadd.f32 0.0, %v799
        %v801 = vpop.f32.mrb[0].mxu0
        %v802 = vpop.f32.mrb[0].mxu0
        %803 = vdwg.mxu0
        %804 = vmatprep.subr.bf16.mxu0 %v702
        %805 = vmatpush1.bf16.msra.mxu0 %v701
        %806 = vmatprep.subr.bf16.mxu0 %v706
        %807 = vmatpush1.bf16.msra.mxu0 %v705
        %808 = vmatprep.subr.bf16.mxu0 %v710
        %809 = vmatpush1.bf16.msra.mxu0 %v709
        %810 = vmatprep.subr.bf16.mxu0 %v714
        %811 = vmatpush1.bf16.msra.mxu0 %v713
        %812 = vmatprep.subr.bf16.mxu0 %v718
        %813 = vmatpush1.bf16.msra.mxu0 %v717
        %814 = vmatprep.subr.bf16.mxu0 %v722
        %815 = vmatpush1.bf16.msra.mxu0 %v721
        %816 = vmatprep.subr.bf16.mxu0 %v726
        %817 = vmatpush1.bf16.msra.mxu0 %v725
        %818 = vmatprep.subr.bf16.mxu0 %v730
        %819 = vmatpush1.bf16.msra.mxu0 %v729
        %820 = vmatprep.subr.bf16.mxu0 0
        %821 = vmatpush1.bf16.msra.mxu0 0
        %822 = vmatprep.subr.bf16.mxu0 0
        %823 = vmatpush1.bf16.msra.mxu0 0
        %824 = vmatprep.subr.bf16.mxu0 0
        %825 = vmatpush1.bf16.msra.mxu0 0
        %826 = vmatprep.subr.bf16.mxu0 0
        %827 = vmatpush1.bf16.msra.mxu0 0
        %828 = vmatprep.subr.bf16.mxu0 0
        %829 = vmatpush1.bf16.msra.mxu0 0
        %830 = vmatprep.subr.bf16.mxu0 0
        %831 = vmatpush1.bf16.msra.mxu0 0
        %832 = vmatprep.subr.bf16.mxu0 0
        %833 = vmatpush1.bf16.msra.mxu0 0
        %834 = vmatprep.subr.bf16.mxu0 0
        %835 = vmatpush1.bf16.msra.mxu0 0
        %836 = vmatprep.mubr.bf16.mxu0 0
        %837 = vmatmul.mubr.bf16.gmra.mrb[0].mxu0 %v570
        %v838 = vpop.f32.mrb[0].mxu0
        %v839 = vadd.f32 0.0, %v838
        %v840 = vpop.f32.mrb[0].mxu0
        %v841 = vadd.f32 0.0, %v840
        %v842 = vpop.f32.mrb[0].mxu0
        %v843 = vpop.f32.mrb[0].mxu0
        %844 = vdwg.mxu0
        %v845 = vadd.f32 %v566, %v798
        %v846 = vadd.f32 %v567, %v800
        %v847 = vadd.f32 %v568, %v839
        %v848 = vadd.f32 %v569, %v841
        %v849 = vxor.u32 %v845, 2147483648
        %v850 = vxor.u32 %v846, 2147483648
        %v851 = vxor.u32 %v847, 2147483648
        %v852 = vmul.f32 %v849, 1.442695
        %v853 = vpow.pop %v852
        %v854 = vmul.f32 %v850, 1.442695
        %v855 = vpow.pop %v854
        %v856 = vmul.f32 %v851, 1.442695
        %v857 = vpow.pop %v856
        %v858 = vadd.f32 %v853, 1.0
        %v859 = vadd.f32 %v855, 1.0
        %v860 = vadd.f32 %v857, 1.0
        %v861 = vrcp.pop %v858
        %v862 = vmul.f32 1.0, %v861
        %v863 = vrcp.pop %v859
        %v864 = vmul.f32 1.0, %v863
        %v865 = vrcp.pop %v860
        %v866 = vmul.f32 1.0, %v865
        %v867 = vtanh.pop %v848
        %v868 = vmul.f32 %v864, %v565
        %v869 = vmul.f32 %v862, %v867
        %v870 = vadd.f32 %v868, %v869
        %v871 = vtanh.pop %v870
        %v872 = vmul.f32 %v866, %v871
        %s873 = smul.u32 %s24, 8
        %p874 = scmp.lt.s32.totalorder %s873, 35
        %s875 = scalar_select %p874, 1, 0
        %v876 = vstv %s875
        %vm877 = vcmp.eq.s32.totalorder %v876, 1
        %v878 = vsel %vm877, %v870, %v565
        %v879 = vsel %vm877, %v872, %v564
        %v880 = vld [vmem:[#allocation2 + $0x20] sm:$0xff]
        %v881 = vld [vmem:[#allocation2 + $0x28] sm:$0xff]
        %v882 = vld [vmem:[#allocation2 + $0x30] sm:$0xff]
        %v883 = vld [vmem:[#allocation2 + $0x38] sm:$0xff]
        %v884 = vpack.c.bf16 %v879, %v879
        %885 = vmatprep.subr.bf16.mxu0 %v700
        %886 = vmatpush1.bf16.msra.mxu0 %v699
        %887 = vmatprep.subr.bf16.mxu0 %v704
        %888 = vmatpush1.bf16.msra.mxu0 %v703
        %889 = vmatprep.subr.bf16.mxu0 %v708
        %890 = vmatpush1.bf16.msra.mxu0 %v707
        %891 = vmatprep.subr.bf16.mxu0 %v712
        %892 = vmatpush1.bf16.msra.mxu0 %v711
        %893 = vmatprep.subr.bf16.mxu0 %v716
        %894 = vmatpush1.bf16.msra.mxu0 %v715
        %895 = vmatprep.subr.bf16.mxu0 %v720
        %896 = vmatpush1.bf16.msra.mxu0 %v719
        %897 = vmatprep.subr.bf16.mxu0 %v724
        %898 = vmatpush1.bf16.msra.mxu0 %v723
        %899 = vmatprep.subr.bf16.mxu0 %v728
        %900 = vmatpush1.bf16.msra.mxu0 %v727
        %901 = vmatprep.subr.bf16.mxu0 0
        %902 = vmatpush1.bf16.msra.mxu0 0
        %903 = vmatprep.subr.bf16.mxu0 0
        %904 = vmatpush1.bf16.msra.mxu0 0
        %905 = vmatprep.subr.bf16.mxu0 0
        %906 = vmatpush1.bf16.msra.mxu0 0
        %907 = vmatprep.subr.bf16.mxu0 0
        %908 = vmatpush1.bf16.msra.mxu0 0
        %909 = vmatprep.subr.bf16.mxu0 0
        %910 = vmatpush1.bf16.msra.mxu0 0
        %911 = vmatprep.subr.bf16.mxu0 0
        %912 = vmatpush1.bf16.msra.mxu0 0
        %913 = vmatprep.subr.bf16.mxu0 0
        %914 = vmatpush1.bf16.msra.mxu0 0
        %915 = vmatprep.subr.bf16.mxu0 0
        %916 = vmatpush1.bf16.msra.mxu0 0
        %917 = vmatprep.mubr.bf16.mxu0 0
        %918 = vmatmul.mubr.bf16.gmra.mrb[0].mxu0 %v884
        %v919 = vpop.f32.mrb[0].mxu0
        %v920 = vadd.f32 0.0, %v919
        %v921 = vpop.f32.mrb[0].mxu0
        %v922 = vadd.f32 0.0, %v921
        %v923 = vpop.f32.mrb[0].mxu0
        %v924 = vpop.f32.mrb[0].mxu0
        %925 = vdwg.mxu0
        %926 = vmatprep.subr.bf16.mxu0 %v702
        %927 = vmatpush1.bf16.msra.mxu0 %v701
        %928 = vmatprep.subr.bf16.mxu0 %v706
        %929 = vmatpush1.bf16.msra.mxu0 %v705
        %930 = vmatprep.subr.bf16.mxu0 %v710
        %931 = vmatpush1.bf16.msra.mxu0 %v709
        %932 = vmatprep.subr.bf16.mxu0 %v714
        %933 = vmatpush1.bf16.msra.mxu0 %v713
        %934 = vmatprep.subr.bf16.mxu0 %v718
        %935 = vmatpush1.bf16.msra.mxu0 %v717
        %936 = vmatprep.subr.bf16.mxu0 %v722
        %937 = vmatpush1.bf16.msra.mxu0 %v721
        %938 = vmatprep.subr.bf16.mxu0 %v726
        %939 = vmatpush1.bf16.msra.mxu0 %v725
        %940 = vmatprep.subr.bf16.mxu0 %v730
        %941 = vmatpush1.bf16.msra.mxu0 %v729
        %942 = vmatprep.subr.bf16.mxu0 0
        %943 = vmatpush1.bf16.msra.mxu0 0
        %944 = vmatprep.subr.bf16.mxu0 0
        %945 = vmatpush1.bf16.msra.mxu0 0
        %946 = vmatprep.subr.bf16.mxu0 0
        %947 = vmatpush1.bf16.msra.mxu0 0
        %948 = vmatprep.subr.bf16.mxu0 0
        %949 = vmatpush1.bf16.msra.mxu0 0
        %950 = vmatprep.subr.bf16.mxu0 0
        %951 = vmatpush1.bf16.msra.mxu0 0
        %952 = vmatprep.subr.bf16.mxu0 0
        %953 = vmatpush1.bf16.msra.mxu0 0
        %954 = vmatprep.subr.bf16.mxu0 0
        %955 = vmatpush1.bf16.msra.mxu0 0
        %956 = vmatprep.subr.bf16.mxu0 0
        %957 = vmatpush1.bf16.msra.mxu0 0
        %958 = vmatprep.mubr.bf16.mxu0 0
        %959 = vmatmul.mubr.bf16.gmra.mrb[0].mxu0 %v884
        %v960 = vpop.f32.mrb[0].mxu0
        %v961 = vadd.f32 0.0, %v960
        %v962 = vpop.f32.mrb[0].mxu0
        %v963 = vadd.f32 0.0, %v962
        %v964 = vpop.f32.mrb[0].mxu0
        %v965 = vpop.f32.mrb[0].mxu0
        %966 = vdwg.mxu0
        %v967 = vadd.f32 %v880, %v920
        %v968 = vadd.f32 %v881, %v922
        %v969 = vadd.f32 %v882, %v961
        %v970 = vadd.f32 %v883, %v963
        %v971 = vxor.u32 %v967, 2147483648
        %v972 = vxor.u32 %v968, 2147483648
        %v973 = vxor.u32 %v969, 2147483648
        %v974 = vmul.f32 %v971, 1.442695
        %v975 = vpow.pop %v974
        %v976 = vmul.f32 %v972, 1.442695
        %v977 = vpow.pop %v976
        %v978 = vmul.f32 %v973, 1.442695
        %v979 = vpow.pop %v978
        %v980 = vadd.f32 %v975, 1.0
        %v981 = vadd.f32 %v977, 1.0
        %v982 = vadd.f32 %v979, 1.0
        %v983 = vrcp.pop %v980
        %v984 = vmul.f32 1.0, %v983
        %v985 = vrcp.pop %v981
        %v986 = vmul.f32 1.0, %v985
        %v987 = vrcp.pop %v982
        %v988 = vmul.f32 1.0, %v987
        %v989 = vtanh.pop %v970
        %v990 = vmul.f32 %v986, %v878
        %v991 = vmul.f32 %v984, %v989
        %v992 = vadd.f32 %v990, %v991
        %v993 = vtanh.pop %v992
        %v994 = vmul.f32 %v988, %v993
        %s995 = sadd.s32 %s873, 1
        %p996 = scmp.lt.s32.totalorder %s995, 35
        %s997 = scalar_select %p996, 1, 0
        %v998 = vstv %s997
        %vm999 = vcmp.eq.s32.totalorder %v998, 1
        %v1000 = vsel %vm999, %v992, %v878
        %v1001 = vsel %vm999, %v994, %v879
        %v1002 = vld [vmem:[#allocation2 + $0x40] sm:$0xff]
        %v1003 = vld [vmem:[#allocation2 + $0x48] sm:$0xff]
        %v1004 = vld [vmem:[#allocation2 + $0x50] sm:$0xff]
        %v1005 = vld [vmem:[#allocation2 + $0x58] sm:$0xff]
        %v1006 = vpack.c.bf16 %v1001, %v1001
        %1007 = vmatprep.subr.bf16.mxu0 %v700
        %1008 = vmatpush1.bf16.msra.mxu0 %v699
        %1009 = vmatprep.subr.bf16.mxu0 %v704
        %1010 = vmatpush1.bf16.msra.mxu0 %v703
        %1011 = vmatprep.subr.bf16.mxu0 %v708
        %1012 = vmatpush1.bf16.msra.mxu0 %v707
        %1013 = vmatprep.subr.bf16.mxu0 %v712
        %1014 = vmatpush1.bf16.msra.mxu0 %v711
        %1015 = vmatprep.subr.bf16.mxu0 %v716
        %1016 = vmatpush1.bf16.msra.mxu0 %v715
        %1017 = vmatprep.subr.bf16.mxu0 %v720
        %1018 = vmatpush1.bf16.msra.mxu0 %v719
        %1019 = vmatprep.subr.bf16.mxu0 %v724
        %1020 = vmatpush1.bf16.msra.mxu0 %v723
        %1021 = vmatprep.subr.bf16.mxu0 %v728
        %1022 = vmatpush1.bf16.msra.mxu0 %v727
        %1023 = vmatprep.subr.bf16.mxu0 0
        %1024 = vmatpush1.bf16.msra.mxu0 0
        %1025 = vmatprep.subr.bf16.mxu0 0
        %1026 = vmatpush1.bf16.msra.mxu0 0
        %1027 = vmatprep.subr.bf16.mxu0 0
        %1028 = vmatpush1.bf16.msra.mxu0 0
        %1029 = vmatprep.subr.bf16.mxu0 0
        %1030 = vmatpush1.bf16.msra.mxu0 0
        %1031 = vmatprep.subr.bf16.mxu0 0
        %1032 = vmatpush1.bf16.msra.mxu0 0
        %1033 = vmatprep.subr.bf16.mxu0 0
        %1034 = vmatpush1.bf16.msra.mxu0 0
        %1035 = vmatprep.subr.bf16.mxu0 0
        %1036 = vmatpush1.bf16.msra.mxu0 0
        %1037 = vmatprep.subr.bf16.mxu0 0
        %1038 = vmatpush1.bf16.msra.mxu0 0
        %1039 = vmatprep.mubr.bf16.mxu0 0
        %1040 = vmatmul.mubr.bf16.gmra.mrb[0].mxu0 %v1006
        %v1041 = vpop.f32.mrb[0].mxu0
        %v1042 = vadd.f32 0.0, %v1041
        %v1043 = vpop.f32.mrb[0].mxu0
        %v1044 = vadd.f32 0.0, %v1043
        %v1045 = vpop.f32.mrb[0].mxu0
        %v1046 = vpop.f32.mrb[0].mxu0
        %1047 = vdwg.mxu0
        %1048 = vmatprep.subr.bf16.mxu0 %v702
        %1049 = vmatpush1.bf16.msra.mxu0 %v701
        %1050 = vmatprep.subr.bf16.mxu0 %v706
        %1051 = vmatpush1.bf16.msra.mxu0 %v705
        %1052 = vmatprep.subr.bf16.mxu0 %v710
        %1053 = vmatpush1.bf16.msra.mxu0 %v709
        %1054 = vmatprep.subr.bf16.mxu0 %v714
        %1055 = vmatpush1.bf16.msra.mxu0 %v713
        %1056 = vmatprep.subr.bf16.mxu0 %v718
        %1057 = vmatpush1.bf16.msra.mxu0 %v717
        %1058 = vmatprep.subr.bf16.mxu0 %v722
        %1059 = vmatpush1.bf16.msra.mxu0 %v721
        %1060 = vmatprep.subr.bf16.mxu0 %v726
        %1061 = vmatpush1.bf16.msra.mxu0 %v725
        %1062 = vmatprep.subr.bf16.mxu0 %v730
        %1063 = vmatpush1.bf16.msra.mxu0 %v729
        %1064 = vmatprep.subr.bf16.mxu0 0
        %1065 = vmatpush1.bf16.msra.mxu0 0
        %1066 = vmatprep.subr.bf16.mxu0 0
        %1067 = vmatpush1.bf16.msra.mxu0 0
        %1068 = vmatprep.subr.bf16.mxu0 0
        %1069 = vmatpush1.bf16.msra.mxu0 0
        %1070 = vmatprep.subr.bf16.mxu0 0
        %1071 = vmatpush1.bf16.msra.mxu0 0
        %1072 = vmatprep.subr.bf16.mxu0 0
        %1073 = vmatpush1.bf16.msra.mxu0 0
        %1074 = vmatprep.subr.bf16.mxu0 0
        %1075 = vmatpush1.bf16.msra.mxu0 0
        %1076 = vmatprep.subr.bf16.mxu0 0
        %1077 = vmatpush1.bf16.msra.mxu0 0
        %1078 = vmatprep.subr.bf16.mxu0 0
        %1079 = vmatpush1.bf16.msra.mxu0 0
        %1080 = vmatprep.mubr.bf16.mxu0 0
        %1081 = vmatmul.mubr.bf16.gmra.mrb[0].mxu0 %v1006
        %v1082 = vpop.f32.mrb[0].mxu0
        %v1083 = vadd.f32 0.0, %v1082
        %v1084 = vpop.f32.mrb[0].mxu0
        %v1085 = vadd.f32 0.0, %v1084
        %v1086 = vpop.f32.mrb[0].mxu0
        %v1087 = vpop.f32.mrb[0].mxu0
        %1088 = vdwg.mxu0
        %v1089 = vadd.f32 %v1002, %v1042
        %v1090 = vadd.f32 %v1003, %v1044
        %v1091 = vadd.f32 %v1004, %v1083
        %v1092 = vadd.f32 %v1005, %v1085
        %v1093 = vxor.u32 %v1089, 2147483648
        %v1094 = vxor.u32 %v1090, 2147483648
        %v1095 = vxor.u32 %v1091, 2147483648
        %v1096 = vmul.f32 %v1093, 1.442695
        %v1097 = vpow.pop %v1096
        %v1098 = vmul.f32 %v1094, 1.442695
        %v1099 = vpow.pop %v1098
        %v1100 = vmul.f32 %v1095, 1.442695
        %v1101 = vpow.pop %v1100
        %v1102 = vadd.f32 %v1097, 1.0
        %v1103 = vadd.f32 %v1099, 1.0
        %v1104 = vadd.f32 %v1101, 1.0
        %v1105 = vrcp.pop %v1102
        %v1106 = vmul.f32 1.0, %v1105
        %v1107 = vrcp.pop %v1103
        %v1108 = vmul.f32 1.0, %v1107
        %v1109 = vrcp.pop %v1104
        %v1110 = vmul.f32 1.0, %v1109
        %v1111 = vtanh.pop %v1092
        %v1112 = vmul.f32 %v1108, %v1000
        %v1113 = vmul.f32 %v1106, %v1111
        %v1114 = vadd.f32 %v1112, %v1113
        %v1115 = vtanh.pop %v1114
        %v1116 = vmul.f32 %v1110, %v1115
        %s1117 = sadd.s32 %s873, 2
        %p1118 = scmp.lt.s32.totalorder %s1117, 35
        %s1119 = scalar_select %p1118, 1, 0
        %v1120 = vstv %s1119
        %vm1121 = vcmp.eq.s32.totalorder %v1120, 1
        %v1122 = vsel %vm1121, %v1114, %v1000
        %v1123 = vsel %vm1121, %v1116, %v1001
        %v1124 = vld [vmem:[#allocation2 + $0x60] sm:$0xff]
        %v1125 = vld [vmem:[#allocation2 + $0x68] sm:$0xff]
        %v1126 = vld [vmem:[#allocation2 + $0x70] sm:$0xff]
        %v1127 = vld [vmem:[#allocation2 + $0x78] sm:$0xff]
        %v1128 = vpack.c.bf16 %v1123, %v1123
        %1129 = vmatprep.subr.bf16.mxu0 %v700
        %1130 = vmatpush1.bf16.msra.mxu0 %v699
        %1131 = vmatprep.subr.bf16.mxu0 %v704
        %1132 = vmatpush1.bf16.msra.mxu0 %v703
        %1133 = vmatprep.subr.bf16.mxu0 %v708
        %1134 = vmatpush1.bf16.msra.mxu0 %v707
        %1135 = vmatprep.subr.bf16.mxu0 %v712
        %1136 = vmatpush1.bf16.msra.mxu0 %v711
        %1137 = vmatprep.subr.bf16.mxu0 %v716
        %1138 = vmatpush1.bf16.msra.mxu0 %v715
        %1139 = vmatprep.subr.bf16.mxu0 %v720
        %1140 = vmatpush1.bf16.msra.mxu0 %v719
        %1141 = vmatprep.subr.bf16.mxu0 %v724
        %1142 = vmatpush1.bf16.msra.mxu0 %v723
        %1143 = vmatprep.subr.bf16.mxu0 %v728
        %1144 = vmatpush1.bf16.msra.mxu0 %v727
        %1145 = vmatprep.subr.bf16.mxu0 0
        %1146 = vmatpush1.bf16.msra.mxu0 0
        %1147 = vmatprep.subr.bf16.mxu0 0
        %1148 = vmatpush1.bf16.msra.mxu0 0
        %1149 = vmatprep.subr.bf16.mxu0 0
        %1150 = vmatpush1.bf16.msra.mxu0 0
        %1151 = vmatprep.subr.bf16.mxu0 0
        %1152 = vmatpush1.bf16.msra.mxu0 0
        %1153 = vmatprep.subr.bf16.mxu0 0
        %1154 = vmatpush1.bf16.msra.mxu0 0
        %1155 = vmatprep.subr.bf16.mxu0 0
        %1156 = vmatpush1.bf16.msra.mxu0 0
        %1157 = vmatprep.subr.bf16.mxu0 0
        %1158 = vmatpush1.bf16.msra.mxu0 0
        %1159 = vmatprep.subr.bf16.mxu0 0
        %1160 = vmatpush1.bf16.msra.mxu0 0
        %1161 = vmatprep.mubr.bf16.mxu0 0
        %1162 = vmatmul.mubr.bf16.gmra.mrb[0].mxu0 %v1128
        %v1163 = vpop.f32.mrb[0].mxu0
        %v1164 = vadd.f32 0.0, %v1163
        %v1165 = vpop.f32.mrb[0].mxu0
        %v1166 = vadd.f32 0.0, %v1165
        %v1167 = vpop.f32.mrb[0].mxu0
        %v1168 = vpop.f32.mrb[0].mxu0
        %1169 = vdwg.mxu0
        %1170 = vmatprep.subr.bf16.mxu0 %v702
        %1171 = vmatpush1.bf16.msra.mxu0 %v701
        %1172 = vmatprep.subr.bf16.mxu0 %v706
        %1173 = vmatpush1.bf16.msra.mxu0 %v705
        %1174 = vmatprep.subr.bf16.mxu0 %v710
        %1175 = vmatpush1.bf16.msra.mxu0 %v709
        %1176 = vmatprep.subr.bf16.mxu0 %v714
        %1177 = vmatpush1.bf16.msra.mxu0 %v713
        %1178 = vmatprep.subr.bf16.mxu0 %v718
        %1179 = vmatpush1.bf16.msra.mxu0 %v717
        %1180 = vmatprep.subr.bf16.mxu0 %v722
        %1181 = vmatpush1.bf16.msra.mxu0 %v721
        %1182 = vmatprep.subr.bf16.mxu0 %v726
        %1183 = vmatpush1.bf16.msra.mxu0 %v725
        %1184 = vmatprep.subr.bf16.mxu0 %v730
        %1185 = vmatpush1.bf16.msra.mxu0 %v729
        %1186 = vmatprep.subr.bf16.mxu0 0
        %1187 = vmatpush1.bf16.msra.mxu0 0
        %1188 = vmatprep.subr.bf16.mxu0 0
        %1189 = vmatpush1.bf16.msra.mxu0 0
        %1190 = vmatprep.subr.bf16.mxu0 0
        %1191 = vmatpush1.bf16.msra.mxu0 0
        %1192 = vmatprep.subr.bf16.mxu0 0
        %1193 = vmatpush1.bf16.msra.mxu0 0
        %1194 = vmatprep.subr.bf16.mxu0 0
        %1195 = vmatpush1.bf16.msra.mxu0 0
        %1196 = vmatprep.subr.bf16.mxu0 0
        %1197 = vmatpush1.bf16.msra.mxu0 0
        %1198 = vmatprep.subr.bf16.mxu0 0
        %1199 = vmatpush1.bf16.msra.mxu0 0
        %1200 = vmatprep.subr.bf16.mxu0 0
        %1201 = vmatpush1.bf16.msra.mxu0 0
        %1202 = vmatprep.mubr.bf16.mxu0 0
        %1203 = vmatmul.mubr.bf16.gmra.mrb[0].mxu0 %v1128
        %v1204 = vpop.f32.mrb[0].mxu0
        %v1205 = vadd.f32 0.0, %v1204
        %v1206 = vpop.f32.mrb[0].mxu0
        %v1207 = vadd.f32 0.0, %v1206
        %v1208 = vpop.f32.mrb[0].mxu0
        %v1209 = vpop.f32.mrb[0].mxu0
        %1210 = vdwg.mxu0
        %v1211 = vadd.f32 %v1124, %v1164
        %v1212 = vadd.f32 %v1125, %v1166
        %v1213 = vadd.f32 %v1126, %v1205
        %v1214 = vadd.f32 %v1127, %v1207
        %v1215 = vxor.u32 %v1211, 2147483648
        %v1216 = vxor.u32 %v1212, 2147483648
        %v1217 = vxor.u32 %v1213, 2147483648
        %v1218 = vmul.f32 %v1215, 1.442695
        %v1219 = vpow.pop %v1218
        %v1220 = vmul.f32 %v1216, 1.442695
        %v1221 = vpow.pop %v1220
        %v1222 = vmul.f32 %v1217, 1.442695
        %v1223 = vpow.pop %v1222
        %v1224 = vadd.f32 %v1219, 1.0
        %v1225 = vadd.f32 %v1221, 1.0
        %v1226 = vadd.f32 %v1223, 1.0
        %v1227 = vrcp.pop %v1224
        %v1228 = vmul.f32 1.0, %v1227
        %v1229 = vrcp.pop %v1225
        %v1230 = vmul.f32 1.0, %v1229
        %v1231 = vrcp.pop %v1226
        %v1232 = vmul.f32 1.0, %v1231
        %v1233 = vtanh.pop %v1214
        %v1234 = vmul.f32 %v1230, %v1122
        %v1235 = vmul.f32 %v1228, %v1233
        %v1236 = vadd.f32 %v1234, %v1235
        %v1237 = vtanh.pop %v1236
        %v1238 = vmul.f32 %v1232, %v1237
        %s1239 = sadd.s32 %s873, 3
        %p1240 = scmp.lt.s32.totalorder %s1239, 35
        %s1241 = scalar_select %p1240, 1, 0
        %v1242 = vstv %s1241
        %vm1243 = vcmp.eq.s32.totalorder %v1242, 1
        %v1244 = vsel %vm1243, %v1236, %v1122
        %v1245 = vsel %vm1243, %v1238, %v1123
        %v1246 = vld [vmem:[#allocation2 + $0x80] sm:$0xff]
        %v1247 = vld [vmem:[#allocation2 + $0x88] sm:$0xff]
        %v1248 = vld [vmem:[#allocation2 + $0x90] sm:$0xff]
        %v1249 = vld [vmem:[#allocation2 + $0x98] sm:$0xff]
        %v1250 = vpack.c.bf16 %v1245, %v1245
        %1251 = vmatprep.subr.bf16.mxu0 %v700
        %1252 = vmatpush1.bf16.msra.mxu0 %v699
        %1253 = vmatprep.subr.bf16.mxu0 %v704
        %1254 = vmatpush1.bf16.msra.mxu0 %v703
        %1255 = vmatprep.subr.bf16.mxu0 %v708
        %1256 = vmatpush1.bf16.msra.mxu0 %v707
        %1257 = vmatprep.subr.bf16.mxu0 %v712
        %1258 = vmatpush1.bf16.msra.mxu0 %v711
        %1259 = vmatprep.subr.bf16.mxu0 %v716
        %1260 = vmatpush1.bf16.msra.mxu0 %v715
        %1261 = vmatprep.subr.bf16.mxu0 %v720
        %1262 = vmatpush1.bf16.msra.mxu0 %v719
        %1263 = vmatprep.subr.bf16.mxu0 %v724
        %1264 = vmatpush1.bf16.msra.mxu0 %v723
        %1265 = vmatprep.subr.bf16.mxu0 %v728
        %1266 = vmatpush1.bf16.msra.mxu0 %v727
        %1267 = vmatprep.subr.bf16.mxu0 0
        %1268 = vmatpush1.bf16.msra.mxu0 0
        %1269 = vmatprep.subr.bf16.mxu0 0
        %1270 = vmatpush1.bf16.msra.mxu0 0
        %1271 = vmatprep.subr.bf16.mxu0 0
        %1272 = vmatpush1.bf16.msra.mxu0 0
        %1273 = vmatprep.subr.bf16.mxu0 0
        %1274 = vmatpush1.bf16.msra.mxu0 0
        %1275 = vmatprep.subr.bf16.mxu0 0
        %1276 = vmatpush1.bf16.msra.mxu0 0
        %1277 = vmatprep.subr.bf16.mxu0 0
        %1278 = vmatpush1.bf16.msra.mxu0 0
        %1279 = vmatprep.subr.bf16.mxu0 0
        %1280 = vmatpush1.bf16.msra.mxu0 0
        %1281 = vmatprep.subr.bf16.mxu0 0
        %1282 = vmatpush1.bf16.msra.mxu0 0
        %1283 = vmatprep.mubr.bf16.mxu0 0
        %1284 = vmatmul.mubr.bf16.gmra.mrb[0].mxu0 %v1250
        %v1285 = vpop.f32.mrb[0].mxu0
        %v1286 = vadd.f32 0.0, %v1285
        %v1287 = vpop.f32.mrb[0].mxu0
        %v1288 = vadd.f32 0.0, %v1287
        %v1289 = vpop.f32.mrb[0].mxu0
        %v1290 = vpop.f32.mrb[0].mxu0
        %1291 = vdwg.mxu0
        %1292 = vmatprep.subr.bf16.mxu0 %v702
        %1293 = vmatpush1.bf16.msra.mxu0 %v701
        %1294 = vmatprep.subr.bf16.mxu0 %v706
        %1295 = vmatpush1.bf16.msra.mxu0 %v705
        %1296 = vmatprep.subr.bf16.mxu0 %v710
        %1297 = vmatpush1.bf16.msra.mxu0 %v709
        %1298 = vmatprep.subr.bf16.mxu0 %v714
        %1299 = vmatpush1.bf16.msra.mxu0 %v713
        %1300 = vmatprep.subr.bf16.mxu0 %v718
        %1301 = vmatpush1.bf16.msra.mxu0 %v717
        %1302 = vmatprep.subr.bf16.mxu0 %v722
        %1303 = vmatpush1.bf16.msra.mxu0 %v721
        %1304 = vmatprep.subr.bf16.mxu0 %v726
        %1305 = vmatpush1.bf16.msra.mxu0 %v725
        %1306 = vmatprep.subr.bf16.mxu0 %v730
        %1307 = vmatpush1.bf16.msra.mxu0 %v729
        %1308 = vmatprep.subr.bf16.mxu0 0
        %1309 = vmatpush1.bf16.msra.mxu0 0
        %1310 = vmatprep.subr.bf16.mxu0 0
        %1311 = vmatpush1.bf16.msra.mxu0 0
        %1312 = vmatprep.subr.bf16.mxu0 0
        %1313 = vmatpush1.bf16.msra.mxu0 0
        %1314 = vmatprep.subr.bf16.mxu0 0
        %1315 = vmatpush1.bf16.msra.mxu0 0
        %1316 = vmatprep.subr.bf16.mxu0 0
        %1317 = vmatpush1.bf16.msra.mxu0 0
        %1318 = vmatprep.subr.bf16.mxu0 0
        %1319 = vmatpush1.bf16.msra.mxu0 0
        %1320 = vmatprep.subr.bf16.mxu0 0
        %1321 = vmatpush1.bf16.msra.mxu0 0
        %1322 = vmatprep.subr.bf16.mxu0 0
        %1323 = vmatpush1.bf16.msra.mxu0 0
        %1324 = vmatprep.mubr.bf16.mxu0 0
        %1325 = vmatmul.mubr.bf16.gmra.mrb[0].mxu0 %v1250
        %v1326 = vpop.f32.mrb[0].mxu0
        %v1327 = vadd.f32 0.0, %v1326
        %v1328 = vpop.f32.mrb[0].mxu0
        %v1329 = vadd.f32 0.0, %v1328
        %v1330 = vpop.f32.mrb[0].mxu0
        %v1331 = vpop.f32.mrb[0].mxu0
        %1332 = vdwg.mxu0
        %v1333 = vadd.f32 %v1246, %v1286
        %v1334 = vadd.f32 %v1247, %v1288
        %v1335 = vadd.f32 %v1248, %v1327
        %v1336 = vadd.f32 %v1249, %v1329
        %v1337 = vxor.u32 %v1333, 2147483648
        %v1338 = vxor.u32 %v1334, 2147483648
        %v1339 = vxor.u32 %v1335, 2147483648
        %v1340 = vmul.f32 %v1337, 1.442695
        %v1341 = vpow.pop %v1340
        %v1342 = vmul.f32 %v1338, 1.442695
        %v1343 = vpow.pop %v1342
        %v1344 = vmul.f32 %v1339, 1.442695
        %v1345 = vpow.pop %v1344
        %v1346 = vadd.f32 %v1341, 1.0
        %v1347 = vadd.f32 %v1343, 1.0
        %v1348 = vadd.f32 %v1345, 1.0
        %v1349 = vrcp.pop %v1346
        %v1350 = vmul.f32 1.0, %v1349
        %v1351 = vrcp.pop %v1347
        %v1352 = vmul.f32 1.0, %v1351
        %v1353 = vrcp.pop %v1348
        %v1354 = vmul.f32 1.0, %v1353
        %v1355 = vtanh.pop %v1336
        %v1356 = vmul.f32 %v1352, %v1244
        %v1357 = vmul.f32 %v1350, %v1355
        %v1358 = vadd.f32 %v1356, %v1357
        %v1359 = vtanh.pop %v1358
        %v1360 = vmul.f32 %v1354, %v1359
        %s1361 = sadd.s32 %s873, 4
        %p1362 = scmp.lt.s32.totalorder %s1361, 35
        %s1363 = scalar_select %p1362, 1, 0
        %v1364 = vstv %s1363
        %vm1365 = vcmp.eq.s32.totalorder %v1364, 1
        %v1366 = vsel %vm1365, %v1358, %v1244
        %v1367 = vsel %vm1365, %v1360, %v1245
        %v1368 = vld [vmem:[#allocation2 + $0xa0] sm:$0xff]
        %v1369 = vld [vmem:[#allocation2 + $0xa8] sm:$0xff]
        %v1370 = vld [vmem:[#allocation2 + $0xb0] sm:$0xff]
        %v1371 = vld [vmem:[#allocation2 + $0xb8] sm:$0xff]
        %v1372 = vpack.c.bf16 %v1367, %v1367
        %1373 = vmatprep.subr.bf16.mxu0 %v700
        %1374 = vmatpush1.bf16.msra.mxu0 %v699
        %1375 = vmatprep.subr.bf16.mxu0 %v704
        %1376 = vmatpush1.bf16.msra.mxu0 %v703
        %1377 = vmatprep.subr.bf16.mxu0 %v708
        %1378 = vmatpush1.bf16.msra.mxu0 %v707
        %1379 = vmatprep.subr.bf16.mxu0 %v712
        %1380 = vmatpush1.bf16.msra.mxu0 %v711
        %1381 = vmatprep.subr.bf16.mxu0 %v716
        %1382 = vmatpush1.bf16.msra.mxu0 %v715
        %1383 = vmatprep.subr.bf16.mxu0 %v720
        %1384 = vmatpush1.bf16.msra.mxu0 %v719
        %1385 = vmatprep.subr.bf16.mxu0 %v724
        %1386 = vmatpush1.bf16.msra.mxu0 %v723
        %1387 = vmatprep.subr.bf16.mxu0 %v728
        %1388 = vmatpush1.bf16.msra.mxu0 %v727
        %1389 = vmatprep.subr.bf16.mxu0 0
        %1390 = vmatpush1.bf16.msra.mxu0 0
        %1391 = vmatprep.subr.bf16.mxu0 0
        %1392 = vmatpush1.bf16.msra.mxu0 0
        %1393 = vmatprep.subr.bf16.mxu0 0
        %1394 = vmatpush1.bf16.msra.mxu0 0
        %1395 = vmatprep.subr.bf16.mxu0 0
        %1396 = vmatpush1.bf16.msra.mxu0 0
        %1397 = vmatprep.subr.bf16.mxu0 0
        %1398 = vmatpush1.bf16.msra.mxu0 0
        %1399 = vmatprep.subr.bf16.mxu0 0
        %1400 = vmatpush1.bf16.msra.mxu0 0
        %1401 = vmatprep.subr.bf16.mxu0 0
        %1402 = vmatpush1.bf16.msra.mxu0 0
        %1403 = vmatprep.subr.bf16.mxu0 0
        %1404 = vmatpush1.bf16.msra.mxu0 0
        %1405 = vmatprep.mubr.bf16.mxu0 0
        %1406 = vmatmul.mubr.bf16.gmra.mrb[0].mxu0 %v1372
        %v1407 = vpop.f32.mrb[0].mxu0
        %v1408 = vadd.f32 0.0, %v1407
        %v1409 = vpop.f32.mrb[0].mxu0
        %v1410 = vadd.f32 0.0, %v1409
        %v1411 = vpop.f32.mrb[0].mxu0
        %v1412 = vpop.f32.mrb[0].mxu0
        %1413 = vdwg.mxu0
        %1414 = vmatprep.subr.bf16.mxu0 %v702
        %1415 = vmatpush1.bf16.msra.mxu0 %v701
        %1416 = vmatprep.subr.bf16.mxu0 %v706
        %1417 = vmatpush1.bf16.msra.mxu0 %v705
        %1418 = vmatprep.subr.bf16.mxu0 %v710
        %1419 = vmatpush1.bf16.msra.mxu0 %v709
        %1420 = vmatprep.subr.bf16.mxu0 %v714
        %1421 = vmatpush1.bf16.msra.mxu0 %v713
        %1422 = vmatprep.subr.bf16.mxu0 %v718
        %1423 = vmatpush1.bf16.msra.mxu0 %v717
        %1424 = vmatprep.subr.bf16.mxu0 %v722
        %1425 = vmatpush1.bf16.msra.mxu0 %v721
        %1426 = vmatprep.subr.bf16.mxu0 %v726
        %1427 = vmatpush1.bf16.msra.mxu0 %v725
        %1428 = vmatprep.subr.bf16.mxu0 %v730
        %1429 = vmatpush1.bf16.msra.mxu0 %v729
        %1430 = vmatprep.subr.bf16.mxu0 0
        %1431 = vmatpush1.bf16.msra.mxu0 0
        %1432 = vmatprep.subr.bf16.mxu0 0
        %1433 = vmatpush1.bf16.msra.mxu0 0
        %1434 = vmatprep.subr.bf16.mxu0 0
        %1435 = vmatpush1.bf16.msra.mxu0 0
        %1436 = vmatprep.subr.bf16.mxu0 0
        %1437 = vmatpush1.bf16.msra.mxu0 0
        %1438 = vmatprep.subr.bf16.mxu0 0
        %1439 = vmatpush1.bf16.msra.mxu0 0
        %1440 = vmatprep.subr.bf16.mxu0 0
        %1441 = vmatpush1.bf16.msra.mxu0 0
        %1442 = vmatprep.subr.bf16.mxu0 0
        %1443 = vmatpush1.bf16.msra.mxu0 0
        %1444 = vmatprep.subr.bf16.mxu0 0
        %1445 = vmatpush1.bf16.msra.mxu0 0
        %1446 = vmatprep.mubr.bf16.mxu0 0
        %1447 = vmatmul.mubr.bf16.gmra.mrb[0].mxu0 %v1372
        %v1448 = vpop.f32.mrb[0].mxu0
        %v1449 = vadd.f32 0.0, %v1448
        %v1450 = vpop.f32.mrb[0].mxu0
        %v1451 = vadd.f32 0.0, %v1450
        %v1452 = vpop.f32.mrb[0].mxu0
        %v1453 = vpop.f32.mrb[0].mxu0
        %1454 = vdwg.mxu0
        %v1455 = vadd.f32 %v1368, %v1408
        %v1456 = vadd.f32 %v1369, %v1410
        %v1457 = vadd.f32 %v1370, %v1449
        %v1458 = vadd.f32 %v1371, %v1451
        %v1459 = vxor.u32 %v1455, 2147483648
        %v1460 = vxor.u32 %v1456, 2147483648
        %v1461 = vxor.u32 %v1457, 2147483648
        %v1462 = vmul.f32 %v1459, 1.442695
        %v1463 = vpow.pop %v1462
        %v1464 = vmul.f32 %v1460, 1.442695
        %v1465 = vpow.pop %v1464
        %v1466 = vmul.f32 %v1461, 1.442695
        %v1467 = vpow.pop %v1466
        %v1468 = vadd.f32 %v1463, 1.0
        %v1469 = vadd.f32 %v1465, 1.0
        %v1470 = vadd.f32 %v1467, 1.0
        %v1471 = vrcp.pop %v1468
        %v1472 = vmul.f32 1.0, %v1471
        %v1473 = vrcp.pop %v1469
        %v1474 = vmul.f32 1.0, %v1473
        %v1475 = vrcp.pop %v1470
        %v1476 = vmul.f32 1.0, %v1475
        %v1477 = vtanh.pop %v1458
        %v1478 = vmul.f32 %v1474, %v1366
        %v1479 = vmul.f32 %v1472, %v1477
        %v1480 = vadd.f32 %v1478, %v1479
        %v1481 = vtanh.pop %v1480
        %v1482 = vmul.f32 %v1476, %v1481
        %s1483 = sadd.s32 %s873, 5
        %p1484 = scmp.lt.s32.totalorder %s1483, 35
        %s1485 = scalar_select %p1484, 1, 0
        %v1486 = vstv %s1485
        %vm1487 = vcmp.eq.s32.totalorder %v1486, 1
        %v1488 = vsel %vm1487, %v1480, %v1366
        %v1489 = vsel %vm1487, %v1482, %v1367
        %v1490 = vld [vmem:[#allocation2 + $0xc0] sm:$0xff]
        %v1491 = vld [vmem:[#allocation2 + $0xc8] sm:$0xff]
        %v1492 = vld [vmem:[#allocation2 + $0xd0] sm:$0xff]
        %v1493 = vld [vmem:[#allocation2 + $0xd8] sm:$0xff]
        %v1494 = vpack.c.bf16 %v1489, %v1489
        %1495 = vmatprep.subr.bf16.mxu0 %v700
        %1496 = vmatpush1.bf16.msra.mxu0 %v699
        %1497 = vmatprep.subr.bf16.mxu0 %v704
        %1498 = vmatpush1.bf16.msra.mxu0 %v703
        %1499 = vmatprep.subr.bf16.mxu0 %v708
        %1500 = vmatpush1.bf16.msra.mxu0 %v707
        %1501 = vmatprep.subr.bf16.mxu0 %v712
        %1502 = vmatpush1.bf16.msra.mxu0 %v711
        %1503 = vmatprep.subr.bf16.mxu0 %v716
        %1504 = vmatpush1.bf16.msra.mxu0 %v715
        %1505 = vmatprep.subr.bf16.mxu0 %v720
        %1506 = vmatpush1.bf16.msra.mxu0 %v719
        %1507 = vmatprep.subr.bf16.mxu0 %v724
        %1508 = vmatpush1.bf16.msra.mxu0 %v723
        %1509 = vmatprep.subr.bf16.mxu0 %v728
        %1510 = vmatpush1.bf16.msra.mxu0 %v727
        %1511 = vmatprep.subr.bf16.mxu0 0
        %1512 = vmatpush1.bf16.msra.mxu0 0
        %1513 = vmatprep.subr.bf16.mxu0 0
        %1514 = vmatpush1.bf16.msra.mxu0 0
        %1515 = vmatprep.subr.bf16.mxu0 0
        %1516 = vmatpush1.bf16.msra.mxu0 0
        %1517 = vmatprep.subr.bf16.mxu0 0
        %1518 = vmatpush1.bf16.msra.mxu0 0
        %1519 = vmatprep.subr.bf16.mxu0 0
        %1520 = vmatpush1.bf16.msra.mxu0 0
        %1521 = vmatprep.subr.bf16.mxu0 0
        %1522 = vmatpush1.bf16.msra.mxu0 0
        %1523 = vmatprep.subr.bf16.mxu0 0
        %1524 = vmatpush1.bf16.msra.mxu0 0
        %1525 = vmatprep.subr.bf16.mxu0 0
        %1526 = vmatpush1.bf16.msra.mxu0 0
        %1527 = vmatprep.mubr.bf16.mxu0 0
        %1528 = vmatmul.mubr.bf16.gmra.mrb[0].mxu0 %v1494
        %v1529 = vpop.f32.mrb[0].mxu0
        %v1530 = vadd.f32 0.0, %v1529
        %v1531 = vpop.f32.mrb[0].mxu0
        %v1532 = vadd.f32 0.0, %v1531
        %v1533 = vpop.f32.mrb[0].mxu0
        %v1534 = vpop.f32.mrb[0].mxu0
        %1535 = vdwg.mxu0
        %1536 = vmatprep.subr.bf16.mxu0 %v702
        %1537 = vmatpush1.bf16.msra.mxu0 %v701
        %1538 = vmatprep.subr.bf16.mxu0 %v706
        %1539 = vmatpush1.bf16.msra.mxu0 %v705
        %1540 = vmatprep.subr.bf16.mxu0 %v710
        %1541 = vmatpush1.bf16.msra.mxu0 %v709
        %1542 = vmatprep.subr.bf16.mxu0 %v714
        %1543 = vmatpush1.bf16.msra.mxu0 %v713
        %1544 = vmatprep.subr.bf16.mxu0 %v718
        %1545 = vmatpush1.bf16.msra.mxu0 %v717
        %1546 = vmatprep.subr.bf16.mxu0 %v722
        %1547 = vmatpush1.bf16.msra.mxu0 %v721
        %1548 = vmatprep.subr.bf16.mxu0 %v726
        %1549 = vmatpush1.bf16.msra.mxu0 %v725
        %1550 = vmatprep.subr.bf16.mxu0 %v730
        %1551 = vmatpush1.bf16.msra.mxu0 %v729
        %1552 = vmatprep.subr.bf16.mxu0 0
        %1553 = vmatpush1.bf16.msra.mxu0 0
        %1554 = vmatprep.subr.bf16.mxu0 0
        %1555 = vmatpush1.bf16.msra.mxu0 0
        %1556 = vmatprep.subr.bf16.mxu0 0
        %1557 = vmatpush1.bf16.msra.mxu0 0
        %1558 = vmatprep.subr.bf16.mxu0 0
        %1559 = vmatpush1.bf16.msra.mxu0 0
        %1560 = vmatprep.subr.bf16.mxu0 0
        %1561 = vmatpush1.bf16.msra.mxu0 0
        %1562 = vmatprep.subr.bf16.mxu0 0
        %1563 = vmatpush1.bf16.msra.mxu0 0
        %1564 = vmatprep.subr.bf16.mxu0 0
        %1565 = vmatpush1.bf16.msra.mxu0 0
        %1566 = vmatprep.subr.bf16.mxu0 0
        %1567 = vmatpush1.bf16.msra.mxu0 0
        %1568 = vmatprep.mubr.bf16.mxu0 0
        %1569 = vmatmul.mubr.bf16.gmra.mrb[0].mxu0 %v1494
        %v1570 = vpop.f32.mrb[0].mxu0
        %v1571 = vadd.f32 0.0, %v1570
        %v1572 = vpop.f32.mrb[0].mxu0
        %v1573 = vadd.f32 0.0, %v1572
        %v1574 = vpop.f32.mrb[0].mxu0
        %v1575 = vpop.f32.mrb[0].mxu0
        %1576 = vdwg.mxu0
        %v1577 = vadd.f32 %v1490, %v1530
        %v1578 = vadd.f32 %v1491, %v1532
        %v1579 = vadd.f32 %v1492, %v1571
        %v1580 = vadd.f32 %v1493, %v1573
        %v1581 = vxor.u32 %v1577, 2147483648
        %v1582 = vxor.u32 %v1578, 2147483648
        %v1583 = vxor.u32 %v1579, 2147483648
        %v1584 = vmul.f32 %v1581, 1.442695
        %v1585 = vpow.pop %v1584
        %v1586 = vmul.f32 %v1582, 1.442695
        %v1587 = vpow.pop %v1586
        %v1588 = vmul.f32 %v1583, 1.442695
        %v1589 = vpow.pop %v1588
        %v1590 = vadd.f32 %v1585, 1.0
        %v1591 = vadd.f32 %v1587, 1.0
        %v1592 = vadd.f32 %v1589, 1.0
        %v1593 = vrcp.pop %v1590
        %v1594 = vmul.f32 1.0, %v1593
        %v1595 = vrcp.pop %v1591
        %v1596 = vmul.f32 1.0, %v1595
        %v1597 = vrcp.pop %v1592
        %v1598 = vmul.f32 1.0, %v1597
        %v1599 = vtanh.pop %v1580
        %v1600 = vmul.f32 %v1596, %v1488
        %v1601 = vmul.f32 %v1594, %v1599
        %v1602 = vadd.f32 %v1600, %v1601
        %v1603 = vtanh.pop %v1602
        %v1604 = vmul.f32 %v1598, %v1603
        %s1605 = sadd.s32 %s873, 6
        %p1606 = scmp.lt.s32.totalorder %s1605, 35
        %s1607 = scalar_select %p1606, 1, 0
        %v1608 = vstv %s1607
        %vm1609 = vcmp.eq.s32.totalorder %v1608, 1
        %v1610 = vsel %vm1609, %v1602, %v1488
        %v1611 = vsel %vm1609, %v1604, %v1489
        %v1612 = vld [vmem:[#allocation2 + $0xe0] sm:$0xff]
        %v1613 = vld [vmem:[#allocation2 + $0xe8] sm:$0xff]
        %v1614 = vld [vmem:[#allocation2 + $0xf0] sm:$0xff]
        %v1615 = vld [vmem:[#allocation2 + $0xf8] sm:$0xff]
        %v1616 = vpack.c.bf16 %v1611, %v1611
        %1617 = vmatprep.subr.bf16.mxu0 %v700
        %1618 = vmatpush1.bf16.msra.mxu0 %v699
        %1619 = vmatprep.subr.bf16.mxu0 %v704
        %1620 = vmatpush1.bf16.msra.mxu0 %v703
        %1621 = vmatprep.subr.bf16.mxu0 %v708
        %1622 = vmatpush1.bf16.msra.mxu0 %v707
        %1623 = vmatprep.subr.bf16.mxu0 %v712
        %1624 = vmatpush1.bf16.msra.mxu0 %v711
        %1625 = vmatprep.subr.bf16.mxu0 %v716
        %1626 = vmatpush1.bf16.msra.mxu0 %v715
        %1627 = vmatprep.subr.bf16.mxu0 %v720
        %1628 = vmatpush1.bf16.msra.mxu0 %v719
        %1629 = vmatprep.subr.bf16.mxu0 %v724
        %1630 = vmatpush1.bf16.msra.mxu0 %v723
        %1631 = vmatprep.subr.bf16.mxu0 %v728
        %1632 = vmatpush1.bf16.msra.mxu0 %v727
        %1633 = vmatprep.subr.bf16.mxu0 0
        %1634 = vmatpush1.bf16.msra.mxu0 0
        %1635 = vmatprep.subr.bf16.mxu0 0
        %1636 = vmatpush1.bf16.msra.mxu0 0
        %1637 = vmatprep.subr.bf16.mxu0 0
        %1638 = vmatpush1.bf16.msra.mxu0 0
        %1639 = vmatprep.subr.bf16.mxu0 0
        %1640 = vmatpush1.bf16.msra.mxu0 0
        %1641 = vmatprep.subr.bf16.mxu0 0
        %1642 = vmatpush1.bf16.msra.mxu0 0
        %1643 = vmatprep.subr.bf16.mxu0 0
        %1644 = vmatpush1.bf16.msra.mxu0 0
        %1645 = vmatprep.subr.bf16.mxu0 0
        %1646 = vmatpush1.bf16.msra.mxu0 0
        %1647 = vmatprep.subr.bf16.mxu0 0
        %1648 = vmatpush1.bf16.msra.mxu0 0
        %1649 = vmatprep.mubr.bf16.mxu0 0
        %1650 = vmatmul.mubr.bf16.gmra.mrb[0].mxu0 %v1616
        %v1651 = vpop.f32.mrb[0].mxu0
        %v1652 = vadd.f32 0.0, %v1651
        %v1653 = vpop.f32.mrb[0].mxu0
        %v1654 = vadd.f32 0.0, %v1653
        %v1655 = vpop.f32.mrb[0].mxu0
        %v1656 = vpop.f32.mrb[0].mxu0
        %1657 = vdwg.mxu0
        %1658 = vmatprep.subr.bf16.mxu0 %v702
        %1659 = vmatpush1.bf16.msra.mxu0 %v701
        %1660 = vmatprep.subr.bf16.mxu0 %v706
        %1661 = vmatpush1.bf16.msra.mxu0 %v705
        %1662 = vmatprep.subr.bf16.mxu0 %v710
        %1663 = vmatpush1.bf16.msra.mxu0 %v709
        %1664 = vmatprep.subr.bf16.mxu0 %v714
        %1665 = vmatpush1.bf16.msra.mxu0 %v713
        %1666 = vmatprep.subr.bf16.mxu0 %v718
        %1667 = vmatpush1.bf16.msra.mxu0 %v717
        %1668 = vmatprep.subr.bf16.mxu0 %v722
        %1669 = vmatpush1.bf16.msra.mxu0 %v721
        %1670 = vmatprep.subr.bf16.mxu0 %v726
        %1671 = vmatpush1.bf16.msra.mxu0 %v725
        %1672 = vmatprep.subr.bf16.mxu0 %v730
        %1673 = vmatpush1.bf16.msra.mxu0 %v729
        %1674 = vmatprep.subr.bf16.mxu0 0
        %1675 = vmatpush1.bf16.msra.mxu0 0
        %1676 = vmatprep.subr.bf16.mxu0 0
        %1677 = vmatpush1.bf16.msra.mxu0 0
        %1678 = vmatprep.subr.bf16.mxu0 0
        %1679 = vmatpush1.bf16.msra.mxu0 0
        %1680 = vmatprep.subr.bf16.mxu0 0
        %1681 = vmatpush1.bf16.msra.mxu0 0
        %1682 = vmatprep.subr.bf16.mxu0 0
        %1683 = vmatpush1.bf16.msra.mxu0 0
        %1684 = vmatprep.subr.bf16.mxu0 0
        %1685 = vmatpush1.bf16.msra.mxu0 0
        %1686 = vmatprep.subr.bf16.mxu0 0
        %1687 = vmatpush1.bf16.msra.mxu0 0
        %1688 = vmatprep.subr.bf16.mxu0 0
        %1689 = vmatpush1.bf16.msra.mxu0 0
        %1690 = vmatprep.mubr.bf16.mxu0 0
        %1691 = vmatmul.mubr.bf16.gmra.mrb[0].mxu0 %v1616
        %v1692 = vpop.f32.mrb[0].mxu0
        %v1693 = vadd.f32 0.0, %v1692
        %v1694 = vpop.f32.mrb[0].mxu0
        %v1695 = vadd.f32 0.0, %v1694
        %v1696 = vpop.f32.mrb[0].mxu0
        %v1697 = vpop.f32.mrb[0].mxu0
        %1698 = vdwg.mxu0
        %v1699 = vadd.f32 %v1612, %v1652
        %v1700 = vadd.f32 %v1613, %v1654
        %v1701 = vadd.f32 %v1614, %v1693
        %v1702 = vadd.f32 %v1615, %v1695
        %v1703 = vxor.u32 %v1699, 2147483648
        %v1704 = vxor.u32 %v1700, 2147483648
        %v1705 = vxor.u32 %v1701, 2147483648
        %v1706 = vmul.f32 %v1703, 1.442695
        %v1707 = vpow.pop %v1706
        %v1708 = vmul.f32 %v1704, 1.442695
        %v1709 = vpow.pop %v1708
        %v1710 = vmul.f32 %v1705, 1.442695
        %v1711 = vpow.pop %v1710
        %v1712 = vadd.f32 %v1707, 1.0
        %v1713 = vadd.f32 %v1709, 1.0
        %v1714 = vadd.f32 %v1711, 1.0
        %v1715 = vrcp.pop %v1712
        %v1716 = vmul.f32 1.0, %v1715
        %v1717 = vrcp.pop %v1713
        %v1718 = vmul.f32 1.0, %v1717
        %v1719 = vrcp.pop %v1714
        %v1720 = vmul.f32 1.0, %v1719
        %v1721 = vtanh.pop %v1702
        %v1722 = vmul.f32 %v1718, %v1610
        %v1723 = vmul.f32 %v1716, %v1721
        %v1724 = vadd.f32 %v1722, %v1723
        %v1725 = vtanh.pop %v1724
        %v1726 = vmul.f32 %v1720, %v1725
        %s1727 = sadd.s32 %s873, 7
        %p1728 = scmp.lt.s32.totalorder %s1727, 35
        %s1729 = scalar_select %p1728, 1, 0
        %v1730 = vstv %s1729
        %vm1731 = vcmp.eq.s32.totalorder %v1730, 1
        %v1732 = vsel %vm1731, %v1724, %v1610
        %v1733 = vsel %vm1731, %v1726, %v1611
        %1734 = vst [vmem:[#allocation3] sm:$0xff] %v1733
        %1735 = vst [vmem:[#allocation4] sm:$0xff] %v1732
        %p1736 = scmp.eq.s32.totalorder %s24, 4
        // Predicated region
        $region53: #{tpu_custom_call.1} parent=43 // pred_check
          %p1737 = pneg %p1736
        $region54: #{tpu_custom_call.1} parent=43 // pred_check_branch
          %1739 = sbr.rel (%p1737) target = $region56
        $region55: #{tpu_custom_call.1} parent=43 // pred_region
          %v1740 = vpack.c.bf16 %v1733, %v1733
          %v1741 = vld [vmem:[%s4] sm:$0xf]
          %v1742 = vld [vmem:[%s4 + $0x4] sm:$0xf]
          %v1743 = vld [vmem:[%s4 + $0x8] sm:$0xf]
          %v1744 = vld [vmem:[%s4 + $0xc] sm:$0xf]
          %v1745 = vld [vmem:[%s4 + $0x10] sm:$0xf]
          %v1746 = vld [vmem:[%s4 + $0x14] sm:$0xf]
          %v1747 = vld [vmem:[%s4 + $0x18] sm:$0xf]
          %v1748 = vld [vmem:[%s4 + $0x1c] sm:$0xf]
          %v1749 = vld [vmem:[%s4 + $0x20] sm:$0xf]
          %v1750 = vld [vmem:[%s4 + $0x24] sm:$0xf]
          %v1751 = vld [vmem:[%s4 + $0x28] sm:$0xf]
          %v1752 = vld [vmem:[%s4 + $0x2c] sm:$0xf]
          %v1753 = vld [vmem:[%s4 + $0x30] sm:$0xf]
          %v1754 = vld [vmem:[%s4 + $0x34] sm:$0xf]
          %v1755 = vld [vmem:[%s4 + $0x38] sm:$0xf]
          %v1756 = vld [vmem:[%s4 + $0x3c] sm:$0xf]
          %v1757 = vld [vmem:[%s5] sm:$0x1]
          %v1759 = vlaneseq
          %v1760 = vshrl.u32 %v1759, 7
          %v1761 = vsub.s32 0, %v1760
          %v1762 = vrot.slane %v1757, %v1761
          %v1780 = vunpack.c.l.b16 %v1741
          %v1781 = vunpack.c.l.b16 %v1742
          %v1782 = vunpack.c.l.b16 %v1743
          %v1783 = vunpack.c.l.b16 %v1744
          %v1784 = vunpack.c.l.b16 %v1745
          %v1785 = vunpack.c.l.b16 %v1746
          %v1786 = vunpack.c.l.b16 %v1747
          %v1787 = vunpack.c.l.b16 %v1748
          %v1788 = vunpack.c.l.b16 %v1749
          %v1789 = vunpack.c.l.b16 %v1750
          %v1790 = vunpack.c.l.b16 %v1751
          %v1791 = vunpack.c.l.b16 %v1752
          %v1792 = vunpack.c.l.b16 %v1753
          %v1793 = vunpack.c.l.b16 %v1754
          %v1794 = vunpack.c.l.b16 %v1755
          %v1795 = vunpack.c.l.b16 %v1756
          %v1796 = vpack.c.b16 %v1781, %v1780
          %v1797 = vpack.c.b16 %v1783, %v1782
          %v1798 = vpack.c.b16 %v1785, %v1784
          %v1799 = vpack.c.b16 %v1787, %v1786
          %v1800 = vpack.c.b16 %v1789, %v1788
          %v1801 = vpack.c.b16 %v1791, %v1790
          %v1802 = vpack.c.b16 %v1793, %v1792
          %v1803 = vpack.c.b16 %v1795, %v1794
          %1812 = vmatprep.subr.bf16.mxu0 0
          %1813 = vmatpush1.bf16.msra.mxu0 %v1796
          %1814 = vmatprep.subr.bf16.mxu0 0
          %1815 = vmatpush1.bf16.msra.mxu0 %v1797
          %1816 = vmatprep.subr.bf16.mxu0 0
          %1817 = vmatpush1.bf16.msra.mxu0 %v1798
          %1818 = vmatprep.subr.bf16.mxu0 0
          %1819 = vmatpush1.bf16.msra.mxu0 %v1799
          %1820 = vmatprep.subr.bf16.mxu0 0
          %1821 = vmatpush1.bf16.msra.mxu0 %v1800
          %1822 = vmatprep.subr.bf16.mxu0 0
          %1823 = vmatpush1.bf16.msra.mxu0 %v1801
          %1824 = vmatprep.subr.bf16.mxu0 0
          %1825 = vmatpush1.bf16.msra.mxu0 %v1802
          %1826 = vmatprep.subr.bf16.mxu0 0
          %1827 = vmatpush1.bf16.msra.mxu0 %v1803
          %1828 = vmatprep.subr.bf16.mxu0 0
          %1829 = vmatpush1.bf16.msra.mxu0 0
          %1830 = vmatprep.subr.bf16.mxu0 0
          %1831 = vmatpush1.bf16.msra.mxu0 0
          %1832 = vmatprep.subr.bf16.mxu0 0
          %1833 = vmatpush1.bf16.msra.mxu0 0
          %1834 = vmatprep.subr.bf16.mxu0 0
          %1835 = vmatpush1.bf16.msra.mxu0 0
          %1836 = vmatprep.subr.bf16.mxu0 0
          %1837 = vmatpush1.bf16.msra.mxu0 0
          %1838 = vmatprep.subr.bf16.mxu0 0
          %1839 = vmatpush1.bf16.msra.mxu0 0
          %1840 = vmatprep.subr.bf16.mxu0 0
          %1841 = vmatpush1.bf16.msra.mxu0 0
          %1842 = vmatprep.subr.bf16.mxu0 0
          %1843 = vmatpush1.bf16.msra.mxu0 0
          %1844 = vmatprep.mubr.bf16.mxu0 0
          %1845 = vmatmul.mubr.bf16.gmra.mrb[0].mxu0 %v1740
          %v1846 = vpop.f32.mrb[0].mxu0
          %v1847 = vadd.f32 %v1762, %v1846
          %v1848 = vpop.f32.mrb[0].mxu0
          %v1849 = vpop.f32.mrb[0].mxu0
          %v1850 = vpop.f32.mrb[0].mxu0
          %1851 = vdwg.mxu0
          %1852 = vst [vmem:[#allocation8] sm:$0xff] %v1847
        $region56: #{tpu_custom_call.1} parent=43 // pred_fallthru
          _
        // Predicated region
        $region57: #{tpu_custom_call.1} parent=43 // pred_check
          %p1853 = pneg %p182
        $region58: #{tpu_custom_call.1} parent=43 // pred_check_branch
          %1855 = sbr.rel (%p1853) target = $region60
        $region59: #{tpu_custom_call.1} parent=43 // pred_region
          %s1857 = ssub.s32 128, 128
          %1858 = vsyncadd [#allocation7], %s1857
          %s1859 = smul.addr %s23, 128
          %s1860 = scalar_lea.hbm %s6, %s1859
          %s1862 = sshll.u32 [#allocation8], 4
          %s1863 = int_to_ptr.vmem [resolvable:$true] %s1862
          %1865 = dma.vmem_to_hbm [thread:$0]  %s1863, 128, %s1860, [#allocation7]
        $region60: #{tpu_custom_call.1} parent=43 // pred_fallthru
          _
        // Predicated region
        $region61: #{tpu_custom_call.1} parent=43 // pred_check
          %p1866 = pneg %p182
        $region62: #{tpu_custom_call.1} parent=43 // pred_check_branch
          %1868 = sbr.rel (%p1866) target = $region64
        $region63: #{tpu_custom_call.1} parent=43 // pred_region
          %1869 = dma.done [#allocation7], 128
        $region64: #{tpu_custom_call.1} parent=43 // pred_fallthru
          _
      $region44: #{tpu_custom_call.1} parent=5 // pred_fallthru
        _
      %p1870 = scmp.le.s32.totalorder 2, %s14
      // Predicated region
      $region65: #{tpu_custom_call.1} parent=5 // pred_check
        %p1871 = pneg %p1870
      $region66: #{tpu_custom_call.1} parent=5 // pred_check_branch
        %1873 = sbr.rel (%p1871) target = $region68
      $region67: #{tpu_custom_call.1} parent=5 // pred_region
        %s1874 = ssub.s32 %s14, 2
      $region68: #{tpu_custom_call.1} parent=5 // pred_fallthru
        _
    $region6: #{tpu_custom_call.1} parent=1 // loop_footer
      %s18 = sadd.s32 1, %s14
    $region7: #{tpu_custom_call.1} parent=1 // loop_footer_branch
      %13 = sbr.rel target = $region3
    $region8: #{tpu_custom_call.1} parent=1 // loop_exit
      _
    %1875 = vsyncpa [#allocation6], 1
    %s1876 = scalar_lea.sflag [#allocation6], 1
    %1877 = vsyncpa %s1876, 1
    %1878 = vsyncpa [#allocation7], 1
    %s1879 = scalar_lea.sflag [#allocation7], 1
    %1880 = vsyncpa %s1879, 1

</llo_original>
